<compile_context>
chip_gen: v6e
topology: v6e:2x2x1
jax: 0.10.0
libtpu: 0.0.40
codegen_flags: <defaults>
</compile_context>

<pallas_src>
import jax
import jax.numpy as jnp
from jax.experimental import pallas as pl
from jax.experimental.pallas import tpu as pltpu


def _round_up(x, m):
    return ((x + m - 1) // m) * m


def _weighted_embed_sum(xi, weights, emb, *, block_rows_max=512, sub_rows=128):
    """sum_k emb[k][xi[:, k]] * weights[k] via a fused one-hot MXU matmul."""
    T, L = xi.shape
    Le, V, D = emb.shape
    assert Le == L and weights.shape == (L,)

    # Fold the per-level scale into the tables (one f32 multiply per table row,
    # identical product to scaling after the gather), stack along the
    # contraction dim and zero-pad it to a lane-aligned multiple of 128.
    emb2d = (emb * weights[:, None, None]).reshape(L * V, D)
    LVp = _round_up(L * V, 128)
    if LVp != L * V:
        emb2d = jnp.pad(emb2d, ((0, LVp - L * V), (0, 0)))

    # Row padding / blocking: 128-row sub-chunks (vreg-friendly), up to
    # block_rows_max rows DMA'd per grid step to amortize grid-step overhead.
    Tp = _round_up(T, sub_rows)
    block_rows = min(_round_up(block_rows_max, sub_rows), Tp)
    Tp = _round_up(Tp, block_rows)
    if Tp != T:
        xi = jnp.pad(xi, ((0, Tp - T), (0, 0)))   # padded rows are sliced off below
    nsub = block_rows // sub_rows
    grid = (Tp // block_rows,)

    def kernel(xi_ref, emb_ref, o_ref):
        # xi_ref : (block_rows, L)  int32   VMEM  token ids (quant levels last)
        # emb_ref: (LVp, D)         float32 VMEM  pre-scaled stacked tables
        # o_ref  : (block_rows, D)  float32 VMEM
        # Static unroll over 128-row sub-chunks: static ds offsets, each
        # sub-chunk's temporaries die at its store (no (256, LVp) live tile).
        for s in range(nsub):
            r0 = s * sub_rows
            # Clamp guards out-of-range ids (PyTorch's gather would raise);
            # it also guarantees the per-level target slabs are disjoint so the
            # OR-accumulation below is exact.  Rows padded past a level's real
            # vocab are zero in emb2d, so clamped ids there contribute zeros.
            ids = jnp.clip(xi_ref[pl.ds(r0, sub_rows), :], 0, V - 1)   # (sub, L)
            col = jax.lax.broadcasted_iota(jnp.int32, (sub_rows, LVp), 1)
            hit = None
            for k in range(L):                       # L small & static -> unrolled
                m = col == (ids[:, k:k + 1] + k * V)
                hit = m if hit is None else jnp.logical_or(hit, m)
            onehot = jnp.where(hit, 1.0, 0.0)        # pure 0/1; scale is in the table
            # Single fused matmul; the MXU accumulates over all levels at once.
            o_ref[pl.ds(r0, sub_rows), :] = jnp.dot(
                onehot, emb_ref[...],
                preferred_element_type=jnp.float32).astype(o_ref.dtype)

    # Explicit VMEM budget: 1x resident table + 2x (pipelined) ids block
    # + 2x output block + margin; floor keeps a comfortable scoped default.
    table_bytes = LVp * D * 4
    ids_blk = block_rows * L * 4
    out_blk = block_rows * D * 4
    vmem_limit = min(max(table_bytes + 2 * (ids_blk + out_blk) + (4 << 20),
                         8 << 20), 48 << 20)

    cost = pl.CostEstimate(
        flops=2 * Tp * LVp * D,
        transcendentals=0,
        bytes_accessed=Tp * L * 4 + table_bytes + Tp * D * 4,
    )

    out = pl.pallas_call(
        kernel,
        out_shape=jax.ShapeDtypeStruct((Tp, D), emb.dtype),
        grid=grid,
        in_specs=[
            pl.BlockSpec((block_rows, L), lambda i: (i, 0)),        # token-id tile
            # Grid-invariant pre-scaled table: whole array resident in VMEM,
            # outside the pipeline -> single copy (no double buffering).
            pl.BlockSpec(memory_space=pltpu.MemorySpace.VMEM),
        ],
        out_specs=pl.BlockSpec((block_rows, D), lambda i: (i, 0)),
        compiler_params=pltpu.CompilerParams(
            dimension_semantics=("parallel",),
            vmem_limit_bytes=vmem_limit),
        cost_estimate=cost,
    )(xi, emb2d)
    return out[:T]


def init_audio_embedding_old(key, l_tokens, token_dim, levels=None):
    """Deterministic synthetic params mirroring AudioEmbedding_Old.__init__."""
    keys = jax.random.split(key, len(l_tokens))
    vmax = max(l_tokens)
    tables = []
    for i, n in enumerate(l_tokens):
        t = jax.random.normal(keys[i], (n, token_dim), jnp.float32)  # nn.Embedding ~ N(0,1)
        if n < vmax:
            t = jnp.pad(t, ((0, vmax - n), (0, 0)))  # pad tables to a common vocab size
        tables.append(t)
    emb = jnp.stack(tables)  # (num_tables, Vmax, D)
    if levels is not None:
        # PyTorch init value is 1.0; perturb deterministically so the scale path is exercised.
        weight = 1.0 + 0.1 * jnp.arange(levels, dtype=jnp.float32)
    else:
        weight = None
    return emb, weight


def audio_embedding_old_forward(emb, weight, xi, quant_level=None):
    """Replicates AudioEmbedding_Old.forward branch semantics.

    quant_level is treated as a static Python value (PyTorch uses it in a host
    `if`), so branch selection happens at trace time.
    """
    if quant_level is None and xi.shape[-1] > 1:
        L = xi.shape[-1]
        w = weight[:L] if weight is not None else jnp.ones((L,), jnp.float32)
        return _weighted_embed_sum(xi, w, emb[:L])
    elif quant_level is None or int(quant_level) == 0:
        xi0 = xi if xi.ndim == 1 else xi[:, 0]
        xi0 = xi0[:, None]                                  # (T, 1)
        w = jnp.ones((1,), jnp.float32)                     # no weight applied in this branch
        return _weighted_embed_sum(xi0, w, emb[0:1])
    else:
        L = xi.shape[-1]
        w = (weight[1:1 + L] if weight is not None
             else jnp.ones((L,), jnp.float32))
        return _weighted_embed_sum(xi, w, emb[1:1 + L])


if __name__ == "__main__":
    key = jax.random.PRNGKey(0)
    k_param, k_ids = jax.random.split(key)

    # 4 codebook levels, vocab 64 each, token_dim 128.
    l_tokens = [64, 64, 64, 64]
    token_dim = 128
    levels = 4
    emb, weight = init_audio_embedding_old(k_param, l_tokens, token_dim, levels)

    # T chosen so the kernel exercises row padding, the 4-sub-chunk inner loop,
    # and a 2-step parallel grid (777 -> padded 1024 = 2 blocks of 512 rows).
    T = 777
    xi = jax.random.randint(k_ids, (T, levels), 0, min(l_tokens), dtype=jnp.int32)

    # --- branch A: quant_level is None, xi.shape[-1] > 1 ---
    out_a = audio_embedding_old_forward(emb, weight, xi, quant_level=None)
    jax.block_until_ready(out_a)
    ref_a = sum(emb[k][xi[:, k]] * weight[k] for k in range(levels))
    assert out_a.shape == (T, token_dim)
    assert jnp.allclose(out_a, ref_a, atol=1e-5, rtol=1e-5)

    # --- branch B: quant_level == 0 -> embeddings[0] only, no weight ---
    out_b = audio_embedding_old_forward(emb, weight, xi, quant_level=0)
    jax.block_until_ready(out_b)
    ref_b = emb[0][xi[:, 0]]
    assert jnp.allclose(out_b, ref_b, atol=1e-5, rtol=1e-5)

    # --- branch C: quant_level > 0 -> embeddings[k+1] with weight[k+1] ---
    xi_c = xi[:, :3]
    out_c = audio_embedding_old_forward(emb, weight, xi_c, quant_level=2)
    jax.block_until_ready(out_c)
    ref_c = sum(emb[k + 1][xi_c[:, k]] * weight[k + 1] for k in range(3))
    assert jnp.allclose(out_c, ref_c, atol=1e-5, rtol=1e-5)

    print("KERNEL_OK")
</pallas_src>

<mosaic_0001>
module attributes {stable_mosaic.version = 11 : i64} {
  func.func @kernel(%arg0: i32, %arg1: memref<512x4xi32, #tpu.memory_space<vmem>>, %arg2: memref<256x128xf32, #tpu.memory_space<vmem>>, %arg3: memref<512x128xf32, #tpu.memory_space<vmem>>) attributes {dimension_semantics = [#tpu.dimension_semantics<parallel>], iteration_bounds = array<i64: 2>, scalar_prefetch = 0 : i64, scratch_operands = 0 : i64, tpu.core_type = #tpu.core_type<tc>, window_params = [{transform_indices = @transform_0, window_bounds = array<i64: 512, 4>}, {pipeline_mode = #tpu.pipeline_mode<synchronous>, transform_indices = @transform_1, window_bounds = array<i64: 256, 128>}, {transform_indices = @transform_2, window_bounds = array<i64: 512, 128>}]} {
    %c0 = arith.constant 0 : index
    %c0_0 = arith.constant 0 : index
    %0 = vector.load %arg1[%c0, %c0_0] : memref<512x4xi32, #tpu.memory_space<vmem>>, vector<128x4xi32>
    %c0_i32 = arith.constant 0 : i32
    %c63_i32 = arith.constant 63 : i32
    %1 = vector.broadcast %c0_i32 : i32 to vector<128x4xi32>
    %2 = arith.maxsi %1, %0 : vector<128x4xi32>
    %3 = vector.broadcast %c63_i32 : i32 to vector<128x4xi32>
    %4 = arith.minsi %3, %2 : vector<128x4xi32>
    %5 = tpu.iota {dimensions = array<i32: 1>} : vector<128x256xi32>
    %6 = vector.extract_strided_slice %4 {offsets = [0, 0], sizes = [128, 1], strides = [1, 1]} : vector<128x4xi32> to vector<128x1xi32>
    %c0_i32_1 = arith.constant 0 : i32
    %7 = vector.broadcast %c0_i32_1 : i32 to vector<128x1xi32>
    %8 = arith.addi %6, %7 : vector<128x1xi32>
    %9 = vector.broadcast %8 : vector<128x1xi32> to vector<128x256xi32>
    %10 = arith.cmpi eq, %5, %9 : vector<128x256xi32>
    %11 = vector.extract_strided_slice %4 {offsets = [0, 1], sizes = [128, 1], strides = [1, 1]} : vector<128x4xi32> to vector<128x1xi32>
    %c64_i32 = arith.constant 64 : i32
    %12 = vector.broadcast %c64_i32 : i32 to vector<128x1xi32>
    %13 = arith.addi %11, %12 : vector<128x1xi32>
    %14 = vector.broadcast %13 : vector<128x1xi32> to vector<128x256xi32>
    %15 = arith.cmpi eq, %5, %14 : vector<128x256xi32>
    %16 = arith.ori %10, %15 : vector<128x256xi1>
    %17 = vector.extract_strided_slice %4 {offsets = [0, 2], sizes = [128, 1], strides = [1, 1]} : vector<128x4xi32> to vector<128x1xi32>
    %c128_i32 = arith.constant 128 : i32
    %18 = vector.broadcast %c128_i32 : i32 to vector<128x1xi32>
    %19 = arith.addi %17, %18 : vector<128x1xi32>
    %20 = vector.broadcast %19 : vector<128x1xi32> to vector<128x256xi32>
    %21 = arith.cmpi eq, %5, %20 : vector<128x256xi32>
    %22 = arith.ori %16, %21 : vector<128x256xi1>
    %23 = vector.extract_strided_slice %4 {offsets = [0, 3], sizes = [128, 1], strides = [1, 1]} : vector<128x4xi32> to vector<128x1xi32>
    %c192_i32 = arith.constant 192 : i32
    %24 = vector.broadcast %c192_i32 : i32 to vector<128x1xi32>
    %25 = arith.addi %23, %24 : vector<128x1xi32>
    %26 = vector.broadcast %25 : vector<128x1xi32> to vector<128x256xi32>
    %27 = arith.cmpi eq, %5, %26 : vector<128x256xi32>
    %28 = arith.ori %22, %27 : vector<128x256xi1>
    %cst = arith.constant 1.000000e+00 : f32
    %cst_2 = arith.constant 0.000000e+00 : f32
    %29 = vector.broadcast %cst : f32 to vector<128x256xf32>
    %30 = vector.broadcast %cst_2 : f32 to vector<128x256xf32>
    %31 = arith.select %28, %29, %30 : vector<128x256xi1>, vector<128x256xf32>
    %c0_3 = arith.constant 0 : index
    %c0_4 = arith.constant 0 : index
    %32 = vector.load %arg2[%c0_3, %c0_4] : memref<256x128xf32, #tpu.memory_space<vmem>>, vector<256x128xf32>
    %cst_5 = arith.constant dense<0.000000e+00> : vector<128x128xf32>
    %33 = tpu.matmul %31, %32, %cst_5 {dimension_numbers = #tpu.dot_dimension_numbers<[1], [0], [0], [1], [0, 0, 1, 1], [], []>} : vector<128x256xf32>, vector<256x128xf32>, vector<128x128xf32> -> vector<128x128xf32>
    %c0_6 = arith.constant 0 : index
    %c0_7 = arith.constant 0 : index
    %34 = vector.load %arg3[%c0_6, %c0_7] : memref<512x128xf32, #tpu.memory_space<vmem>>, vector<128x128xf32>
    tpu.vector_store %arg3[%c0_6, %c0_7], %33 {strides = array<i32>} : memref<512x128xf32, #tpu.memory_space<vmem>>, vector<128x128xf32>,
    %c128 = arith.constant 128 : index
    %c0_8 = arith.constant 0 : index
    %35 = vector.load %arg1[%c128, %c0_8] : memref<512x4xi32, #tpu.memory_space<vmem>>, vector<128x4xi32>
    %c0_i32_9 = arith.constant 0 : i32
    %c63_i32_10 = arith.constant 63 : i32
    %36 = vector.broadcast %c0_i32_9 : i32 to vector<128x4xi32>
    %37 = arith.maxsi %36, %35 : vector<128x4xi32>
    %38 = vector.broadcast %c63_i32_10 : i32 to vector<128x4xi32>
    %39 = arith.minsi %38, %37 : vector<128x4xi32>
    %40 = tpu.iota {dimensions = array<i32: 1>} : vector<128x256xi32>
    %41 = vector.extract_strided_slice %39 {offsets = [0, 0], sizes = [128, 1], strides = [1, 1]} : vector<128x4xi32> to vector<128x1xi32>
    %c0_i32_11 = arith.constant 0 : i32
    %42 = vector.broadcast %c0_i32_11 : i32 to vector<128x1xi32>
    %43 = arith.addi %41, %42 : vector<128x1xi32>
    %44 = vector.broadcast %43 : vector<128x1xi32> to vector<128x256xi32>
    %45 = arith.cmpi eq, %40, %44 : vector<128x256xi32>
    %46 = vector.extract_strided_slice %39 {offsets = [0, 1], sizes = [128, 1], strides = [1, 1]} : vector<128x4xi32> to vector<128x1xi32>
    %c64_i32_12 = arith.constant 64 : i32
    %47 = vector.broadcast %c64_i32_12 : i32 to vector<128x1xi32>
    %48 = arith.addi %46, %47 : vector<128x1xi32>
    %49 = vector.broadcast %48 : vector<128x1xi32> to vector<128x256xi32>
    %50 = arith.cmpi eq, %40, %49 : vector<128x256xi32>
    %51 = arith.ori %45, %50 : vector<128x256xi1>
    %52 = vector.extract_strided_slice %39 {offsets = [0, 2], sizes = [128, 1], strides = [1, 1]} : vector<128x4xi32> to vector<128x1xi32>
    %c128_i32_13 = arith.constant 128 : i32
    %53 = vector.broadcast %c128_i32_13 : i32 to vector<128x1xi32>
    %54 = arith.addi %52, %53 : vector<128x1xi32>
    %55 = vector.broadcast %54 : vector<128x1xi32> to vector<128x256xi32>
    %56 = arith.cmpi eq, %40, %55 : vector<128x256xi32>
    %57 = arith.ori %51, %56 : vector<128x256xi1>
    %58 = vector.extract_strided_slice %39 {offsets = [0, 3], sizes = [128, 1], strides = [1, 1]} : vector<128x4xi32> to vector<128x1xi32>
    %c192_i32_14 = arith.constant 192 : i32
    %59 = vector.broadcast %c192_i32_14 : i32 to vector<128x1xi32>
    %60 = arith.addi %58, %59 : vector<128x1xi32>
    %61 = vector.broadcast %60 : vector<128x1xi32> to vector<128x256xi32>
    %62 = arith.cmpi eq, %40, %61 : vector<128x256xi32>
    %63 = arith.ori %57, %62 : vector<128x256xi1>
    %cst_15 = arith.constant 1.000000e+00 : f32
    %cst_16 = arith.constant 0.000000e+00 : f32
    %64 = vector.broadcast %cst_15 : f32 to vector<128x256xf32>
    %65 = vector.broadcast %cst_16 : f32 to vector<128x256xf32>
    %66 = arith.select %63, %64, %65 : vector<128x256xi1>, vector<128x256xf32>
    %c0_17 = arith.constant 0 : index
    %c0_18 = arith.constant 0 : index
    %67 = vector.load %arg2[%c0_17, %c0_18] : memref<256x128xf32, #tpu.memory_space<vmem>>, vector<256x128xf32>
    %cst_19 = arith.constant dense<0.000000e+00> : vector<128x128xf32>
    %68 = tpu.matmul %66, %67, %cst_19 {dimension_numbers = #tpu.dot_dimension_numbers<[1], [0], [0], [1], [0, 0, 1, 1], [], []>} : vector<128x256xf32>, vector<256x128xf32>, vector<128x128xf32> -> vector<128x128xf32>
    %c128_20 = arith.constant 128 : index
    %c0_21 = arith.constant 0 : index
    %69 = vector.load %arg3[%c128_20, %c0_21] : memref<512x128xf32, #tpu.memory_space<vmem>>, vector<128x128xf32>
    tpu.vector_store %arg3[%c128_20, %c0_21], %68 {strides = array<i32>} : memref<512x128xf32, #tpu.memory_space<vmem>>, vector<128x128xf32>,
    %c256 = arith.constant 256 : index
    %c0_22 = arith.constant 0 : index
    %70 = vector.load %arg1[%c256, %c0_22] : memref<512x4xi32, #tpu.memory_space<vmem>>, vector<128x4xi32>
    %c0_i32_23 = arith.constant 0 : i32
    %c63_i32_24 = arith.constant 63 : i32
    %71 = vector.broadcast %c0_i32_23 : i32 to vector<128x4xi32>
    %72 = arith.maxsi %71, %70 : vector<128x4xi32>
    %73 = vector.broadcast %c63_i32_24 : i32 to vector<128x4xi32>
    %74 = arith.minsi %73, %72 : vector<128x4xi32>
    %75 = tpu.iota {dimensions = array<i32: 1>} : vector<128x256xi32>
    %76 = vector.extract_strided_slice %74 {offsets = [0, 0], sizes = [128, 1], strides = [1, 1]} : vector<128x4xi32> to vector<128x1xi32>
    %c0_i32_25 = arith.constant 0 : i32
    %77 = vector.broadcast %c0_i32_25 : i32 to vector<128x1xi32>
    %78 = arith.addi %76, %77 : vector<128x1xi32>
    %79 = vector.broadcast %78 : vector<128x1xi32> to vector<128x256xi32>
    %80 = arith.cmpi eq, %75, %79 : vector<128x256xi32>
    %81 = vector.extract_strided_slice %74 {offsets = [0, 1], sizes = [128, 1], strides = [1, 1]} : vector<128x4xi32> to vector<128x1xi32>
    %c64_i32_26 = arith.constant 64 : i32
    %82 = vector.broadcast %c64_i32_26 : i32 to vector<128x1xi32>
    %83 = arith.addi %81, %82 : vector<128x1xi32>
    %84 = vector.broadcast %83 : vector<128x1xi32> to vector<128x256xi32>
    %85 = arith.cmpi eq, %75, %84 : vector<128x256xi32>
    %86 = arith.ori %80, %85 : vector<128x256xi1>
    %87 = vector.extract_strided_slice %74 {offsets = [0, 2], sizes = [128, 1], strides = [1, 1]} : vector<128x4xi32> to vector<128x1xi32>
    %c128_i32_27 = arith.constant 128 : i32
    %88 = vector.broadcast %c128_i32_27 : i32 to vector<128x1xi32>
    %89 = arith.addi %87, %88 : vector<128x1xi32>
    %90 = vector.broadcast %89 : vector<128x1xi32> to vector<128x256xi32>
    %91 = arith.cmpi eq, %75, %90 : vector<128x256xi32>
    %92 = arith.ori %86, %91 : vector<128x256xi1>
    %93 = vector.extract_strided_slice %74 {offsets = [0, 3], sizes = [128, 1], strides = [1, 1]} : vector<128x4xi32> to vector<128x1xi32>
    %c192_i32_28 = arith.constant 192 : i32
    %94 = vector.broadcast %c192_i32_28 : i32 to vector<128x1xi32>
    %95 = arith.addi %93, %94 : vector<128x1xi32>
    %96 = vector.broadcast %95 : vector<128x1xi32> to vector<128x256xi32>
    %97 = arith.cmpi eq, %75, %96 : vector<128x256xi32>
    %98 = arith.ori %92, %97 : vector<128x256xi1>
    %cst_29 = arith.constant 1.000000e+00 : f32
    %cst_30 = arith.constant 0.000000e+00 : f32
    %99 = vector.broadcast %cst_29 : f32 to vector<128x256xf32>
    %100 = vector.broadcast %cst_30 : f32 to vector<128x256xf32>
    %101 = arith.select %98, %99, %100 : vector<128x256xi1>, vector<128x256xf32>
    %c0_31 = arith.constant 0 : index
    %c0_32 = arith.constant 0 : index
    %102 = vector.load %arg2[%c0_31, %c0_32] : memref<256x128xf32, #tpu.memory_space<vmem>>, vector<256x128xf32>
    %cst_33 = arith.constant dense<0.000000e+00> : vector<128x128xf32>
    %103 = tpu.matmul %101, %102, %cst_33 {dimension_numbers = #tpu.dot_dimension_numbers<[1], [0], [0], [1], [0, 0, 1, 1], [], []>} : vector<128x256xf32>, vector<256x128xf32>, vector<128x128xf32> -> vector<128x128xf32>
    %c256_34 = arith.constant 256 : index
    %c0_35 = arith.constant 0 : index
    %104 = vector.load %arg3[%c256_34, %c0_35] : memref<512x128xf32, #tpu.memory_space<vmem>>, vector<128x128xf32>
    tpu.vector_store %arg3[%c256_34, %c0_35], %103 {strides = array<i32>} : memref<512x128xf32, #tpu.memory_space<vmem>>, vector<128x128xf32>,
    %c384 = arith.constant 384 : index
    %c0_36 = arith.constant 0 : index
    %105 = vector.load %arg1[%c384, %c0_36] : memref<512x4xi32, #tpu.memory_space<vmem>>, vector<128x4xi32>
    %c0_i32_37 = arith.constant 0 : i32
    %c63_i32_38 = arith.constant 63 : i32
    %106 = vector.broadcast %c0_i32_37 : i32 to vector<128x4xi32>
    %107 = arith.maxsi %106, %105 : vector<128x4xi32>
    %108 = vector.broadcast %c63_i32_38 : i32 to vector<128x4xi32>
    %109 = arith.minsi %108, %107 : vector<128x4xi32>
    %110 = tpu.iota {dimensions = array<i32: 1>} : vector<128x256xi32>
    %111 = vector.extract_strided_slice %109 {offsets = [0, 0], sizes = [128, 1], strides = [1, 1]} : vector<128x4xi32> to vector<128x1xi32>
    %c0_i32_39 = arith.constant 0 : i32
    %112 = vector.broadcast %c0_i32_39 : i32 to vector<128x1xi32>
    %113 = arith.addi %111, %112 : vector<128x1xi32>
    %114 = vector.broadcast %113 : vector<128x1xi32> to vector<128x256xi32>
    %115 = arith.cmpi eq, %110, %114 : vector<128x256xi32>
    %116 = vector.extract_strided_slice %109 {offsets = [0, 1], sizes = [128, 1], strides = [1, 1]} : vector<128x4xi32> to vector<128x1xi32>
    %c64_i32_40 = arith.constant 64 : i32
    %117 = vector.broadcast %c64_i32_40 : i32 to vector<128x1xi32>
    %118 = arith.addi %116, %117 : vector<128x1xi32>
    %119 = vector.broadcast %118 : vector<128x1xi32> to vector<128x256xi32>
    %120 = arith.cmpi eq, %110, %119 : vector<128x256xi32>
    %121 = arith.ori %115, %120 : vector<128x256xi1>
    %122 = vector.extract_strided_slice %109 {offsets = [0, 2], sizes = [128, 1], strides = [1, 1]} : vector<128x4xi32> to vector<128x1xi32>
    %c128_i32_41 = arith.constant 128 : i32
    %123 = vector.broadcast %c128_i32_41 : i32 to vector<128x1xi32>
    %124 = arith.addi %122, %123 : vector<128x1xi32>
    %125 = vector.broadcast %124 : vector<128x1xi32> to vector<128x256xi32>
    %126 = arith.cmpi eq, %110, %125 : vector<128x256xi32>
    %127 = arith.ori %121, %126 : vector<128x256xi1>
    %128 = vector.extract_strided_slice %109 {offsets = [0, 3], sizes = [128, 1], strides = [1, 1]} : vector<128x4xi32> to vector<128x1xi32>
    %c192_i32_42 = arith.constant 192 : i32
    %129 = vector.broadcast %c192_i32_42 : i32 to vector<128x1xi32>
    %130 = arith.addi %128, %129 : vector<128x1xi32>
    %131 = vector.broadcast %130 : vector<128x1xi32> to vector<128x256xi32>
    %132 = arith.cmpi eq, %110, %131 : vector<128x256xi32>
    %133 = arith.ori %127, %132 : vector<128x256xi1>
    %cst_43 = arith.constant 1.000000e+00 : f32
    %cst_44 = arith.constant 0.000000e+00 : f32
    %134 = vector.broadcast %cst_43 : f32 to vector<128x256xf32>
    %135 = vector.broadcast %cst_44 : f32 to vector<128x256xf32>
    %136 = arith.select %133, %134, %135 : vector<128x256xi1>, vector<128x256xf32>
    %c0_45 = arith.constant 0 : index
    %c0_46 = arith.constant 0 : index
    %137 = vector.load %arg2[%c0_45, %c0_46] : memref<256x128xf32, #tpu.memory_space<vmem>>, vector<256x128xf32>
    %cst_47 = arith.constant dense<0.000000e+00> : vector<128x128xf32>
    %138 = tpu.matmul %136, %137, %cst_47 {dimension_numbers = #tpu.dot_dimension_numbers<[1], [0], [0], [1], [0, 0, 1, 1], [], []>} : vector<128x256xf32>, vector<256x128xf32>, vector<128x128xf32> -> vector<128x128xf32>
    %c384_48 = arith.constant 384 : index
    %c0_49 = arith.constant 0 : index
    %139 = vector.load %arg3[%c384_48, %c0_49] : memref<512x128xf32, #tpu.memory_space<vmem>>, vector<128x128xf32>
    tpu.vector_store %arg3[%c384_48, %c0_49], %138 {strides = array<i32>} : memref<512x128xf32, #tpu.memory_space<vmem>>, vector<128x128xf32>,
    return
  }
  func.func @transform_0(%arg0: i32) -> (i32, i32) {
    %c0_i32 = arith.constant 0 : i32
    %c0_i32_0 = arith.constant 0 : i32
    return %arg0, %c0_i32 : i32, i32
  }
  func.func @transform_1(%arg0: i32) -> (i32, i32) {
    %c0_i32 = arith.constant 0 : i32
    %c0_i32_0 = arith.constant 0 : i32
    %c0_i32_1 = arith.constant 0 : i32
    return %c0_i32, %c0_i32_0 : i32, i32
  }
  func.func @transform_2(%arg0: i32) -> (i32, i32) {
    %c0_i32 = arith.constant 0 : i32
    %c0_i32_0 = arith.constant 0 : i32
    return %arg0, %c0_i32 : i32, i32
  }
}

</mosaic_0001>

<llo_original>
// kernel: tpu_custom_call.1
$region0: #{tpu_custom_call.1}
  #allocation0 [shape = 'u32[]', space=smem, size = 0x4, offset = 0x4, fixed_abs, tag = 'smem constant byte address 0x4 - core index']
  #allocation1 [shape = 'u32[144,128]{1,0:T(1,128)}', space=vmem, size = 0x12000, scoped, tag = 'internal scratch']
  %s0 = inlined_call_operand.vmem [shape: s32[1024,4], index: 0, kind: input, shape index: {}]
  %s1 = inlined_call_operand.vmem [shape: f32[256,128], index: 1, kind: input, shape index: {}]
  %s2 = inlined_call_operand.hbm [shape: f32[1024,128], index: 2, kind: output, shape index: {}]
  %s3 = sld [smem:[#allocation0]]
  $region41: #{tpu_custom_call.1} parent=0
    _
  %s5 = ssub.s32 1, %s3
  %s6 = scalar_select 0, %s5, %s3
  $region1: #{tpu_custom_call.1} parent=0
    #allocation2 [shape = 'u8[524288]{0}', space=vmem, size = 0x80000, scoped, tag = 'output window, operand 0']
    #allocation3 [shape = 's32[2]{0}', space=sflag, size = 0x8, scoped, tag = 'scoped memory for tpu_custom_call.1']
    %7 = vsyncpa [#allocation3], 0
    %s8 = scalar_lea.sflag [#allocation3], 1
    %9 = vsyncpa %s8, 0
    loop: start=0, step=1, limit=4
    $region2: #{tpu_custom_call.1} parent=1 // loop_pre_header
      _
    $region3: #{tpu_custom_call.1} parent=1 // loop_header
      %s11 = sphi 0, %s15
      %p12 = scmp.ge.s32.totalorder %s11, 4
      %s21 = sphi 0, %s23
      %s24 = sphi 0, %s21
      %s25 = sphi 0, %s24
      %s41 = sphi 0, %s25
      %s45 = sphi 0, %s45
      %s47 = sphi 0, %s45
      %s48 = sphi 0, %s47
      %s62 = sphi 0, %s48
      %s68 = sphi 0, %s70
      %s71 = sphi 0, %s68
      %s72 = sphi 0, %s71
      %s88 = sphi 0, %s72
    $region4: #{tpu_custom_call.1} parent=1 // loop_header_branch
      %14 = sbr.rel (%p12) target = $region8
    $region5: #{tpu_custom_call.1} parent=1 // loop_body
      %s16 = ssub.s32 %s11, 1
      %s17 = ssub.s32 %s11, 2
      %s18 = sadd.s32 %s11, 1
      %s19 = ssub.s32 %s11, %s18
      %p20 = scmp.eq.s32.totalorder %s19, 0
      %s22 = sadd.s32 %s21, 1
      %s23 = scalar_select %p20, %s21, %s22
      %p26 = pneg %p20
      %p27 = scmp.eq.s32.totalorder %s11, 1
      %p28 = por %p26, %p27
      %p29 = scmp.ne.s32.totalorder %s21, %s24
      %p30 = scmp.eq.s32.totalorder %s11, 0
      %p31 = por %p29, %p30
      %p32 = scmp.ne.s32.totalorder %s21, %s24
      %p33 = scmp.eq.s32.totalorder %s16, 1
      %p34 = por %p32, %p33
      %p35 = scmp.ne.s32.totalorder %s24, %s25
      %p36 = scmp.eq.s32.totalorder %s16, 0
      %p37 = por %p35, %p36
      %p38 = scmp.ne.s32.totalorder %s24, %s25
      %p39 = scmp.eq.s32.totalorder %s17, 1
      %p40 = por %p38, %p39
      %p42 = scmp.ne.s32.totalorder %s25, %s41
      %p43 = scmp.eq.s32.totalorder %s17, 0
      %p44 = por %p42, %p43
      %s46 = sadd.s32 %s45, 1
      %p49 = scmp.eq.s32.totalorder %s11, 1
      %p50 = scmp.ne.s32.totalorder %s45, %s47
      %p51 = scmp.eq.s32.totalorder %s11, 0
      %p52 = por %p50, %p51
      %p53 = scmp.ne.s32.totalorder %s45, %s47
      %p54 = scmp.eq.s32.totalorder %s16, 1
      %p55 = por %p53, %p54
      %p56 = scmp.ne.s32.totalorder %s47, %s48
      %p57 = scmp.eq.s32.totalorder %s16, 0
      %p58 = por %p56, %p57
      %p59 = scmp.ne.s32.totalorder %s47, %s48
      %p60 = scmp.eq.s32.totalorder %s17, 1
      %p61 = por %p59, %p60
      %p63 = scmp.ne.s32.totalorder %s48, %s62
      %p64 = scmp.eq.s32.totalorder %s17, 0
      %p65 = por %p63, %p64
      %s66 = ssub.s32 %s11, %s18
      %p67 = scmp.eq.s32.totalorder %s66, 0
      %s69 = sadd.s32 %s68, 1
      %s70 = scalar_select %p67, %s68, %s69
      %p73 = pneg %p67
      %p74 = scmp.eq.s32.totalorder %s11, 1
      %p75 = por %p73, %p74
      %p76 = scmp.ne.s32.totalorder %s68, %s71
      %p77 = scmp.eq.s32.totalorder %s11, 0
      %p78 = por %p76, %p77
      %p79 = scmp.ne.s32.totalorder %s68, %s71
      %p80 = scmp.eq.s32.totalorder %s16, 1
      %p81 = por %p79, %p80
      %p82 = scmp.ne.s32.totalorder %s71, %s72
      %p83 = scmp.eq.s32.totalorder %s16, 0
      %p84 = por %p82, %p83
      %p85 = scmp.ne.s32.totalorder %s71, %s72
      %p86 = scmp.eq.s32.totalorder %s17, 1
      %p87 = por %p85, %p86
      %p89 = scmp.ne.s32.totalorder %s72, %s88
      %p90 = scmp.eq.s32.totalorder %s17, 0
      %p91 = por %p89, %p90
      %p92 = scmp.le.s32.totalorder 1, %s11
      %p93 = scmp.lt.s32.totalorder %s11, 3
      %p94 = pnand %p92, %p93
      %p95 = pneg %p94
      // Predicated region
      $region9: #{tpu_custom_call.1} parent=5 // pred_check
        _
      $region10: #{tpu_custom_call.1} parent=5 // pred_check_branch
        %97 = sbr.rel (%p94) target = $region12
      $region11: #{tpu_custom_call.1} parent=5 // pred_region
        %s98 = ssub.s32 %s11, 1
        // Predicated region
        $region13: #{tpu_custom_call.1} parent=11 // pred_check
          %p99 = pneg %p58
        $region14: #{tpu_custom_call.1} parent=11 // pred_check_branch
          %101 = sbr.rel (%p99) target = $region16
        $region15: #{tpu_custom_call.1} parent=11 // pred_region
          _
        $region16: #{tpu_custom_call.1} parent=11 // pred_fallthru
          _
      $region12: #{tpu_custom_call.1} parent=5 // pred_fallthru
        _
      %p102 = scmp.lt.s32.totalorder %s11, 2
      // Predicated region
      $region17: #{tpu_custom_call.1} parent=5 // pred_check
        %p103 = pneg %p102
      $region18: #{tpu_custom_call.1} parent=5 // pred_check_branch
        %105 = sbr.rel (%p103) target = $region20
      $region19: #{tpu_custom_call.1} parent=5 // pred_region
        // Predicated region
        $region21: #{tpu_custom_call.1} parent=19 // pred_check
          %p106 = pneg %p31
        $region22: #{tpu_custom_call.1} parent=19 // pred_check_branch
          %108 = sbr.rel (%p106) target = $region24
        $region23: #{tpu_custom_call.1} parent=19 // pred_region
          %s109 = smul.u32 64, %s11
          %p110 = scmp.lt.s32.totalorder %s109, 127
          %s111 = scalar_select %p110, %s109, 127
          %s112 = smul.addr %s111, 8
          %s113 = scalar_lea.vmem %s0, %s112
          %s114 = smul.u32 64, %s11
        $region24: #{tpu_custom_call.1} parent=19 // pred_fallthru
          _
      $region20: #{tpu_custom_call.1} parent=5 // pred_fallthru
        _
      %p115 = scmp.le.s32.totalorder 1, %s11
      %p116 = scmp.lt.s32.totalorder %s11, 3
      %p117 = pnand %p115, %p116
      %p118 = pneg %p117
      // Predicated region
      $region25: #{tpu_custom_call.1} parent=5 // pred_check
        _
      $region26: #{tpu_custom_call.1} parent=5 // pred_check_branch
        %120 = sbr.rel (%p117) target = $region28
      $region27: #{tpu_custom_call.1} parent=5 // pred_region
        %s121 = ssub.s32 %s11, 1
        %s122 = smul.u32 64, %s16
        %p123 = scmp.lt.s32.totalorder %s122, 127
        %s124 = scalar_select %p123, %s122, 127
        %s125 = smul.addr %s124, 8
        %s126 = scalar_lea.vmem %s0, %s125
        %p127 = pneg %p37
        %p128 = pneg %p34
        %p129 = pneg %p58
        %p130 = pneg %p55
        %p131 = pneg %p84
        %p132 = pneg %p81
        %s133 = sand.u32 %s71, 1
        %s134 = scalar_lea.sflag [#allocation3], %s133
        %s135 = sand.u32 %s71, 1
        %s136 = smul.addr %s135, 512
        %s137 = scalar_lea.vmem [#allocation2], %s136
        %s138 = smul.u32 64, %s16
        %p139 = scmp.lt.s32.totalorder %s138, 127
        %s140 = scalar_select %p139, %s138, 127
        %s141 = smul.addr %s140, 8
        %s142 = scalar_lea.vmem %s0, %s141
        %s143 = smul.u32 64, %s16
        %s144 = smul.u32 64, %s16
        %v145 = vld [vmem:[%s142] sm:$0xff]
        %v146 = vld [vmem:[%s142 + $0x8] sm:$0xff]
        %v147 = vld [vmem:[%s142 + $0x10] sm:$0xff]
        %v148 = vld [vmem:[%s142 + $0x18] sm:$0xff]
        %v149 = vld [vmem:[%s142 + $0x20] sm:$0xff]
        %v150 = vld [vmem:[%s142 + $0x28] sm:$0xff]
        %v151 = vld [vmem:[%s142 + $0x30] sm:$0xff]
        %v152 = vld [vmem:[%s142 + $0x38] sm:$0xff]
        %v153 = vld [vmem:[%s142 + $0x40] sm:$0xff]
        %v154 = vld [vmem:[%s142 + $0x48] sm:$0xff]
        %v155 = vld [vmem:[%s142 + $0x50] sm:$0xff]
        %v156 = vld [vmem:[%s142 + $0x58] sm:$0xff]
        %v157 = vld [vmem:[%s142 + $0x60] sm:$0xff]
        %v158 = vld [vmem:[%s142 + $0x68] sm:$0xff]
        %v159 = vld [vmem:[%s142 + $0x70] sm:$0xff]
        %v160 = vld [vmem:[%s142 + $0x78] sm:$0xff]
        %vm161 = vcmp.gt.s32.totalorder %v145, 0
        %v162 = vsel %vm161, %v145, 0
        %vm163 = vcmp.gt.s32.totalorder %v146, 0
        %v164 = vsel %vm163, %v146, 0
        %vm165 = vcmp.gt.s32.totalorder %v147, 0
        %v166 = vsel %vm165, %v147, 0
        %vm167 = vcmp.gt.s32.totalorder %v148, 0
        %v168 = vsel %vm167, %v148, 0
        %vm169 = vcmp.gt.s32.totalorder %v149, 0
        %v170 = vsel %vm169, %v149, 0
        %vm171 = vcmp.gt.s32.totalorder %v150, 0
        %v172 = vsel %vm171, %v150, 0
        %vm173 = vcmp.gt.s32.totalorder %v151, 0
        %v174 = vsel %vm173, %v151, 0
        %vm175 = vcmp.gt.s32.totalorder %v152, 0
        %v176 = vsel %vm175, %v152, 0
        %vm177 = vcmp.gt.s32.totalorder %v153, 0
        %v178 = vsel %vm177, %v153, 0
        %vm179 = vcmp.gt.s32.totalorder %v154, 0
        %v180 = vsel %vm179, %v154, 0
        %vm181 = vcmp.gt.s32.totalorder %v155, 0
        %v182 = vsel %vm181, %v155, 0
        %vm183 = vcmp.gt.s32.totalorder %v156, 0
        %v184 = vsel %vm183, %v156, 0
        %vm185 = vcmp.gt.s32.totalorder %v157, 0
        %v186 = vsel %vm185, %v157, 0
        %vm187 = vcmp.gt.s32.totalorder %v158, 0
        %v188 = vsel %vm187, %v158, 0
        %vm189 = vcmp.gt.s32.totalorder %v159, 0
        %v190 = vsel %vm189, %v159, 0
        %vm191 = vcmp.gt.s32.totalorder %v160, 0
        %v192 = vsel %vm191, %v160, 0
        %vm193 = vcmp.lt.s32.totalorder %v162, 63
        %v194 = vsel %vm193, %v162, 63
        %vm195 = vcmp.lt.s32.totalorder %v164, 63
        %v196 = vsel %vm195, %v164, 63
        %vm197 = vcmp.lt.s32.totalorder %v166, 63
        %v198 = vsel %vm197, %v166, 63
        %vm199 = vcmp.lt.s32.totalorder %v168, 63
        %v200 = vsel %vm199, %v168, 63
        %vm201 = vcmp.lt.s32.totalorder %v170, 63
        %v202 = vsel %vm201, %v170, 63
        %vm203 = vcmp.lt.s32.totalorder %v172, 63
        %v204 = vsel %vm203, %v172, 63
        %vm205 = vcmp.lt.s32.totalorder %v174, 63
        %v206 = vsel %vm205, %v174, 63
        %vm207 = vcmp.lt.s32.totalorder %v176, 63
        %v208 = vsel %vm207, %v176, 63
        %vm209 = vcmp.lt.s32.totalorder %v178, 63
        %v210 = vsel %vm209, %v178, 63
        %vm211 = vcmp.lt.s32.totalorder %v180, 63
        %v212 = vsel %vm211, %v180, 63
        %vm213 = vcmp.lt.s32.totalorder %v182, 63
        %v214 = vsel %vm213, %v182, 63
        %vm215 = vcmp.lt.s32.totalorder %v184, 63
        %v216 = vsel %vm215, %v184, 63
        %vm217 = vcmp.lt.s32.totalorder %v186, 63
        %v218 = vsel %vm217, %v186, 63
        %vm219 = vcmp.lt.s32.totalorder %v188, 63
        %v220 = vsel %vm219, %v188, 63
        %vm221 = vcmp.lt.s32.totalorder %v190, 63
        %v222 = vsel %vm221, %v190, 63
        %vm223 = vcmp.lt.s32.totalorder %v192, 63
        %v224 = vsel %vm223, %v192, 63
        %v225 = vlaneseq
        %v226 = vand.u32 %v225, 127
        %v227 = vadd.s32 %v226, 128
        %228 = vset.pattern.permute.xlu0 0
        %229 = vperm.xlu0 %228, %v194
        %v230 = vpop.permute.xlu0 %229
        %231 = vset.pattern.permute.xlu0 0
        %232 = vperm.xlu0 %231, %v196
        %v233 = vpop.permute.xlu0 %232
        %234 = vset.pattern.permute.xlu0 0
        %235 = vperm.xlu0 %234, %v198
        %v236 = vpop.permute.xlu0 %235
        %237 = vset.pattern.permute.xlu0 0
        %238 = vperm.xlu0 %237, %v200
        %v239 = vpop.permute.xlu0 %238
        %240 = vset.pattern.permute.xlu0 0
        %241 = vperm.xlu0 %240, %v202
        %v242 = vpop.permute.xlu0 %241
        %243 = vset.pattern.permute.xlu0 0
        %244 = vperm.xlu0 %243, %v204
        %v245 = vpop.permute.xlu0 %244
        %246 = vset.pattern.permute.xlu0 0
        %247 = vperm.xlu0 %246, %v206
        %v248 = vpop.permute.xlu0 %247
        %249 = vset.pattern.permute.xlu0 0
        %250 = vperm.xlu0 %249, %v208
        %v251 = vpop.permute.xlu0 %250
        %252 = vset.pattern.permute.xlu0 0
        %253 = vperm.xlu0 %252, %v210
        %v254 = vpop.permute.xlu0 %253
        %255 = vset.pattern.permute.xlu0 0
        %256 = vperm.xlu0 %255, %v212
        %v257 = vpop.permute.xlu0 %256
        %258 = vset.pattern.permute.xlu0 0
        %259 = vperm.xlu0 %258, %v214
        %v260 = vpop.permute.xlu0 %259
        %261 = vset.pattern.permute.xlu0 0
        %262 = vperm.xlu0 %261, %v216
        %v263 = vpop.permute.xlu0 %262
        %264 = vset.pattern.permute.xlu0 0
        %265 = vperm.xlu0 %264, %v218
        %v266 = vpop.permute.xlu0 %265
        %267 = vset.pattern.permute.xlu0 0
        %268 = vperm.xlu0 %267, %v220
        %v269 = vpop.permute.xlu0 %268
        %270 = vset.pattern.permute.xlu0 0
        %271 = vperm.xlu0 %270, %v222
        %v272 = vpop.permute.xlu0 %271
        %273 = vset.pattern.permute.xlu0 0
        %274 = vperm.xlu0 %273, %v224
        %v275 = vpop.permute.xlu0 %274
        %vm276 = vcmp.eq.s32.totalorder %v226, %v230
        %vm277 = vcmp.eq.s32.totalorder %v227, %v230
        %vm278 = vcmp.eq.s32.totalorder %v226, %v233
        %vm279 = vcmp.eq.s32.totalorder %v227, %v233
        %vm280 = vcmp.eq.s32.totalorder %v226, %v236
        %vm281 = vcmp.eq.s32.totalorder %v227, %v236
        %vm282 = vcmp.eq.s32.totalorder %v226, %v239
        %vm283 = vcmp.eq.s32.totalorder %v227, %v239
        %vm284 = vcmp.eq.s32.totalorder %v226, %v242
        %vm285 = vcmp.eq.s32.totalorder %v227, %v242
        %vm286 = vcmp.eq.s32.totalorder %v226, %v245
        %vm287 = vcmp.eq.s32.totalorder %v227, %v245
        %vm288 = vcmp.eq.s32.totalorder %v226, %v248
        %vm289 = vcmp.eq.s32.totalorder %v227, %v248
        %vm290 = vcmp.eq.s32.totalorder %v226, %v251
        %vm291 = vcmp.eq.s32.totalorder %v227, %v251
        %vm292 = vcmp.eq.s32.totalorder %v226, %v254
        %vm293 = vcmp.eq.s32.totalorder %v227, %v254
        %vm294 = vcmp.eq.s32.totalorder %v226, %v257
        %vm295 = vcmp.eq.s32.totalorder %v227, %v257
        %vm296 = vcmp.eq.s32.totalorder %v226, %v260
        %vm297 = vcmp.eq.s32.totalorder %v227, %v260
        %vm298 = vcmp.eq.s32.totalorder %v226, %v263
        %vm299 = vcmp.eq.s32.totalorder %v227, %v263
        %vm300 = vcmp.eq.s32.totalorder %v226, %v266
        %vm301 = vcmp.eq.s32.totalorder %v227, %v266
        %vm302 = vcmp.eq.s32.totalorder %v226, %v269
        %vm303 = vcmp.eq.s32.totalorder %v227, %v269
        %vm304 = vcmp.eq.s32.totalorder %v226, %v272
        %vm305 = vcmp.eq.s32.totalorder %v227, %v272
        %vm306 = vcmp.eq.s32.totalorder %v226, %v275
        %vm307 = vcmp.eq.s32.totalorder %v227, %v275
        %v308 = vadd.s32 %v194, 64
        %v309 = vadd.s32 %v196, 64
        %v310 = vadd.s32 %v198, 64
        %v311 = vadd.s32 %v200, 64
        %v312 = vadd.s32 %v202, 64
        %v313 = vadd.s32 %v204, 64
        %v314 = vadd.s32 %v206, 64
        %v315 = vadd.s32 %v208, 64
        %v316 = vadd.s32 %v210, 64
        %v317 = vadd.s32 %v212, 64
        %v318 = vadd.s32 %v214, 64
        %v319 = vadd.s32 %v216, 64
        %v320 = vadd.s32 %v218, 64
        %v321 = vadd.s32 %v220, 64
        %v322 = vadd.s32 %v222, 64
        %v323 = vadd.s32 %v224, 64
        %324 = vset.pattern.permute.xlu0 1
        %325 = vperm.xlu0 %324, %v308
        %v326 = vpop.permute.xlu0 %325
        %327 = vset.pattern.permute.xlu0 1
        %328 = vperm.xlu0 %327, %v309
        %v329 = vpop.permute.xlu0 %328
        %330 = vset.pattern.permute.xlu0 1
        %331 = vperm.xlu0 %330, %v310
        %v332 = vpop.permute.xlu0 %331
        %333 = vset.pattern.permute.xlu0 1
        %334 = vperm.xlu0 %333, %v311
        %v335 = vpop.permute.xlu0 %334
        %336 = vset.pattern.permute.xlu0 1
        %337 = vperm.xlu0 %336, %v312
        %v338 = vpop.permute.xlu0 %337
        %339 = vset.pattern.permute.xlu0 1
        %340 = vperm.xlu0 %339, %v313
        %v341 = vpop.permute.xlu0 %340
        %342 = vset.pattern.permute.xlu0 1
        %343 = vperm.xlu0 %342, %v314
        %v344 = vpop.permute.xlu0 %343
        %345 = vset.pattern.permute.xlu0 1
        %346 = vperm.xlu0 %345, %v315
        %v347 = vpop.permute.xlu0 %346
        %348 = vset.pattern.permute.xlu0 1
        %349 = vperm.xlu0 %348, %v316
        %v350 = vpop.permute.xlu0 %349
        %351 = vset.pattern.permute.xlu0 1
        %352 = vperm.xlu0 %351, %v317
        %v353 = vpop.permute.xlu0 %352
        %354 = vset.pattern.permute.xlu0 1
        %355 = vperm.xlu0 %354, %v318
        %v356 = vpop.permute.xlu0 %355
        %357 = vset.pattern.permute.xlu0 1
        %358 = vperm.xlu0 %357, %v319
        %v359 = vpop.permute.xlu0 %358
        %360 = vset.pattern.permute.xlu0 1
        %361 = vperm.xlu0 %360, %v320
        %v362 = vpop.permute.xlu0 %361
        %363 = vset.pattern.permute.xlu0 1
        %364 = vperm.xlu0 %363, %v321
        %v365 = vpop.permute.xlu0 %364
        %366 = vset.pattern.permute.xlu0 1
        %367 = vperm.xlu0 %366, %v322
        %v368 = vpop.permute.xlu0 %367
        %369 = vset.pattern.permute.xlu0 1
        %370 = vperm.xlu0 %369, %v323
        %v371 = vpop.permute.xlu0 %370
        %vm372 = vcmp.eq.s32.totalorder %v226, %v326
        %vm373 = vcmp.eq.s32.totalorder %v227, %v326
        %vm374 = vcmp.eq.s32.totalorder %v226, %v329
        %vm375 = vcmp.eq.s32.totalorder %v227, %v329
        %vm376 = vcmp.eq.s32.totalorder %v226, %v332
        %vm377 = vcmp.eq.s32.totalorder %v227, %v332
        %vm378 = vcmp.eq.s32.totalorder %v226, %v335
        %vm379 = vcmp.eq.s32.totalorder %v227, %v335
        %vm380 = vcmp.eq.s32.totalorder %v226, %v338
        %vm381 = vcmp.eq.s32.totalorder %v227, %v338
        %vm382 = vcmp.eq.s32.totalorder %v226, %v341
        %vm383 = vcmp.eq.s32.totalorder %v227, %v341
        %vm384 = vcmp.eq.s32.totalorder %v226, %v344
        %vm385 = vcmp.eq.s32.totalorder %v227, %v344
        %vm386 = vcmp.eq.s32.totalorder %v226, %v347
        %vm387 = vcmp.eq.s32.totalorder %v227, %v347
        %vm388 = vcmp.eq.s32.totalorder %v226, %v350
        %vm389 = vcmp.eq.s32.totalorder %v227, %v350
        %vm390 = vcmp.eq.s32.totalorder %v226, %v353
        %vm391 = vcmp.eq.s32.totalorder %v227, %v353
        %vm392 = vcmp.eq.s32.totalorder %v226, %v356
        %vm393 = vcmp.eq.s32.totalorder %v227, %v356
        %vm394 = vcmp.eq.s32.totalorder %v226, %v359
        %vm395 = vcmp.eq.s32.totalorder %v227, %v359
        %vm396 = vcmp.eq.s32.totalorder %v226, %v362
        %vm397 = vcmp.eq.s32.totalorder %v227, %v362
        %vm398 = vcmp.eq.s32.totalorder %v226, %v365
        %vm399 = vcmp.eq.s32.totalorder %v227, %v365
        %vm400 = vcmp.eq.s32.totalorder %v226, %v368
        %vm401 = vcmp.eq.s32.totalorder %v227, %v368
        %vm402 = vcmp.eq.s32.totalorder %v226, %v371
        %vm403 = vcmp.eq.s32.totalorder %v227, %v371
        %vm404 = vmor %vm276, %vm372
        %vm405 = vmor %vm277, %vm373
        %vm406 = vmor %vm278, %vm374
        %vm407 = vmor %vm279, %vm375
        %vm408 = vmor %vm280, %vm376
        %vm409 = vmor %vm281, %vm377
        %vm410 = vmor %vm282, %vm378
        %vm411 = vmor %vm283, %vm379
        %vm412 = vmor %vm284, %vm380
        %vm413 = vmor %vm285, %vm381
        %vm414 = vmor %vm286, %vm382
        %vm415 = vmor %vm287, %vm383
        %vm416 = vmor %vm288, %vm384
        %vm417 = vmor %vm289, %vm385
        %vm418 = vmor %vm290, %vm386
        %vm419 = vmor %vm291, %vm387
        %vm420 = vmor %vm292, %vm388
        %vm421 = vmor %vm293, %vm389
        %vm422 = vmor %vm294, %vm390
        %vm423 = vmor %vm295, %vm391
        %vm424 = vmor %vm296, %vm392
        %vm425 = vmor %vm297, %vm393
        %vm426 = vmor %vm298, %vm394
        %vm427 = vmor %vm299, %vm395
        %vm428 = vmor %vm300, %vm396
        %vm429 = vmor %vm301, %vm397
        %vm430 = vmor %vm302, %vm398
        %vm431 = vmor %vm303, %vm399
        %vm432 = vmor %vm304, %vm400
        %vm433 = vmor %vm305, %vm401
        %vm434 = vmor %vm306, %vm402
        %vm435 = vmor %vm307, %vm403
        %v436 = vadd.s32 %v194, 128
        %v437 = vadd.s32 %v196, 128
        %v438 = vadd.s32 %v198, 128
        %v439 = vadd.s32 %v200, 128
        %v440 = vadd.s32 %v202, 128
        %v441 = vadd.s32 %v204, 128
        %v442 = vadd.s32 %v206, 128
        %v443 = vadd.s32 %v208, 128
        %v444 = vadd.s32 %v210, 128
        %v445 = vadd.s32 %v212, 128
        %v446 = vadd.s32 %v214, 128
        %v447 = vadd.s32 %v216, 128
        %v448 = vadd.s32 %v218, 128
        %v449 = vadd.s32 %v220, 128
        %v450 = vadd.s32 %v222, 128
        %v451 = vadd.s32 %v224, 128
        %452 = vset.pattern.permute.xlu0 2
        %453 = vperm.xlu0 %452, %v436
        %v454 = vpop.permute.xlu0 %453
        %455 = vset.pattern.permute.xlu0 2
        %456 = vperm.xlu0 %455, %v437
        %v457 = vpop.permute.xlu0 %456
        %458 = vset.pattern.permute.xlu0 2
        %459 = vperm.xlu0 %458, %v438
        %v460 = vpop.permute.xlu0 %459
        %461 = vset.pattern.permute.xlu0 2
        %462 = vperm.xlu0 %461, %v439
        %v463 = vpop.permute.xlu0 %462
        %464 = vset.pattern.permute.xlu0 2
        %465 = vperm.xlu0 %464, %v440
        %v466 = vpop.permute.xlu0 %465
        %467 = vset.pattern.permute.xlu0 2
        %468 = vperm.xlu0 %467, %v441
        %v469 = vpop.permute.xlu0 %468
        %470 = vset.pattern.permute.xlu0 2
        %471 = vperm.xlu0 %470, %v442
        %v472 = vpop.permute.xlu0 %471
        %473 = vset.pattern.permute.xlu0 2
        %474 = vperm.xlu0 %473, %v443
        %v475 = vpop.permute.xlu0 %474
        %476 = vset.pattern.permute.xlu0 2
        %477 = vperm.xlu0 %476, %v444
        %v478 = vpop.permute.xlu0 %477
        %479 = vset.pattern.permute.xlu0 2
        %480 = vperm.xlu0 %479, %v445
        %v481 = vpop.permute.xlu0 %480
        %482 = vset.pattern.permute.xlu0 2
        %483 = vperm.xlu0 %482, %v446
        %v484 = vpop.permute.xlu0 %483
        %485 = vset.pattern.permute.xlu0 2
        %486 = vperm.xlu0 %485, %v447
        %v487 = vpop.permute.xlu0 %486
        %488 = vset.pattern.permute.xlu0 2
        %489 = vperm.xlu0 %488, %v448
        %v490 = vpop.permute.xlu0 %489
        %491 = vset.pattern.permute.xlu0 2
        %492 = vperm.xlu0 %491, %v449
        %v493 = vpop.permute.xlu0 %492
        %494 = vset.pattern.permute.xlu0 2
        %495 = vperm.xlu0 %494, %v450
        %v496 = vpop.permute.xlu0 %495
        %497 = vset.pattern.permute.xlu0 2
        %498 = vperm.xlu0 %497, %v451
        %v499 = vpop.permute.xlu0 %498
        %vm500 = vcmp.eq.s32.totalorder %v226, %v454
        %vm501 = vcmp.eq.s32.totalorder %v227, %v454
        %vm502 = vcmp.eq.s32.totalorder %v226, %v457
        %vm503 = vcmp.eq.s32.totalorder %v227, %v457
        %vm504 = vcmp.eq.s32.totalorder %v226, %v460
        %vm505 = vcmp.eq.s32.totalorder %v227, %v460
        %vm506 = vcmp.eq.s32.totalorder %v226, %v463
        %vm507 = vcmp.eq.s32.totalorder %v227, %v463
        %vm508 = vcmp.eq.s32.totalorder %v226, %v466
        %vm509 = vcmp.eq.s32.totalorder %v227, %v466
        %vm510 = vcmp.eq.s32.totalorder %v226, %v469
        %vm511 = vcmp.eq.s32.totalorder %v227, %v469
        %vm512 = vcmp.eq.s32.totalorder %v226, %v472
        %vm513 = vcmp.eq.s32.totalorder %v227, %v472
        %vm514 = vcmp.eq.s32.totalorder %v226, %v475
        %vm515 = vcmp.eq.s32.totalorder %v227, %v475
        %vm516 = vcmp.eq.s32.totalorder %v226, %v478
        %vm517 = vcmp.eq.s32.totalorder %v227, %v478
        %vm518 = vcmp.eq.s32.totalorder %v226, %v481
        %vm519 = vcmp.eq.s32.totalorder %v227, %v481
        %vm520 = vcmp.eq.s32.totalorder %v226, %v484
        %vm521 = vcmp.eq.s32.totalorder %v227, %v484
        %vm522 = vcmp.eq.s32.totalorder %v226, %v487
        %vm523 = vcmp.eq.s32.totalorder %v227, %v487
        %vm524 = vcmp.eq.s32.totalorder %v226, %v490
        %vm525 = vcmp.eq.s32.totalorder %v227, %v490
        %vm526 = vcmp.eq.s32.totalorder %v226, %v493
        %vm527 = vcmp.eq.s32.totalorder %v227, %v493
        %vm528 = vcmp.eq.s32.totalorder %v226, %v496
        %vm529 = vcmp.eq.s32.totalorder %v227, %v496
        %vm530 = vcmp.eq.s32.totalorder %v226, %v499
        %vm531 = vcmp.eq.s32.totalorder %v227, %v499
        %vm532 = vmor %vm404, %vm500
        %vm533 = vmor %vm405, %vm501
        %vm534 = vmor %vm406, %vm502
        %vm535 = vmor %vm407, %vm503
        %vm536 = vmor %vm408, %vm504
        %vm537 = vmor %vm409, %vm505
        %vm538 = vmor %vm410, %vm506
        %vm539 = vmor %vm411, %vm507
        %vm540 = vmor %vm412, %vm508
        %vm541 = vmor %vm413, %vm509
        %vm542 = vmor %vm414, %vm510
        %vm543 = vmor %vm415, %vm511
        %vm544 = vmor %vm416, %vm512
        %vm545 = vmor %vm417, %vm513
        %vm546 = vmor %vm418, %vm514
        %vm547 = vmor %vm419, %vm515
        %vm548 = vmor %vm420, %vm516
        %vm549 = vmor %vm421, %vm517
        %vm550 = vmor %vm422, %vm518
        %vm551 = vmor %vm423, %vm519
        %vm552 = vmor %vm424, %vm520
        %vm553 = vmor %vm425, %vm521
        %vm554 = vmor %vm426, %vm522
        %vm555 = vmor %vm427, %vm523
        %vm556 = vmor %vm428, %vm524
        %vm557 = vmor %vm429, %vm525
        %vm558 = vmor %vm430, %vm526
        %vm559 = vmor %vm431, %vm527
        %vm560 = vmor %vm432, %vm528
        %vm561 = vmor %vm433, %vm529
        %vm562 = vmor %vm434, %vm530
        %vm563 = vmor %vm435, %vm531
        %v564 = vadd.s32 %v194, 192
        %v565 = vadd.s32 %v196, 192
        %v566 = vadd.s32 %v198, 192
        %v567 = vadd.s32 %v200, 192
        %v568 = vadd.s32 %v202, 192
        %v569 = vadd.s32 %v204, 192
        %v570 = vadd.s32 %v206, 192
        %v571 = vadd.s32 %v208, 192
        %v572 = vadd.s32 %v210, 192
        %v573 = vadd.s32 %v212, 192
        %v574 = vadd.s32 %v214, 192
        %v575 = vadd.s32 %v216, 192
        %v576 = vadd.s32 %v218, 192
        %v577 = vadd.s32 %v220, 192
        %v578 = vadd.s32 %v222, 192
        %v579 = vadd.s32 %v224, 192
        %580 = vset.pattern.permute.xlu0 3
        %581 = vperm.xlu0 %580, %v564
        %v582 = vpop.permute.xlu0 %581
        %583 = vset.pattern.permute.xlu0 3
        %584 = vperm.xlu0 %583, %v565
        %v585 = vpop.permute.xlu0 %584
        %586 = vset.pattern.permute.xlu0 3
        %587 = vperm.xlu0 %586, %v566
        %v588 = vpop.permute.xlu0 %587
        %589 = vset.pattern.permute.xlu0 3
        %590 = vperm.xlu0 %589, %v567
        %v591 = vpop.permute.xlu0 %590
        %592 = vset.pattern.permute.xlu0 3
        %593 = vperm.xlu0 %592, %v568
        %v594 = vpop.permute.xlu0 %593
        %595 = vset.pattern.permute.xlu0 3
        %596 = vperm.xlu0 %595, %v569
        %v597 = vpop.permute.xlu0 %596
        %598 = vset.pattern.permute.xlu0 3
        %599 = vperm.xlu0 %598, %v570
        %v600 = vpop.permute.xlu0 %599
        %601 = vset.pattern.permute.xlu0 3
        %602 = vperm.xlu0 %601, %v571
        %v603 = vpop.permute.xlu0 %602
        %604 = vset.pattern.permute.xlu0 3
        %605 = vperm.xlu0 %604, %v572
        %v606 = vpop.permute.xlu0 %605
        %607 = vset.pattern.permute.xlu0 3
        %608 = vperm.xlu0 %607, %v573
        %v609 = vpop.permute.xlu0 %608
        %610 = vset.pattern.permute.xlu0 3
        %611 = vperm.xlu0 %610, %v574
        %v612 = vpop.permute.xlu0 %611
        %613 = vset.pattern.permute.xlu0 3
        %614 = vperm.xlu0 %613, %v575
        %v615 = vpop.permute.xlu0 %614
        %616 = vset.pattern.permute.xlu0 3
        %617 = vperm.xlu0 %616, %v576
        %v618 = vpop.permute.xlu0 %617
        %619 = vset.pattern.permute.xlu0 3
        %620 = vperm.xlu0 %619, %v577
        %v621 = vpop.permute.xlu0 %620
        %622 = vset.pattern.permute.xlu0 3
        %623 = vperm.xlu0 %622, %v578
        %v624 = vpop.permute.xlu0 %623
        %625 = vset.pattern.permute.xlu0 3
        %626 = vperm.xlu0 %625, %v579
        %v627 = vpop.permute.xlu0 %626
        %vm628 = vcmp.eq.s32.totalorder %v226, %v582
        %vm629 = vcmp.eq.s32.totalorder %v227, %v582
        %vm630 = vcmp.eq.s32.totalorder %v226, %v585
        %vm631 = vcmp.eq.s32.totalorder %v227, %v585
        %vm632 = vcmp.eq.s32.totalorder %v226, %v588
        %vm633 = vcmp.eq.s32.totalorder %v227, %v588
        %vm634 = vcmp.eq.s32.totalorder %v226, %v591
        %vm635 = vcmp.eq.s32.totalorder %v227, %v591
        %vm636 = vcmp.eq.s32.totalorder %v226, %v594
        %vm637 = vcmp.eq.s32.totalorder %v227, %v594
        %vm638 = vcmp.eq.s32.totalorder %v226, %v597
        %vm639 = vcmp.eq.s32.totalorder %v227, %v597
        %vm640 = vcmp.eq.s32.totalorder %v226, %v600
        %vm641 = vcmp.eq.s32.totalorder %v227, %v600
        %vm642 = vcmp.eq.s32.totalorder %v226, %v603
        %vm643 = vcmp.eq.s32.totalorder %v227, %v603
        %vm644 = vcmp.eq.s32.totalorder %v226, %v606
        %vm645 = vcmp.eq.s32.totalorder %v227, %v606
        %vm646 = vcmp.eq.s32.totalorder %v226, %v609
        %vm647 = vcmp.eq.s32.totalorder %v227, %v609
        %vm648 = vcmp.eq.s32.totalorder %v226, %v612
        %vm649 = vcmp.eq.s32.totalorder %v227, %v612
        %vm650 = vcmp.eq.s32.totalorder %v226, %v615
        %vm651 = vcmp.eq.s32.totalorder %v227, %v615
        %vm652 = vcmp.eq.s32.totalorder %v226, %v618
        %vm653 = vcmp.eq.s32.totalorder %v227, %v618
        %vm654 = vcmp.eq.s32.totalorder %v226, %v621
        %vm655 = vcmp.eq.s32.totalorder %v227, %v621
        %vm656 = vcmp.eq.s32.totalorder %v226, %v624
        %vm657 = vcmp.eq.s32.totalorder %v227, %v624
        %vm658 = vcmp.eq.s32.totalorder %v226, %v627
        %vm659 = vcmp.eq.s32.totalorder %v227, %v627
        %vm660 = vmor %vm532, %vm628
        %vm661 = vmor %vm533, %vm629
        %vm662 = vmor %vm534, %vm630
        %vm663 = vmor %vm535, %vm631
        %vm664 = vmor %vm536, %vm632
        %vm665 = vmor %vm537, %vm633
        %vm666 = vmor %vm538, %vm634
        %vm667 = vmor %vm539, %vm635
        %vm668 = vmor %vm540, %vm636
        %vm669 = vmor %vm541, %vm637
        %vm670 = vmor %vm542, %vm638
        %vm671 = vmor %vm543, %vm639
        %vm672 = vmor %vm544, %vm640
        %vm673 = vmor %vm545, %vm641
        %vm674 = vmor %vm546, %vm642
        %vm675 = vmor %vm547, %vm643
        %vm676 = vmor %vm548, %vm644
        %vm677 = vmor %vm549, %vm645
        %vm678 = vmor %vm550, %vm646
        %vm679 = vmor %vm551, %vm647
        %vm680 = vmor %vm552, %vm648
        %vm681 = vmor %vm553, %vm649
        %vm682 = vmor %vm554, %vm650
        %vm683 = vmor %vm555, %vm651
        %vm684 = vmor %vm556, %vm652
        %vm685 = vmor %vm557, %vm653
        %vm686 = vmor %vm558, %vm654
        %vm687 = vmor %vm559, %vm655
        %vm688 = vmor %vm560, %vm656
        %vm689 = vmor %vm561, %vm657
        %vm690 = vmor %vm562, %vm658
        %vm691 = vmor %vm563, %vm659
        %v692 = vsel %vm660, 1.0, 0.0
        %v693 = vsel %vm661, 1.0, 0.0
        %v694 = vsel %vm662, 1.0, 0.0
        %v695 = vsel %vm663, 1.0, 0.0
        %v696 = vsel %vm664, 1.0, 0.0
        %v697 = vsel %vm665, 1.0, 0.0
        %v698 = vsel %vm666, 1.0, 0.0
        %v699 = vsel %vm667, 1.0, 0.0
        %v700 = vsel %vm668, 1.0, 0.0
        %v701 = vsel %vm669, 1.0, 0.0
        %v702 = vsel %vm670, 1.0, 0.0
        %v703 = vsel %vm671, 1.0, 0.0
        %v704 = vsel %vm672, 1.0, 0.0
        %v705 = vsel %vm673, 1.0, 0.0
        %v706 = vsel %vm674, 1.0, 0.0
        %v707 = vsel %vm675, 1.0, 0.0
        %v708 = vsel %vm676, 1.0, 0.0
        %v709 = vsel %vm677, 1.0, 0.0
        %v710 = vsel %vm678, 1.0, 0.0
        %v711 = vsel %vm679, 1.0, 0.0
        %v712 = vsel %vm680, 1.0, 0.0
        %v713 = vsel %vm681, 1.0, 0.0
        %v714 = vsel %vm682, 1.0, 0.0
        %v715 = vsel %vm683, 1.0, 0.0
        %v716 = vsel %vm684, 1.0, 0.0
        %v717 = vsel %vm685, 1.0, 0.0
        %v718 = vsel %vm686, 1.0, 0.0
        %v719 = vsel %vm687, 1.0, 0.0
        %v720 = vsel %vm688, 1.0, 0.0
        %v721 = vsel %vm689, 1.0, 0.0
        %v722 = vsel %vm690, 1.0, 0.0
        %v723 = vsel %vm691, 1.0, 0.0
        %v724 = vld [vmem:[%s1] sm:$0xff]
        %v725 = vld [vmem:[%s1 + $0x8] sm:$0xff]
        %v726 = vld [vmem:[%s1 + $0x10] sm:$0xff]
        %v727 = vld [vmem:[%s1 + $0x18] sm:$0xff]
        %v728 = vld [vmem:[%s1 + $0x20] sm:$0xff]
        %v729 = vld [vmem:[%s1 + $0x28] sm:$0xff]
        %v730 = vld [vmem:[%s1 + $0x30] sm:$0xff]
        %v731 = vld [vmem:[%s1 + $0x38] sm:$0xff]
        %v732 = vld [vmem:[%s1 + $0x40] sm:$0xff]
        %v733 = vld [vmem:[%s1 + $0x48] sm:$0xff]
        %v734 = vld [vmem:[%s1 + $0x50] sm:$0xff]
        %v735 = vld [vmem:[%s1 + $0x58] sm:$0xff]
        %v736 = vld [vmem:[%s1 + $0x60] sm:$0xff]
        %v737 = vld [vmem:[%s1 + $0x68] sm:$0xff]
        %v738 = vld [vmem:[%s1 + $0x70] sm:$0xff]
        %v739 = vld [vmem:[%s1 + $0x78] sm:$0xff]
        %v740 = vld [vmem:[%s1 + $0x80] sm:$0xff]
        %v741 = vld [vmem:[%s1 + $0x88] sm:$0xff]
        %v742 = vld [vmem:[%s1 + $0x90] sm:$0xff]
        %v743 = vld [vmem:[%s1 + $0x98] sm:$0xff]
        %v744 = vld [vmem:[%s1 + $0xa0] sm:$0xff]
        %v745 = vld [vmem:[%s1 + $0xa8] sm:$0xff]
        %v746 = vld [vmem:[%s1 + $0xb0] sm:$0xff]
        %v747 = vld [vmem:[%s1 + $0xb8] sm:$0xff]
        %v748 = vld [vmem:[%s1 + $0xc0] sm:$0xff]
        %v749 = vld [vmem:[%s1 + $0xc8] sm:$0xff]
        %v750 = vld [vmem:[%s1 + $0xd0] sm:$0xff]
        %v751 = vld [vmem:[%s1 + $0xd8] sm:$0xff]
        %v752 = vld [vmem:[%s1 + $0xe0] sm:$0xff]
        %v753 = vld [vmem:[%s1 + $0xe8] sm:$0xff]
        %v754 = vld [vmem:[%s1 + $0xf0] sm:$0xff]
        %v755 = vld [vmem:[%s1 + $0xf8] sm:$0xff]
        %756 = vmatprep.subr.mxu0 0.0
        %757 = vmatpush1.msra.mxu0 %v739
        %758 = vmatprep.subr.mxu0 0.0
        %759 = vmatpush1.msra.mxu0 %v738
        %760 = vmatprep.subr.mxu0 0.0
        %761 = vmatpush1.msra.mxu0 %v737
        %762 = vmatprep.subr.mxu0 0.0
        %763 = vmatpush1.msra.mxu0 %v736
        %764 = vmatprep.subr.mxu0 0.0
        %765 = vmatpush1.msra.mxu0 %v735
        %766 = vmatprep.subr.mxu0 0.0
        %767 = vmatpush1.msra.mxu0 %v734
        %768 = vmatprep.subr.mxu0 0.0
        %769 = vmatpush1.msra.mxu0 %v733
        %770 = vmatprep.subr.mxu0 0.0
        %771 = vmatpush1.msra.mxu0 %v732
        %772 = vmatprep.subr.mxu0 0.0
        %773 = vmatpush1.msra.mxu0 %v731
        %774 = vmatprep.subr.mxu0 0.0
        %775 = vmatpush1.msra.mxu0 %v730
        %776 = vmatprep.subr.mxu0 0.0
        %777 = vmatpush1.msra.mxu0 %v729
        %778 = vmatprep.subr.mxu0 0.0
        %779 = vmatpush1.msra.mxu0 %v728
        %780 = vmatprep.subr.mxu0 0.0
        %781 = vmatpush1.msra.mxu0 %v727
        %782 = vmatprep.subr.mxu0 0.0
        %783 = vmatpush1.msra.mxu0 %v726
        %784 = vmatprep.subr.mxu0 0.0
        %785 = vmatpush1.msra.mxu0 %v725
        %786 = vmatprep.subr.mxu0 0.0
        %787 = vmatpush1.msra.mxu0 %v724
        %788 = vmatprep.subr.mxu0 0.0
        %789 = vmatpush2.msra.mxu0 %v755
        %790 = vmatprep.subr.mxu0 0.0
        %791 = vmatpush2.msra.mxu0 %v754
        %792 = vmatprep.subr.mxu0 0.0
        %793 = vmatpush2.msra.mxu0 %v753
        %794 = vmatprep.subr.mxu0 0.0
        %795 = vmatpush2.msra.mxu0 %v752
        %796 = vmatprep.subr.mxu0 0.0
        %797 = vmatpush2.msra.mxu0 %v751
        %798 = vmatprep.subr.mxu0 0.0
        %799 = vmatpush2.msra.mxu0 %v750
        %800 = vmatprep.subr.mxu0 0.0
        %801 = vmatpush2.msra.mxu0 %v749
        %802 = vmatprep.subr.mxu0 0.0
        %803 = vmatpush2.msra.mxu0 %v748
        %804 = vmatprep.subr.mxu0 0.0
        %805 = vmatpush2.msra.mxu0 %v747
        %806 = vmatprep.subr.mxu0 0.0
        %807 = vmatpush2.msra.mxu0 %v746
        %808 = vmatprep.subr.mxu0 0.0
        %809 = vmatpush2.msra.mxu0 %v745
        %810 = vmatprep.subr.mxu0 0.0
        %811 = vmatpush2.msra.mxu0 %v744
        %812 = vmatprep.subr.mxu0 0.0
        %813 = vmatpush2.msra.mxu0 %v743
        %814 = vmatprep.subr.mxu0 0.0
        %815 = vmatpush2.msra.mxu0 %v742
        %816 = vmatprep.subr.mxu0 0.0
        %817 = vmatpush2.msra.mxu0 %v741
        %818 = vmatprep.subr.mxu0 0.0
        %819 = vmatpush2.msra.mxu0 %v740
        %820 = vmatprep.mubr.f32.mxu0 %v693
        %821 = vmatmul.mubr.f32.gmra.mxu0 %v692
        %v822 = vpop.f32.mrf.mxu0
        %v823 = vadd.f32 0.0, %v822
        %v824 = vpop.f32.mrf.mxu0
        %825 = vmatprep.mubr.f32.mxu0 %v695
        %826 = vmatmul.mubr.f32.gmra.mxu0 %v694
        %v827 = vpop.f32.mrf.mxu0
        %v828 = vadd.f32 0.0, %v827
        %v829 = vpop.f32.mrf.mxu0
        %830 = vmatprep.mubr.f32.mxu0 %v697
        %831 = vmatmul.mubr.f32.gmra.mxu0 %v696
        %v832 = vpop.f32.mrf.mxu0
        %v833 = vadd.f32 0.0, %v832
        %v834 = vpop.f32.mrf.mxu0
        %835 = vmatprep.mubr.f32.mxu0 %v699
        %836 = vmatmul.mubr.f32.gmra.mxu0 %v698
        %v837 = vpop.f32.mrf.mxu0
        %v838 = vadd.f32 0.0, %v837
        %v839 = vpop.f32.mrf.mxu0
        %840 = vmatprep.mubr.f32.mxu0 %v701
        %841 = vmatmul.mubr.f32.gmra.mxu0 %v700
        %v842 = vpop.f32.mrf.mxu0
        %v843 = vadd.f32 0.0, %v842
        %v844 = vpop.f32.mrf.mxu0
        %845 = vmatprep.mubr.f32.mxu0 %v703
        %846 = vmatmul.mubr.f32.gmra.mxu0 %v702
        %v847 = vpop.f32.mrf.mxu0
        %v848 = vadd.f32 0.0, %v847
        %v849 = vpop.f32.mrf.mxu0
        %850 = vmatprep.mubr.f32.mxu0 %v705
        %851 = vmatmul.mubr.f32.gmra.mxu0 %v704
        %v852 = vpop.f32.mrf.mxu0
        %v853 = vadd.f32 0.0, %v852
        %v854 = vpop.f32.mrf.mxu0
        %855 = vmatprep.mubr.f32.mxu0 %v707
        %856 = vmatmul.mubr.f32.gmra.mxu0 %v706
        %v857 = vpop.f32.mrf.mxu0
        %v858 = vadd.f32 0.0, %v857
        %v859 = vpop.f32.mrf.mxu0
        %860 = vmatprep.mubr.f32.mxu0 %v709
        %861 = vmatmul.mubr.f32.gmra.mxu0 %v708
        %v862 = vpop.f32.mrf.mxu0
        %v863 = vadd.f32 0.0, %v862
        %v864 = vpop.f32.mrf.mxu0
        %865 = vmatprep.mubr.f32.mxu0 %v711
        %866 = vmatmul.mubr.f32.gmra.mxu0 %v710
        %v867 = vpop.f32.mrf.mxu0
        %v868 = vadd.f32 0.0, %v867
        %v869 = vpop.f32.mrf.mxu0
        %870 = vmatprep.mubr.f32.mxu0 %v713
        %871 = vmatmul.mubr.f32.gmra.mxu0 %v712
        %v872 = vpop.f32.mrf.mxu0
        %v873 = vadd.f32 0.0, %v872
        %v874 = vpop.f32.mrf.mxu0
        %875 = vmatprep.mubr.f32.mxu0 %v715
        %876 = vmatmul.mubr.f32.gmra.mxu0 %v714
        %v877 = vpop.f32.mrf.mxu0
        %v878 = vadd.f32 0.0, %v877
        %v879 = vpop.f32.mrf.mxu0
        %880 = vmatprep.mubr.f32.mxu0 %v717
        %881 = vmatmul.mubr.f32.gmra.mxu0 %v716
        %v882 = vpop.f32.mrf.mxu0
        %v883 = vadd.f32 0.0, %v882
        %v884 = vpop.f32.mrf.mxu0
        %885 = vmatprep.mubr.f32.mxu0 %v719
        %886 = vmatmul.mubr.f32.gmra.mxu0 %v718
        %v887 = vpop.f32.mrf.mxu0
        %v888 = vadd.f32 0.0, %v887
        %v889 = vpop.f32.mrf.mxu0
        %890 = vmatprep.mubr.f32.mxu0 %v721
        %891 = vmatmul.mubr.f32.gmra.mxu0 %v720
        %v892 = vpop.f32.mrf.mxu0
        %v893 = vadd.f32 0.0, %v892
        %v894 = vpop.f32.mrf.mxu0
        %895 = vmatprep.mubr.f32.mxu0 %v723
        %896 = vmatmul.mubr.f32.gmra.mxu0 %v722
        %v897 = vpop.f32.mrf.mxu0
        %v898 = vadd.f32 0.0, %v897
        %v899 = vpop.f32.mrf.mxu0
        %900 = vdwg.mxu0
        %901 = vst [vmem:[%s137] sm:$0xff] %v823
        %902 = vst [vmem:[%s137 + $0x8] sm:$0xff] %v828
        %903 = vst [vmem:[%s137 + $0x10] sm:$0xff] %v833
        %904 = vst [vmem:[%s137 + $0x18] sm:$0xff] %v838
        %905 = vst [vmem:[%s137 + $0x20] sm:$0xff] %v843
        %906 = vst [vmem:[%s137 + $0x28] sm:$0xff] %v848
        %907 = vst [vmem:[%s137 + $0x30] sm:$0xff] %v853
        %908 = vst [vmem:[%s137 + $0x38] sm:$0xff] %v858
        %909 = vst [vmem:[%s137 + $0x40] sm:$0xff] %v863
        %910 = vst [vmem:[%s137 + $0x48] sm:$0xff] %v868
        %911 = vst [vmem:[%s137 + $0x50] sm:$0xff] %v873
        %912 = vst [vmem:[%s137 + $0x58] sm:$0xff] %v878
        %913 = vst [vmem:[%s137 + $0x60] sm:$0xff] %v883
        %914 = vst [vmem:[%s137 + $0x68] sm:$0xff] %v888
        %915 = vst [vmem:[%s137 + $0x70] sm:$0xff] %v893
        %916 = vst [vmem:[%s137 + $0x78] sm:$0xff] %v898
        %v917 = vld [vmem:[%s142 + $0x80] sm:$0xff]
        %v918 = vld [vmem:[%s142 + $0x88] sm:$0xff]
        %v919 = vld [vmem:[%s142 + $0x90] sm:$0xff]
        %v920 = vld [vmem:[%s142 + $0x98] sm:$0xff]
        %v921 = vld [vmem:[%s142 + $0xa0] sm:$0xff]
        %v922 = vld [vmem:[%s142 + $0xa8] sm:$0xff]
        %v923 = vld [vmem:[%s142 + $0xb0] sm:$0xff]
        %v924 = vld [vmem:[%s142 + $0xb8] sm:$0xff]
        %v925 = vld [vmem:[%s142 + $0xc0] sm:$0xff]
        %v926 = vld [vmem:[%s142 + $0xc8] sm:$0xff]
        %v927 = vld [vmem:[%s142 + $0xd0] sm:$0xff]
        %v928 = vld [vmem:[%s142 + $0xd8] sm:$0xff]
        %v929 = vld [vmem:[%s142 + $0xe0] sm:$0xff]
        %v930 = vld [vmem:[%s142 + $0xe8] sm:$0xff]
        %v931 = vld [vmem:[%s142 + $0xf0] sm:$0xff]
        %v932 = vld [vmem:[%s142 + $0xf8] sm:$0xff]
        %vm933 = vcmp.gt.s32.totalorder %v917, 0
        %v934 = vsel %vm933, %v917, 0
        %vm935 = vcmp.gt.s32.totalorder %v918, 0
        %v936 = vsel %vm935, %v918, 0
        %vm937 = vcmp.gt.s32.totalorder %v919, 0
        %v938 = vsel %vm937, %v919, 0
        %vm939 = vcmp.gt.s32.totalorder %v920, 0
        %v940 = vsel %vm939, %v920, 0
        %vm941 = vcmp.gt.s32.totalorder %v921, 0
        %v942 = vsel %vm941, %v921, 0
        %vm943 = vcmp.gt.s32.totalorder %v922, 0
        %v944 = vsel %vm943, %v922, 0
        %vm945 = vcmp.gt.s32.totalorder %v923, 0
        %v946 = vsel %vm945, %v923, 0
        %vm947 = vcmp.gt.s32.totalorder %v924, 0
        %v948 = vsel %vm947, %v924, 0
        %vm949 = vcmp.gt.s32.totalorder %v925, 0
        %v950 = vsel %vm949, %v925, 0
        %vm951 = vcmp.gt.s32.totalorder %v926, 0
        %v952 = vsel %vm951, %v926, 0
        %vm953 = vcmp.gt.s32.totalorder %v927, 0
        %v954 = vsel %vm953, %v927, 0
        %vm955 = vcmp.gt.s32.totalorder %v928, 0
        %v956 = vsel %vm955, %v928, 0
        %vm957 = vcmp.gt.s32.totalorder %v929, 0
        %v958 = vsel %vm957, %v929, 0
        %vm959 = vcmp.gt.s32.totalorder %v930, 0
        %v960 = vsel %vm959, %v930, 0
        %vm961 = vcmp.gt.s32.totalorder %v931, 0
        %v962 = vsel %vm961, %v931, 0
        %vm963 = vcmp.gt.s32.totalorder %v932, 0
        %v964 = vsel %vm963, %v932, 0
        %vm965 = vcmp.lt.s32.totalorder %v934, 63
        %v966 = vsel %vm965, %v934, 63
        %vm967 = vcmp.lt.s32.totalorder %v936, 63
        %v968 = vsel %vm967, %v936, 63
        %vm969 = vcmp.lt.s32.totalorder %v938, 63
        %v970 = vsel %vm969, %v938, 63
        %vm971 = vcmp.lt.s32.totalorder %v940, 63
        %v972 = vsel %vm971, %v940, 63
        %vm973 = vcmp.lt.s32.totalorder %v942, 63
        %v974 = vsel %vm973, %v942, 63
        %vm975 = vcmp.lt.s32.totalorder %v944, 63
        %v976 = vsel %vm975, %v944, 63
        %vm977 = vcmp.lt.s32.totalorder %v946, 63
        %v978 = vsel %vm977, %v946, 63
        %vm979 = vcmp.lt.s32.totalorder %v948, 63
        %v980 = vsel %vm979, %v948, 63
        %vm981 = vcmp.lt.s32.totalorder %v950, 63
        %v982 = vsel %vm981, %v950, 63
        %vm983 = vcmp.lt.s32.totalorder %v952, 63
        %v984 = vsel %vm983, %v952, 63
        %vm985 = vcmp.lt.s32.totalorder %v954, 63
        %v986 = vsel %vm985, %v954, 63
        %vm987 = vcmp.lt.s32.totalorder %v956, 63
        %v988 = vsel %vm987, %v956, 63
        %vm989 = vcmp.lt.s32.totalorder %v958, 63
        %v990 = vsel %vm989, %v958, 63
        %vm991 = vcmp.lt.s32.totalorder %v960, 63
        %v992 = vsel %vm991, %v960, 63
        %vm993 = vcmp.lt.s32.totalorder %v962, 63
        %v994 = vsel %vm993, %v962, 63
        %vm995 = vcmp.lt.s32.totalorder %v964, 63
        %v996 = vsel %vm995, %v964, 63
        %997 = vset.pattern.permute.xlu0 0
        %998 = vperm.xlu0 %997, %v966
        %v999 = vpop.permute.xlu0 %998
        %1000 = vset.pattern.permute.xlu0 0
        %1001 = vperm.xlu0 %1000, %v968
        %v1002 = vpop.permute.xlu0 %1001
        %1003 = vset.pattern.permute.xlu0 0
        %1004 = vperm.xlu0 %1003, %v970
        %v1005 = vpop.permute.xlu0 %1004
        %1006 = vset.pattern.permute.xlu0 0
        %1007 = vperm.xlu0 %1006, %v972
        %v1008 = vpop.permute.xlu0 %1007
        %1009 = vset.pattern.permute.xlu0 0
        %1010 = vperm.xlu0 %1009, %v974
        %v1011 = vpop.permute.xlu0 %1010
        %1012 = vset.pattern.permute.xlu0 0
        %1013 = vperm.xlu0 %1012, %v976
        %v1014 = vpop.permute.xlu0 %1013
        %1015 = vset.pattern.permute.xlu0 0
        %1016 = vperm.xlu0 %1015, %v978
        %v1017 = vpop.permute.xlu0 %1016
        %1018 = vset.pattern.permute.xlu0 0
        %1019 = vperm.xlu0 %1018, %v980
        %v1020 = vpop.permute.xlu0 %1019
        %1021 = vset.pattern.permute.xlu0 0
        %1022 = vperm.xlu0 %1021, %v982
        %v1023 = vpop.permute.xlu0 %1022
        %1024 = vset.pattern.permute.xlu0 0
        %1025 = vperm.xlu0 %1024, %v984
        %v1026 = vpop.permute.xlu0 %1025
        %1027 = vset.pattern.permute.xlu0 0
        %1028 = vperm.xlu0 %1027, %v986
        %v1029 = vpop.permute.xlu0 %1028
        %1030 = vset.pattern.permute.xlu0 0
        %1031 = vperm.xlu0 %1030, %v988
        %v1032 = vpop.permute.xlu0 %1031
        %1033 = vset.pattern.permute.xlu0 0
        %1034 = vperm.xlu0 %1033, %v990
        %v1035 = vpop.permute.xlu0 %1034
        %1036 = vset.pattern.permute.xlu0 0
        %1037 = vperm.xlu0 %1036, %v992
        %v1038 = vpop.permute.xlu0 %1037
        %1039 = vset.pattern.permute.xlu0 0
        %1040 = vperm.xlu0 %1039, %v994
        %v1041 = vpop.permute.xlu0 %1040
        %1042 = vset.pattern.permute.xlu0 0
        %1043 = vperm.xlu0 %1042, %v996
        %v1044 = vpop.permute.xlu0 %1043
        %vm1045 = vcmp.eq.s32.totalorder %v226, %v999
        %vm1046 = vcmp.eq.s32.totalorder %v227, %v999
        %vm1047 = vcmp.eq.s32.totalorder %v226, %v1002
        %vm1048 = vcmp.eq.s32.totalorder %v227, %v1002
        %vm1049 = vcmp.eq.s32.totalorder %v226, %v1005
        %vm1050 = vcmp.eq.s32.totalorder %v227, %v1005
        %vm1051 = vcmp.eq.s32.totalorder %v226, %v1008
        %vm1052 = vcmp.eq.s32.totalorder %v227, %v1008
        %vm1053 = vcmp.eq.s32.totalorder %v226, %v1011
        %vm1054 = vcmp.eq.s32.totalorder %v227, %v1011
        %vm1055 = vcmp.eq.s32.totalorder %v226, %v1014
        %vm1056 = vcmp.eq.s32.totalorder %v227, %v1014
        %vm1057 = vcmp.eq.s32.totalorder %v226, %v1017
        %vm1058 = vcmp.eq.s32.totalorder %v227, %v1017
        %vm1059 = vcmp.eq.s32.totalorder %v226, %v1020
        %vm1060 = vcmp.eq.s32.totalorder %v227, %v1020
        %vm1061 = vcmp.eq.s32.totalorder %v226, %v1023
        %vm1062 = vcmp.eq.s32.totalorder %v227, %v1023
        %vm1063 = vcmp.eq.s32.totalorder %v226, %v1026
        %vm1064 = vcmp.eq.s32.totalorder %v227, %v1026
        %vm1065 = vcmp.eq.s32.totalorder %v226, %v1029
        %vm1066 = vcmp.eq.s32.totalorder %v227, %v1029
        %vm1067 = vcmp.eq.s32.totalorder %v226, %v1032
        %vm1068 = vcmp.eq.s32.totalorder %v227, %v1032
        %vm1069 = vcmp.eq.s32.totalorder %v226, %v1035
        %vm1070 = vcmp.eq.s32.totalorder %v227, %v1035
        %vm1071 = vcmp.eq.s32.totalorder %v226, %v1038
        %vm1072 = vcmp.eq.s32.totalorder %v227, %v1038
        %vm1073 = vcmp.eq.s32.totalorder %v226, %v1041
        %vm1074 = vcmp.eq.s32.totalorder %v227, %v1041
        %vm1075 = vcmp.eq.s32.totalorder %v226, %v1044
        %vm1076 = vcmp.eq.s32.totalorder %v227, %v1044
        %v1077 = vadd.s32 %v966, 64
        %v1078 = vadd.s32 %v968, 64
        %v1079 = vadd.s32 %v970, 64
        %v1080 = vadd.s32 %v972, 64
        %v1081 = vadd.s32 %v974, 64
        %v1082 = vadd.s32 %v976, 64
        %v1083 = vadd.s32 %v978, 64
        %v1084 = vadd.s32 %v980, 64
        %v1085 = vadd.s32 %v982, 64
        %v1086 = vadd.s32 %v984, 64
        %v1087 = vadd.s32 %v986, 64
        %v1088 = vadd.s32 %v988, 64
        %v1089 = vadd.s32 %v990, 64
        %v1090 = vadd.s32 %v992, 64
        %v1091 = vadd.s32 %v994, 64
        %v1092 = vadd.s32 %v996, 64
        %1093 = vset.pattern.permute.xlu0 1
        %1094 = vperm.xlu0 %1093, %v1077
        %v1095 = vpop.permute.xlu0 %1094
        %1096 = vset.pattern.permute.xlu0 1
        %1097 = vperm.xlu0 %1096, %v1078
        %v1098 = vpop.permute.xlu0 %1097
        %1099 = vset.pattern.permute.xlu0 1
        %1100 = vperm.xlu0 %1099, %v1079
        %v1101 = vpop.permute.xlu0 %1100
        %1102 = vset.pattern.permute.xlu0 1
        %1103 = vperm.xlu0 %1102, %v1080
        %v1104 = vpop.permute.xlu0 %1103
        %1105 = vset.pattern.permute.xlu0 1
        %1106 = vperm.xlu0 %1105, %v1081
        %v1107 = vpop.permute.xlu0 %1106
        %1108 = vset.pattern.permute.xlu0 1
        %1109 = vperm.xlu0 %1108, %v1082
        %v1110 = vpop.permute.xlu0 %1109
        %1111 = vset.pattern.permute.xlu0 1
        %1112 = vperm.xlu0 %1111, %v1083
        %v1113 = vpop.permute.xlu0 %1112
        %1114 = vset.pattern.permute.xlu0 1
        %1115 = vperm.xlu0 %1114, %v1084
        %v1116 = vpop.permute.xlu0 %1115
        %1117 = vset.pattern.permute.xlu0 1
        %1118 = vperm.xlu0 %1117, %v1085
        %v1119 = vpop.permute.xlu0 %1118
        %1120 = vset.pattern.permute.xlu0 1
        %1121 = vperm.xlu0 %1120, %v1086
        %v1122 = vpop.permute.xlu0 %1121
        %1123 = vset.pattern.permute.xlu0 1
        %1124 = vperm.xlu0 %1123, %v1087
        %v1125 = vpop.permute.xlu0 %1124
        %1126 = vset.pattern.permute.xlu0 1
        %1127 = vperm.xlu0 %1126, %v1088
        %v1128 = vpop.permute.xlu0 %1127
        %1129 = vset.pattern.permute.xlu0 1
        %1130 = vperm.xlu0 %1129, %v1089
        %v1131 = vpop.permute.xlu0 %1130
        %1132 = vset.pattern.permute.xlu0 1
        %1133 = vperm.xlu0 %1132, %v1090
        %v1134 = vpop.permute.xlu0 %1133
        %1135 = vset.pattern.permute.xlu0 1
        %1136 = vperm.xlu0 %1135, %v1091
        %v1137 = vpop.permute.xlu0 %1136
        %1138 = vset.pattern.permute.xlu0 1
        %1139 = vperm.xlu0 %1138, %v1092
        %v1140 = vpop.permute.xlu0 %1139
        %vm1141 = vcmp.eq.s32.totalorder %v226, %v1095
        %vm1142 = vcmp.eq.s32.totalorder %v227, %v1095
        %vm1143 = vcmp.eq.s32.totalorder %v226, %v1098
        %vm1144 = vcmp.eq.s32.totalorder %v227, %v1098
        %vm1145 = vcmp.eq.s32.totalorder %v226, %v1101
        %vm1146 = vcmp.eq.s32.totalorder %v227, %v1101
        %vm1147 = vcmp.eq.s32.totalorder %v226, %v1104
        %vm1148 = vcmp.eq.s32.totalorder %v227, %v1104
        %vm1149 = vcmp.eq.s32.totalorder %v226, %v1107
        %vm1150 = vcmp.eq.s32.totalorder %v227, %v1107
        %vm1151 = vcmp.eq.s32.totalorder %v226, %v1110
        %vm1152 = vcmp.eq.s32.totalorder %v227, %v1110
        %vm1153 = vcmp.eq.s32.totalorder %v226, %v1113
        %vm1154 = vcmp.eq.s32.totalorder %v227, %v1113
        %vm1155 = vcmp.eq.s32.totalorder %v226, %v1116
        %vm1156 = vcmp.eq.s32.totalorder %v227, %v1116
        %vm1157 = vcmp.eq.s32.totalorder %v226, %v1119
        %vm1158 = vcmp.eq.s32.totalorder %v227, %v1119
        %vm1159 = vcmp.eq.s32.totalorder %v226, %v1122
        %vm1160 = vcmp.eq.s32.totalorder %v227, %v1122
        %vm1161 = vcmp.eq.s32.totalorder %v226, %v1125
        %vm1162 = vcmp.eq.s32.totalorder %v227, %v1125
        %vm1163 = vcmp.eq.s32.totalorder %v226, %v1128
        %vm1164 = vcmp.eq.s32.totalorder %v227, %v1128
        %vm1165 = vcmp.eq.s32.totalorder %v226, %v1131
        %vm1166 = vcmp.eq.s32.totalorder %v227, %v1131
        %vm1167 = vcmp.eq.s32.totalorder %v226, %v1134
        %vm1168 = vcmp.eq.s32.totalorder %v227, %v1134
        %vm1169 = vcmp.eq.s32.totalorder %v226, %v1137
        %vm1170 = vcmp.eq.s32.totalorder %v227, %v1137
        %vm1171 = vcmp.eq.s32.totalorder %v226, %v1140
        %vm1172 = vcmp.eq.s32.totalorder %v227, %v1140
        %vm1173 = vmor %vm1045, %vm1141
        %vm1174 = vmor %vm1046, %vm1142
        %vm1175 = vmor %vm1047, %vm1143
        %vm1176 = vmor %vm1048, %vm1144
        %vm1177 = vmor %vm1049, %vm1145
        %vm1178 = vmor %vm1050, %vm1146
        %vm1179 = vmor %vm1051, %vm1147
        %vm1180 = vmor %vm1052, %vm1148
        %vm1181 = vmor %vm1053, %vm1149
        %vm1182 = vmor %vm1054, %vm1150
        %vm1183 = vmor %vm1055, %vm1151
        %vm1184 = vmor %vm1056, %vm1152
        %vm1185 = vmor %vm1057, %vm1153
        %vm1186 = vmor %vm1058, %vm1154
        %vm1187 = vmor %vm1059, %vm1155
        %vm1188 = vmor %vm1060, %vm1156
        %vm1189 = vmor %vm1061, %vm1157
        %vm1190 = vmor %vm1062, %vm1158
        %vm1191 = vmor %vm1063, %vm1159
        %vm1192 = vmor %vm1064, %vm1160
        %vm1193 = vmor %vm1065, %vm1161
        %vm1194 = vmor %vm1066, %vm1162
        %vm1195 = vmor %vm1067, %vm1163
        %vm1196 = vmor %vm1068, %vm1164
        %vm1197 = vmor %vm1069, %vm1165
        %vm1198 = vmor %vm1070, %vm1166
        %vm1199 = vmor %vm1071, %vm1167
        %vm1200 = vmor %vm1072, %vm1168
        %vm1201 = vmor %vm1073, %vm1169
        %vm1202 = vmor %vm1074, %vm1170
        %vm1203 = vmor %vm1075, %vm1171
        %vm1204 = vmor %vm1076, %vm1172
        %v1205 = vadd.s32 %v966, 128
        %v1206 = vadd.s32 %v968, 128
        %v1207 = vadd.s32 %v970, 128
        %v1208 = vadd.s32 %v972, 128
        %v1209 = vadd.s32 %v974, 128
        %v1210 = vadd.s32 %v976, 128
        %v1211 = vadd.s32 %v978, 128
        %v1212 = vadd.s32 %v980, 128
        %v1213 = vadd.s32 %v982, 128
        %v1214 = vadd.s32 %v984, 128
        %v1215 = vadd.s32 %v986, 128
        %v1216 = vadd.s32 %v988, 128
        %v1217 = vadd.s32 %v990, 128
        %v1218 = vadd.s32 %v992, 128
        %v1219 = vadd.s32 %v994, 128
        %v1220 = vadd.s32 %v996, 128
        %1221 = vset.pattern.permute.xlu0 2
        %1222 = vperm.xlu0 %1221, %v1205
        %v1223 = vpop.permute.xlu0 %1222
        %1224 = vset.pattern.permute.xlu0 2
        %1225 = vperm.xlu0 %1224, %v1206
        %v1226 = vpop.permute.xlu0 %1225
        %1227 = vset.pattern.permute.xlu0 2
        %1228 = vperm.xlu0 %1227, %v1207
        %v1229 = vpop.permute.xlu0 %1228
        %1230 = vset.pattern.permute.xlu0 2
        %1231 = vperm.xlu0 %1230, %v1208
        %v1232 = vpop.permute.xlu0 %1231
        %1233 = vset.pattern.permute.xlu0 2
        %1234 = vperm.xlu0 %1233, %v1209
        %v1235 = vpop.permute.xlu0 %1234
        %1236 = vset.pattern.permute.xlu0 2
        %1237 = vperm.xlu0 %1236, %v1210
        %v1238 = vpop.permute.xlu0 %1237
        %1239 = vset.pattern.permute.xlu0 2
        %1240 = vperm.xlu0 %1239, %v1211
        %v1241 = vpop.permute.xlu0 %1240
        %1242 = vset.pattern.permute.xlu0 2
        %1243 = vperm.xlu0 %1242, %v1212
        %v1244 = vpop.permute.xlu0 %1243
        %1245 = vset.pattern.permute.xlu0 2
        %1246 = vperm.xlu0 %1245, %v1213
        %v1247 = vpop.permute.xlu0 %1246
        %1248 = vset.pattern.permute.xlu0 2
        %1249 = vperm.xlu0 %1248, %v1214
        %v1250 = vpop.permute.xlu0 %1249
        %1251 = vset.pattern.permute.xlu0 2
        %1252 = vperm.xlu0 %1251, %v1215
        %v1253 = vpop.permute.xlu0 %1252
        %1254 = vset.pattern.permute.xlu0 2
        %1255 = vperm.xlu0 %1254, %v1216
        %v1256 = vpop.permute.xlu0 %1255
        %1257 = vset.pattern.permute.xlu0 2
        %1258 = vperm.xlu0 %1257, %v1217
        %v1259 = vpop.permute.xlu0 %1258
        %1260 = vset.pattern.permute.xlu0 2
        %1261 = vperm.xlu0 %1260, %v1218
        %v1262 = vpop.permute.xlu0 %1261
        %1263 = vset.pattern.permute.xlu0 2
        %1264 = vperm.xlu0 %1263, %v1219
        %v1265 = vpop.permute.xlu0 %1264
        %1266 = vset.pattern.permute.xlu0 2
        %1267 = vperm.xlu0 %1266, %v1220
        %v1268 = vpop.permute.xlu0 %1267
        %vm1269 = vcmp.eq.s32.totalorder %v226, %v1223
        %vm1270 = vcmp.eq.s32.totalorder %v227, %v1223
        %vm1271 = vcmp.eq.s32.totalorder %v226, %v1226
        %vm1272 = vcmp.eq.s32.totalorder %v227, %v1226
        %vm1273 = vcmp.eq.s32.totalorder %v226, %v1229
        %vm1274 = vcmp.eq.s32.totalorder %v227, %v1229
        %vm1275 = vcmp.eq.s32.totalorder %v226, %v1232
        %vm1276 = vcmp.eq.s32.totalorder %v227, %v1232
        %vm1277 = vcmp.eq.s32.totalorder %v226, %v1235
        %vm1278 = vcmp.eq.s32.totalorder %v227, %v1235
        %vm1279 = vcmp.eq.s32.totalorder %v226, %v1238
        %vm1280 = vcmp.eq.s32.totalorder %v227, %v1238
        %vm1281 = vcmp.eq.s32.totalorder %v226, %v1241
        %vm1282 = vcmp.eq.s32.totalorder %v227, %v1241
        %vm1283 = vcmp.eq.s32.totalorder %v226, %v1244
        %vm1284 = vcmp.eq.s32.totalorder %v227, %v1244
        %vm1285 = vcmp.eq.s32.totalorder %v226, %v1247
        %vm1286 = vcmp.eq.s32.totalorder %v227, %v1247
        %vm1287 = vcmp.eq.s32.totalorder %v226, %v1250
        %vm1288 = vcmp.eq.s32.totalorder %v227, %v1250
        %vm1289 = vcmp.eq.s32.totalorder %v226, %v1253
        %vm1290 = vcmp.eq.s32.totalorder %v227, %v1253
        %vm1291 = vcmp.eq.s32.totalorder %v226, %v1256
        %vm1292 = vcmp.eq.s32.totalorder %v227, %v1256
        %vm1293 = vcmp.eq.s32.totalorder %v226, %v1259
        %vm1294 = vcmp.eq.s32.totalorder %v227, %v1259
        %vm1295 = vcmp.eq.s32.totalorder %v226, %v1262
        %vm1296 = vcmp.eq.s32.totalorder %v227, %v1262
        %vm1297 = vcmp.eq.s32.totalorder %v226, %v1265
        %vm1298 = vcmp.eq.s32.totalorder %v227, %v1265
        %vm1299 = vcmp.eq.s32.totalorder %v226, %v1268
        %vm1300 = vcmp.eq.s32.totalorder %v227, %v1268
        %vm1301 = vmor %vm1173, %vm1269
        %vm1302 = vmor %vm1174, %vm1270
        %vm1303 = vmor %vm1175, %vm1271
        %vm1304 = vmor %vm1176, %vm1272
        %vm1305 = vmor %vm1177, %vm1273
        %vm1306 = vmor %vm1178, %vm1274
        %vm1307 = vmor %vm1179, %vm1275
        %vm1308 = vmor %vm1180, %vm1276
        %vm1309 = vmor %vm1181, %vm1277
        %vm1310 = vmor %vm1182, %vm1278
        %vm1311 = vmor %vm1183, %vm1279
        %vm1312 = vmor %vm1184, %vm1280
        %vm1313 = vmor %vm1185, %vm1281
        %vm1314 = vmor %vm1186, %vm1282
        %vm1315 = vmor %vm1187, %vm1283
        %vm1316 = vmor %vm1188, %vm1284
        %vm1317 = vmor %vm1189, %vm1285
        %vm1318 = vmor %vm1190, %vm1286
        %vm1319 = vmor %vm1191, %vm1287
        %vm1320 = vmor %vm1192, %vm1288
        %vm1321 = vmor %vm1193, %vm1289
        %vm1322 = vmor %vm1194, %vm1290
        %vm1323 = vmor %vm1195, %vm1291
        %vm1324 = vmor %vm1196, %vm1292
        %vm1325 = vmor %vm1197, %vm1293
        %vm1326 = vmor %vm1198, %vm1294
        %vm1327 = vmor %vm1199, %vm1295
        %vm1328 = vmor %vm1200, %vm1296
        %vm1329 = vmor %vm1201, %vm1297
        %vm1330 = vmor %vm1202, %vm1298
        %vm1331 = vmor %vm1203, %vm1299
        %vm1332 = vmor %vm1204, %vm1300
        %v1333 = vadd.s32 %v966, 192
        %v1334 = vadd.s32 %v968, 192
        %v1335 = vadd.s32 %v970, 192
        %v1336 = vadd.s32 %v972, 192
        %v1337 = vadd.s32 %v974, 192
        %v1338 = vadd.s32 %v976, 192
        %v1339 = vadd.s32 %v978, 192
        %v1340 = vadd.s32 %v980, 192
        %v1341 = vadd.s32 %v982, 192
        %v1342 = vadd.s32 %v984, 192
        %v1343 = vadd.s32 %v986, 192
        %v1344 = vadd.s32 %v988, 192
        %v1345 = vadd.s32 %v990, 192
        %v1346 = vadd.s32 %v992, 192
        %v1347 = vadd.s32 %v994, 192
        %v1348 = vadd.s32 %v996, 192
        %1349 = vset.pattern.permute.xlu0 3
        %1350 = vperm.xlu0 %1349, %v1333
        %v1351 = vpop.permute.xlu0 %1350
        %1352 = vset.pattern.permute.xlu0 3
        %1353 = vperm.xlu0 %1352, %v1334
        %v1354 = vpop.permute.xlu0 %1353
        %1355 = vset.pattern.permute.xlu0 3
        %1356 = vperm.xlu0 %1355, %v1335
        %v1357 = vpop.permute.xlu0 %1356
        %1358 = vset.pattern.permute.xlu0 3
        %1359 = vperm.xlu0 %1358, %v1336
        %v1360 = vpop.permute.xlu0 %1359
        %1361 = vset.pattern.permute.xlu0 3
        %1362 = vperm.xlu0 %1361, %v1337
        %v1363 = vpop.permute.xlu0 %1362
        %1364 = vset.pattern.permute.xlu0 3
        %1365 = vperm.xlu0 %1364, %v1338
        %v1366 = vpop.permute.xlu0 %1365
        %1367 = vset.pattern.permute.xlu0 3
        %1368 = vperm.xlu0 %1367, %v1339
        %v1369 = vpop.permute.xlu0 %1368
        %1370 = vset.pattern.permute.xlu0 3
        %1371 = vperm.xlu0 %1370, %v1340
        %v1372 = vpop.permute.xlu0 %1371
        %1373 = vset.pattern.permute.xlu0 3
        %1374 = vperm.xlu0 %1373, %v1341
        %v1375 = vpop.permute.xlu0 %1374
        %1376 = vset.pattern.permute.xlu0 3
        %1377 = vperm.xlu0 %1376, %v1342
        %v1378 = vpop.permute.xlu0 %1377
        %1379 = vset.pattern.permute.xlu0 3
        %1380 = vperm.xlu0 %1379, %v1343
        %v1381 = vpop.permute.xlu0 %1380
        %1382 = vset.pattern.permute.xlu0 3
        %1383 = vperm.xlu0 %1382, %v1344
        %v1384 = vpop.permute.xlu0 %1383
        %1385 = vset.pattern.permute.xlu0 3
        %1386 = vperm.xlu0 %1385, %v1345
        %v1387 = vpop.permute.xlu0 %1386
        %1388 = vset.pattern.permute.xlu0 3
        %1389 = vperm.xlu0 %1388, %v1346
        %v1390 = vpop.permute.xlu0 %1389
        %1391 = vset.pattern.permute.xlu0 3
        %1392 = vperm.xlu0 %1391, %v1347
        %v1393 = vpop.permute.xlu0 %1392
        %1394 = vset.pattern.permute.xlu0 3
        %1395 = vperm.xlu0 %1394, %v1348
        %v1396 = vpop.permute.xlu0 %1395
        %vm1397 = vcmp.eq.s32.totalorder %v226, %v1351
        %vm1398 = vcmp.eq.s32.totalorder %v227, %v1351
        %vm1399 = vcmp.eq.s32.totalorder %v226, %v1354
        %vm1400 = vcmp.eq.s32.totalorder %v227, %v1354
        %vm1401 = vcmp.eq.s32.totalorder %v226, %v1357
        %vm1402 = vcmp.eq.s32.totalorder %v227, %v1357
        %vm1403 = vcmp.eq.s32.totalorder %v226, %v1360
        %vm1404 = vcmp.eq.s32.totalorder %v227, %v1360
        %vm1405 = vcmp.eq.s32.totalorder %v226, %v1363
        %vm1406 = vcmp.eq.s32.totalorder %v227, %v1363
        %vm1407 = vcmp.eq.s32.totalorder %v226, %v1366
        %vm1408 = vcmp.eq.s32.totalorder %v227, %v1366
        %vm1409 = vcmp.eq.s32.totalorder %v226, %v1369
        %vm1410 = vcmp.eq.s32.totalorder %v227, %v1369
        %vm1411 = vcmp.eq.s32.totalorder %v226, %v1372
        %vm1412 = vcmp.eq.s32.totalorder %v227, %v1372
        %vm1413 = vcmp.eq.s32.totalorder %v226, %v1375
        %vm1414 = vcmp.eq.s32.totalorder %v227, %v1375
        %vm1415 = vcmp.eq.s32.totalorder %v226, %v1378
        %vm1416 = vcmp.eq.s32.totalorder %v227, %v1378
        %vm1417 = vcmp.eq.s32.totalorder %v226, %v1381
        %vm1418 = vcmp.eq.s32.totalorder %v227, %v1381
        %vm1419 = vcmp.eq.s32.totalorder %v226, %v1384
        %vm1420 = vcmp.eq.s32.totalorder %v227, %v1384
        %vm1421 = vcmp.eq.s32.totalorder %v226, %v1387
        %vm1422 = vcmp.eq.s32.totalorder %v227, %v1387
        %vm1423 = vcmp.eq.s32.totalorder %v226, %v1390
        %vm1424 = vcmp.eq.s32.totalorder %v227, %v1390
        %vm1425 = vcmp.eq.s32.totalorder %v226, %v1393
        %vm1426 = vcmp.eq.s32.totalorder %v227, %v1393
        %vm1427 = vcmp.eq.s32.totalorder %v226, %v1396
        %vm1428 = vcmp.eq.s32.totalorder %v227, %v1396
        %vm1429 = vmor %vm1301, %vm1397
        %vm1430 = vmor %vm1302, %vm1398
        %vm1431 = vmor %vm1303, %vm1399
        %vm1432 = vmor %vm1304, %vm1400
        %vm1433 = vmor %vm1305, %vm1401
        %vm1434 = vmor %vm1306, %vm1402
        %vm1435 = vmor %vm1307, %vm1403
        %vm1436 = vmor %vm1308, %vm1404
        %vm1437 = vmor %vm1309, %vm1405
        %vm1438 = vmor %vm1310, %vm1406
        %vm1439 = vmor %vm1311, %vm1407
        %vm1440 = vmor %vm1312, %vm1408
        %vm1441 = vmor %vm1313, %vm1409
        %vm1442 = vmor %vm1314, %vm1410
        %vm1443 = vmor %vm1315, %vm1411
        %vm1444 = vmor %vm1316, %vm1412
        %vm1445 = vmor %vm1317, %vm1413
        %vm1446 = vmor %vm1318, %vm1414
        %vm1447 = vmor %vm1319, %vm1415
        %vm1448 = vmor %vm1320, %vm1416
        %vm1449 = vmor %vm1321, %vm1417
        %vm1450 = vmor %vm1322, %vm1418
        %vm1451 = vmor %vm1323, %vm1419
        %vm1452 = vmor %vm1324, %vm1420
        %vm1453 = vmor %vm1325, %vm1421
        %vm1454 = vmor %vm1326, %vm1422
        %vm1455 = vmor %vm1327, %vm1423
        %vm1456 = vmor %vm1328, %vm1424
        %vm1457 = vmor %vm1329, %vm1425
        %vm1458 = vmor %vm1330, %vm1426
        %vm1459 = vmor %vm1331, %vm1427
        %vm1460 = vmor %vm1332, %vm1428
        %v1461 = vsel %vm1429, 1.0, 0.0
        %v1462 = vsel %vm1430, 1.0, 0.0
        %v1463 = vsel %vm1431, 1.0, 0.0
        %v1464 = vsel %vm1432, 1.0, 0.0
        %v1465 = vsel %vm1433, 1.0, 0.0
        %v1466 = vsel %vm1434, 1.0, 0.0
        %v1467 = vsel %vm1435, 1.0, 0.0
        %v1468 = vsel %vm1436, 1.0, 0.0
        %v1469 = vsel %vm1437, 1.0, 0.0
        %v1470 = vsel %vm1438, 1.0, 0.0
        %v1471 = vsel %vm1439, 1.0, 0.0
        %v1472 = vsel %vm1440, 1.0, 0.0
        %v1473 = vsel %vm1441, 1.0, 0.0
        %v1474 = vsel %vm1442, 1.0, 0.0
        %v1475 = vsel %vm1443, 1.0, 0.0
        %v1476 = vsel %vm1444, 1.0, 0.0
        %v1477 = vsel %vm1445, 1.0, 0.0
        %v1478 = vsel %vm1446, 1.0, 0.0
        %v1479 = vsel %vm1447, 1.0, 0.0
        %v1480 = vsel %vm1448, 1.0, 0.0
        %v1481 = vsel %vm1449, 1.0, 0.0
        %v1482 = vsel %vm1450, 1.0, 0.0
        %v1483 = vsel %vm1451, 1.0, 0.0
        %v1484 = vsel %vm1452, 1.0, 0.0
        %v1485 = vsel %vm1453, 1.0, 0.0
        %v1486 = vsel %vm1454, 1.0, 0.0
        %v1487 = vsel %vm1455, 1.0, 0.0
        %v1488 = vsel %vm1456, 1.0, 0.0
        %v1489 = vsel %vm1457, 1.0, 0.0
        %v1490 = vsel %vm1458, 1.0, 0.0
        %v1491 = vsel %vm1459, 1.0, 0.0
        %v1492 = vsel %vm1460, 1.0, 0.0
        %v1493 = vld [vmem:[%s1] sm:$0xff]
        %v1494 = vld [vmem:[%s1 + $0x8] sm:$0xff]
        %v1495 = vld [vmem:[%s1 + $0x10] sm:$0xff]
        %v1496 = vld [vmem:[%s1 + $0x18] sm:$0xff]
        %v1497 = vld [vmem:[%s1 + $0x20] sm:$0xff]
        %v1498 = vld [vmem:[%s1 + $0x28] sm:$0xff]
        %v1499 = vld [vmem:[%s1 + $0x30] sm:$0xff]
        %v1500 = vld [vmem:[%s1 + $0x38] sm:$0xff]
        %v1501 = vld [vmem:[%s1 + $0x40] sm:$0xff]
        %v1502 = vld [vmem:[%s1 + $0x48] sm:$0xff]
        %v1503 = vld [vmem:[%s1 + $0x50] sm:$0xff]
        %v1504 = vld [vmem:[%s1 + $0x58] sm:$0xff]
        %v1505 = vld [vmem:[%s1 + $0x60] sm:$0xff]
        %v1506 = vld [vmem:[%s1 + $0x68] sm:$0xff]
        %v1507 = vld [vmem:[%s1 + $0x70] sm:$0xff]
        %v1508 = vld [vmem:[%s1 + $0x78] sm:$0xff]
        %v1509 = vld [vmem:[%s1 + $0x80] sm:$0xff]
        %v1510 = vld [vmem:[%s1 + $0x88] sm:$0xff]
        %v1511 = vld [vmem:[%s1 + $0x90] sm:$0xff]
        %v1512 = vld [vmem:[%s1 + $0x98] sm:$0xff]
        %v1513 = vld [vmem:[%s1 + $0xa0] sm:$0xff]
        %v1514 = vld [vmem:[%s1 + $0xa8] sm:$0xff]
        %v1515 = vld [vmem:[%s1 + $0xb0] sm:$0xff]
        %v1516 = vld [vmem:[%s1 + $0xb8] sm:$0xff]
        %v1517 = vld [vmem:[%s1 + $0xc0] sm:$0xff]
        %v1518 = vld [vmem:[%s1 + $0xc8] sm:$0xff]
        %v1519 = vld [vmem:[%s1 + $0xd0] sm:$0xff]
        %v1520 = vld [vmem:[%s1 + $0xd8] sm:$0xff]
        %v1521 = vld [vmem:[%s1 + $0xe0] sm:$0xff]
        %v1522 = vld [vmem:[%s1 + $0xe8] sm:$0xff]
        %v1523 = vld [vmem:[%s1 + $0xf0] sm:$0xff]
        %v1524 = vld [vmem:[%s1 + $0xf8] sm:$0xff]
        %1525 = vmatprep.subr.mxu0 0.0
        %1526 = vmatpush1.msra.mxu0 %v1508
        %1527 = vmatprep.subr.mxu0 0.0
        %1528 = vmatpush1.msra.mxu0 %v1507
        %1529 = vmatprep.subr.mxu0 0.0
        %1530 = vmatpush1.msra.mxu0 %v1506
        %1531 = vmatprep.subr.mxu0 0.0
        %1532 = vmatpush1.msra.mxu0 %v1505
        %1533 = vmatprep.subr.mxu0 0.0
        %1534 = vmatpush1.msra.mxu0 %v1504
        %1535 = vmatprep.subr.mxu0 0.0
        %1536 = vmatpush1.msra.mxu0 %v1503
        %1537 = vmatprep.subr.mxu0 0.0
        %1538 = vmatpush1.msra.mxu0 %v1502
        %1539 = vmatprep.subr.mxu0 0.0
        %1540 = vmatpush1.msra.mxu0 %v1501
        %1541 = vmatprep.subr.mxu0 0.0
        %1542 = vmatpush1.msra.mxu0 %v1500
        %1543 = vmatprep.subr.mxu0 0.0
        %1544 = vmatpush1.msra.mxu0 %v1499
        %1545 = vmatprep.subr.mxu0 0.0
        %1546 = vmatpush1.msra.mxu0 %v1498
        %1547 = vmatprep.subr.mxu0 0.0
        %1548 = vmatpush1.msra.mxu0 %v1497
        %1549 = vmatprep.subr.mxu0 0.0
        %1550 = vmatpush1.msra.mxu0 %v1496
        %1551 = vmatprep.subr.mxu0 0.0
        %1552 = vmatpush1.msra.mxu0 %v1495
        %1553 = vmatprep.subr.mxu0 0.0
        %1554 = vmatpush1.msra.mxu0 %v1494
        %1555 = vmatprep.subr.mxu0 0.0
        %1556 = vmatpush1.msra.mxu0 %v1493
        %1557 = vmatprep.subr.mxu0 0.0
        %1558 = vmatpush2.msra.mxu0 %v1524
        %1559 = vmatprep.subr.mxu0 0.0
        %1560 = vmatpush2.msra.mxu0 %v1523
        %1561 = vmatprep.subr.mxu0 0.0
        %1562 = vmatpush2.msra.mxu0 %v1522
        %1563 = vmatprep.subr.mxu0 0.0
        %1564 = vmatpush2.msra.mxu0 %v1521
        %1565 = vmatprep.subr.mxu0 0.0
        %1566 = vmatpush2.msra.mxu0 %v1520
        %1567 = vmatprep.subr.mxu0 0.0
        %1568 = vmatpush2.msra.mxu0 %v1519
        %1569 = vmatprep.subr.mxu0 0.0
        %1570 = vmatpush2.msra.mxu0 %v1518
        %1571 = vmatprep.subr.mxu0 0.0
        %1572 = vmatpush2.msra.mxu0 %v1517
        %1573 = vmatprep.subr.mxu0 0.0
        %1574 = vmatpush2.msra.mxu0 %v1516
        %1575 = vmatprep.subr.mxu0 0.0
        %1576 = vmatpush2.msra.mxu0 %v1515
        %1577 = vmatprep.subr.mxu0 0.0
        %1578 = vmatpush2.msra.mxu0 %v1514
        %1579 = vmatprep.subr.mxu0 0.0
        %1580 = vmatpush2.msra.mxu0 %v1513
        %1581 = vmatprep.subr.mxu0 0.0
        %1582 = vmatpush2.msra.mxu0 %v1512
        %1583 = vmatprep.subr.mxu0 0.0
        %1584 = vmatpush2.msra.mxu0 %v1511
        %1585 = vmatprep.subr.mxu0 0.0
        %1586 = vmatpush2.msra.mxu0 %v1510
        %1587 = vmatprep.subr.mxu0 0.0
        %1588 = vmatpush2.msra.mxu0 %v1509
        %1589 = vmatprep.mubr.f32.mxu0 %v1462
        %1590 = vmatmul.mubr.f32.gmra.mxu0 %v1461
        %v1591 = vpop.f32.mrf.mxu0
        %v1592 = vadd.f32 0.0, %v1591
        %v1593 = vpop.f32.mrf.mxu0
        %1594 = vmatprep.mubr.f32.mxu0 %v1464
        %1595 = vmatmul.mubr.f32.gmra.mxu0 %v1463
        %v1596 = vpop.f32.mrf.mxu0
        %v1597 = vadd.f32 0.0, %v1596
        %v1598 = vpop.f32.mrf.mxu0
        %1599 = vmatprep.mubr.f32.mxu0 %v1466
        %1600 = vmatmul.mubr.f32.gmra.mxu0 %v1465
        %v1601 = vpop.f32.mrf.mxu0
        %v1602 = vadd.f32 0.0, %v1601
        %v1603 = vpop.f32.mrf.mxu0
        %1604 = vmatprep.mubr.f32.mxu0 %v1468
        %1605 = vmatmul.mubr.f32.gmra.mxu0 %v1467
        %v1606 = vpop.f32.mrf.mxu0
        %v1607 = vadd.f32 0.0, %v1606
        %v1608 = vpop.f32.mrf.mxu0
        %1609 = vmatprep.mubr.f32.mxu0 %v1470
        %1610 = vmatmul.mubr.f32.gmra.mxu0 %v1469
        %v1611 = vpop.f32.mrf.mxu0
        %v1612 = vadd.f32 0.0, %v1611
        %v1613 = vpop.f32.mrf.mxu0
        %1614 = vmatprep.mubr.f32.mxu0 %v1472
        %1615 = vmatmul.mubr.f32.gmra.mxu0 %v1471
        %v1616 = vpop.f32.mrf.mxu0
        %v1617 = vadd.f32 0.0, %v1616
        %v1618 = vpop.f32.mrf.mxu0
        %1619 = vmatprep.mubr.f32.mxu0 %v1474
        %1620 = vmatmul.mubr.f32.gmra.mxu0 %v1473
        %v1621 = vpop.f32.mrf.mxu0
        %v1622 = vadd.f32 0.0, %v1621
        %v1623 = vpop.f32.mrf.mxu0
        %1624 = vmatprep.mubr.f32.mxu0 %v1476
        %1625 = vmatmul.mubr.f32.gmra.mxu0 %v1475
        %v1626 = vpop.f32.mrf.mxu0
        %v1627 = vadd.f32 0.0, %v1626
        %v1628 = vpop.f32.mrf.mxu0
        %1629 = vmatprep.mubr.f32.mxu0 %v1478
        %1630 = vmatmul.mubr.f32.gmra.mxu0 %v1477
        %v1631 = vpop.f32.mrf.mxu0
        %v1632 = vadd.f32 0.0, %v1631
        %v1633 = vpop.f32.mrf.mxu0
        %1634 = vmatprep.mubr.f32.mxu0 %v1480
        %1635 = vmatmul.mubr.f32.gmra.mxu0 %v1479
        %v1636 = vpop.f32.mrf.mxu0
        %v1637 = vadd.f32 0.0, %v1636
        %v1638 = vpop.f32.mrf.mxu0
        %1639 = vmatprep.mubr.f32.mxu0 %v1482
        %1640 = vmatmul.mubr.f32.gmra.mxu0 %v1481
        %v1641 = vpop.f32.mrf.mxu0
        %v1642 = vadd.f32 0.0, %v1641
        %v1643 = vpop.f32.mrf.mxu0
        %1644 = vmatprep.mubr.f32.mxu0 %v1484
        %1645 = vmatmul.mubr.f32.gmra.mxu0 %v1483
        %v1646 = vpop.f32.mrf.mxu0
        %v1647 = vadd.f32 0.0, %v1646
        %v1648 = vpop.f32.mrf.mxu0
        %1649 = vmatprep.mubr.f32.mxu0 %v1486
        %1650 = vmatmul.mubr.f32.gmra.mxu0 %v1485
        %v1651 = vpop.f32.mrf.mxu0
        %v1652 = vadd.f32 0.0, %v1651
        %v1653 = vpop.f32.mrf.mxu0
        %1654 = vmatprep.mubr.f32.mxu0 %v1488
        %1655 = vmatmul.mubr.f32.gmra.mxu0 %v1487
        %v1656 = vpop.f32.mrf.mxu0
        %v1657 = vadd.f32 0.0, %v1656
        %v1658 = vpop.f32.mrf.mxu0
        %1659 = vmatprep.mubr.f32.mxu0 %v1490
        %1660 = vmatmul.mubr.f32.gmra.mxu0 %v1489
        %v1661 = vpop.f32.mrf.mxu0
        %v1662 = vadd.f32 0.0, %v1661
        %v1663 = vpop.f32.mrf.mxu0
        %1664 = vmatprep.mubr.f32.mxu0 %v1492
        %1665 = vmatmul.mubr.f32.gmra.mxu0 %v1491
        %v1666 = vpop.f32.mrf.mxu0
        %v1667 = vadd.f32 0.0, %v1666
        %v1668 = vpop.f32.mrf.mxu0
        %1669 = vdwg.mxu0
        %1670 = vst [vmem:[%s137 + $0x80] sm:$0xff] %v1592
        %1671 = vst [vmem:[%s137 + $0x88] sm:$0xff] %v1597
        %1672 = vst [vmem:[%s137 + $0x90] sm:$0xff] %v1602
        %1673 = vst [vmem:[%s137 + $0x98] sm:$0xff] %v1607
        %1674 = vst [vmem:[%s137 + $0xa0] sm:$0xff] %v1612
        %1675 = vst [vmem:[%s137 + $0xa8] sm:$0xff] %v1617
        %1676 = vst [vmem:[%s137 + $0xb0] sm:$0xff] %v1622
        %1677 = vst [vmem:[%s137 + $0xb8] sm:$0xff] %v1627
        %1678 = vst [vmem:[%s137 + $0xc0] sm:$0xff] %v1632
        %1679 = vst [vmem:[%s137 + $0xc8] sm:$0xff] %v1637
        %1680 = vst [vmem:[%s137 + $0xd0] sm:$0xff] %v1642
        %1681 = vst [vmem:[%s137 + $0xd8] sm:$0xff] %v1647
        %1682 = vst [vmem:[%s137 + $0xe0] sm:$0xff] %v1652
        %1683 = vst [vmem:[%s137 + $0xe8] sm:$0xff] %v1657
        %1684 = vst [vmem:[%s137 + $0xf0] sm:$0xff] %v1662
        %1685 = vst [vmem:[%s137 + $0xf8] sm:$0xff] %v1667
        %v1686 = vld [vmem:[%s142 + $0x100] sm:$0xff]
        %v1687 = vld [vmem:[%s142 + $0x108] sm:$0xff]
        %v1688 = vld [vmem:[%s142 + $0x110] sm:$0xff]
        %v1689 = vld [vmem:[%s142 + $0x118] sm:$0xff]
        %v1690 = vld [vmem:[%s142 + $0x120] sm:$0xff]
        %v1691 = vld [vmem:[%s142 + $0x128] sm:$0xff]
        %v1692 = vld [vmem:[%s142 + $0x130] sm:$0xff]
        %v1693 = vld [vmem:[%s142 + $0x138] sm:$0xff]
        %v1694 = vld [vmem:[%s142 + $0x140] sm:$0xff]
        %v1695 = vld [vmem:[%s142 + $0x148] sm:$0xff]
        %v1696 = vld [vmem:[%s142 + $0x150] sm:$0xff]
        %v1697 = vld [vmem:[%s142 + $0x158] sm:$0xff]
        %v1698 = vld [vmem:[%s142 + $0x160] sm:$0xff]
        %v1699 = vld [vmem:[%s142 + $0x168] sm:$0xff]
        %v1700 = vld [vmem:[%s142 + $0x170] sm:$0xff]
        %v1701 = vld [vmem:[%s142 + $0x178] sm:$0xff]
        %vm1702 = vcmp.gt.s32.totalorder %v1686, 0
        %v1703 = vsel %vm1702, %v1686, 0
        %vm1704 = vcmp.gt.s32.totalorder %v1687, 0
        %v1705 = vsel %vm1704, %v1687, 0
        %vm1706 = vcmp.gt.s32.totalorder %v1688, 0
        %v1707 = vsel %vm1706, %v1688, 0
        %vm1708 = vcmp.gt.s32.totalorder %v1689, 0
        %v1709 = vsel %vm1708, %v1689, 0
        %vm1710 = vcmp.gt.s32.totalorder %v1690, 0
        %v1711 = vsel %vm1710, %v1690, 0
        %vm1712 = vcmp.gt.s32.totalorder %v1691, 0
        %v1713 = vsel %vm1712, %v1691, 0
        %vm1714 = vcmp.gt.s32.totalorder %v1692, 0
        %v1715 = vsel %vm1714, %v1692, 0
        %vm1716 = vcmp.gt.s32.totalorder %v1693, 0
        %v1717 = vsel %vm1716, %v1693, 0
        %vm1718 = vcmp.gt.s32.totalorder %v1694, 0
        %v1719 = vsel %vm1718, %v1694, 0
        %vm1720 = vcmp.gt.s32.totalorder %v1695, 0
        %v1721 = vsel %vm1720, %v1695, 0
        %vm1722 = vcmp.gt.s32.totalorder %v1696, 0
        %v1723 = vsel %vm1722, %v1696, 0
        %vm1724 = vcmp.gt.s32.totalorder %v1697, 0
        %v1725 = vsel %vm1724, %v1697, 0
        %vm1726 = vcmp.gt.s32.totalorder %v1698, 0
        %v1727 = vsel %vm1726, %v1698, 0
        %vm1728 = vcmp.gt.s32.totalorder %v1699, 0
        %v1729 = vsel %vm1728, %v1699, 0
        %vm1730 = vcmp.gt.s32.totalorder %v1700, 0
        %v1731 = vsel %vm1730, %v1700, 0
        %vm1732 = vcmp.gt.s32.totalorder %v1701, 0
        %v1733 = vsel %vm1732, %v1701, 0
        %vm1734 = vcmp.lt.s32.totalorder %v1703, 63
        %v1735 = vsel %vm1734, %v1703, 63
        %vm1736 = vcmp.lt.s32.totalorder %v1705, 63
        %v1737 = vsel %vm1736, %v1705, 63
        %vm1738 = vcmp.lt.s32.totalorder %v1707, 63
        %v1739 = vsel %vm1738, %v1707, 63
        %vm1740 = vcmp.lt.s32.totalorder %v1709, 63
        %v1741 = vsel %vm1740, %v1709, 63
        %vm1742 = vcmp.lt.s32.totalorder %v1711, 63
        %v1743 = vsel %vm1742, %v1711, 63
        %vm1744 = vcmp.lt.s32.totalorder %v1713, 63
        %v1745 = vsel %vm1744, %v1713, 63
        %vm1746 = vcmp.lt.s32.totalorder %v1715, 63
        %v1747 = vsel %vm1746, %v1715, 63
        %vm1748 = vcmp.lt.s32.totalorder %v1717, 63
        %v1749 = vsel %vm1748, %v1717, 63
        %vm1750 = vcmp.lt.s32.totalorder %v1719, 63
        %v1751 = vsel %vm1750, %v1719, 63
        %vm1752 = vcmp.lt.s32.totalorder %v1721, 63
        %v1753 = vsel %vm1752, %v1721, 63
        %vm1754 = vcmp.lt.s32.totalorder %v1723, 63
        %v1755 = vsel %vm1754, %v1723, 63
        %vm1756 = vcmp.lt.s32.totalorder %v1725, 63
        %v1757 = vsel %vm1756, %v1725, 63
        %vm1758 = vcmp.lt.s32.totalorder %v1727, 63
        %v1759 = vsel %vm1758, %v1727, 63
        %vm1760 = vcmp.lt.s32.totalorder %v1729, 63
        %v1761 = vsel %vm1760, %v1729, 63
        %vm1762 = vcmp.lt.s32.totalorder %v1731, 63
        %v1763 = vsel %vm1762, %v1731, 63
        %vm1764 = vcmp.lt.s32.totalorder %v1733, 63
        %v1765 = vsel %vm1764, %v1733, 63
        %1766 = vset.pattern.permute.xlu0 0
        %1767 = vperm.xlu0 %1766, %v1735
        %v1768 = vpop.permute.xlu0 %1767
        %1769 = vset.pattern.permute.xlu0 0
        %1770 = vperm.xlu0 %1769, %v1737
        %v1771 = vpop.permute.xlu0 %1770
        %1772 = vset.pattern.permute.xlu0 0
        %1773 = vperm.xlu0 %1772, %v1739
        %v1774 = vpop.permute.xlu0 %1773
        %1775 = vset.pattern.permute.xlu0 0
        %1776 = vperm.xlu0 %1775, %v1741
        %v1777 = vpop.permute.xlu0 %1776
        %1778 = vset.pattern.permute.xlu0 0
        %1779 = vperm.xlu0 %1778, %v1743
        %v1780 = vpop.permute.xlu0 %1779
        %1781 = vset.pattern.permute.xlu0 0
        %1782 = vperm.xlu0 %1781, %v1745
        %v1783 = vpop.permute.xlu0 %1782
        %1784 = vset.pattern.permute.xlu0 0
        %1785 = vperm.xlu0 %1784, %v1747
        %v1786 = vpop.permute.xlu0 %1785
        %1787 = vset.pattern.permute.xlu0 0
        %1788 = vperm.xlu0 %1787, %v1749
        %v1789 = vpop.permute.xlu0 %1788
        %1790 = vset.pattern.permute.xlu0 0
        %1791 = vperm.xlu0 %1790, %v1751
        %v1792 = vpop.permute.xlu0 %1791
        %1793 = vset.pattern.permute.xlu0 0
        %1794 = vperm.xlu0 %1793, %v1753
        %v1795 = vpop.permute.xlu0 %1794
        %1796 = vset.pattern.permute.xlu0 0
        %1797 = vperm.xlu0 %1796, %v1755
        %v1798 = vpop.permute.xlu0 %1797
        %1799 = vset.pattern.permute.xlu0 0
        %1800 = vperm.xlu0 %1799, %v1757
        %v1801 = vpop.permute.xlu0 %1800
        %1802 = vset.pattern.permute.xlu0 0
        %1803 = vperm.xlu0 %1802, %v1759
        %v1804 = vpop.permute.xlu0 %1803
        %1805 = vset.pattern.permute.xlu0 0
        %1806 = vperm.xlu0 %1805, %v1761
        %v1807 = vpop.permute.xlu0 %1806
        %1808 = vset.pattern.permute.xlu0 0
        %1809 = vperm.xlu0 %1808, %v1763
        %v1810 = vpop.permute.xlu0 %1809
        %1811 = vset.pattern.permute.xlu0 0
        %1812 = vperm.xlu0 %1811, %v1765
        %v1813 = vpop.permute.xlu0 %1812
        %vm1814 = vcmp.eq.s32.totalorder %v226, %v1768
        %vm1815 = vcmp.eq.s32.totalorder %v227, %v1768
        %vm1816 = vcmp.eq.s32.totalorder %v226, %v1771
        %vm1817 = vcmp.eq.s32.totalorder %v227, %v1771
        %vm1818 = vcmp.eq.s32.totalorder %v226, %v1774
        %vm1819 = vcmp.eq.s32.totalorder %v227, %v1774
        %vm1820 = vcmp.eq.s32.totalorder %v226, %v1777
        %vm1821 = vcmp.eq.s32.totalorder %v227, %v1777
        %vm1822 = vcmp.eq.s32.totalorder %v226, %v1780
        %vm1823 = vcmp.eq.s32.totalorder %v227, %v1780
        %vm1824 = vcmp.eq.s32.totalorder %v226, %v1783
        %vm1825 = vcmp.eq.s32.totalorder %v227, %v1783
        %vm1826 = vcmp.eq.s32.totalorder %v226, %v1786
        %vm1827 = vcmp.eq.s32.totalorder %v227, %v1786
        %vm1828 = vcmp.eq.s32.totalorder %v226, %v1789
        %vm1829 = vcmp.eq.s32.totalorder %v227, %v1789
        %vm1830 = vcmp.eq.s32.totalorder %v226, %v1792
        %vm1831 = vcmp.eq.s32.totalorder %v227, %v1792
        %vm1832 = vcmp.eq.s32.totalorder %v226, %v1795
        %vm1833 = vcmp.eq.s32.totalorder %v227, %v1795
        %vm1834 = vcmp.eq.s32.totalorder %v226, %v1798
        %vm1835 = vcmp.eq.s32.totalorder %v227, %v1798
        %vm1836 = vcmp.eq.s32.totalorder %v226, %v1801
        %vm1837 = vcmp.eq.s32.totalorder %v227, %v1801
        %vm1838 = vcmp.eq.s32.totalorder %v226, %v1804
        %vm1839 = vcmp.eq.s32.totalorder %v227, %v1804
        %vm1840 = vcmp.eq.s32.totalorder %v226, %v1807
        %vm1841 = vcmp.eq.s32.totalorder %v227, %v1807
        %vm1842 = vcmp.eq.s32.totalorder %v226, %v1810
        %vm1843 = vcmp.eq.s32.totalorder %v227, %v1810
        %vm1844 = vcmp.eq.s32.totalorder %v226, %v1813
        %vm1845 = vcmp.eq.s32.totalorder %v227, %v1813
        %v1846 = vadd.s32 %v1735, 64
        %v1847 = vadd.s32 %v1737, 64
        %v1848 = vadd.s32 %v1739, 64
        %v1849 = vadd.s32 %v1741, 64
        %v1850 = vadd.s32 %v1743, 64
        %v1851 = vadd.s32 %v1745, 64
        %v1852 = vadd.s32 %v1747, 64
        %v1853 = vadd.s32 %v1749, 64
        %v1854 = vadd.s32 %v1751, 64
        %v1855 = vadd.s32 %v1753, 64
        %v1856 = vadd.s32 %v1755, 64
        %v1857 = vadd.s32 %v1757, 64
        %v1858 = vadd.s32 %v1759, 64
        %v1859 = vadd.s32 %v1761, 64
        %v1860 = vadd.s32 %v1763, 64
        %v1861 = vadd.s32 %v1765, 64
        %1862 = vset.pattern.permute.xlu0 1
        %1863 = vperm.xlu0 %1862, %v1846
        %v1864 = vpop.permute.xlu0 %1863
        %1865 = vset.pattern.permute.xlu0 1
        %1866 = vperm.xlu0 %1865, %v1847
        %v1867 = vpop.permute.xlu0 %1866
        %1868 = vset.pattern.permute.xlu0 1
        %1869 = vperm.xlu0 %1868, %v1848
        %v1870 = vpop.permute.xlu0 %1869
        %1871 = vset.pattern.permute.xlu0 1
        %1872 = vperm.xlu0 %1871, %v1849
        %v1873 = vpop.permute.xlu0 %1872
        %1874 = vset.pattern.permute.xlu0 1
        %1875 = vperm.xlu0 %1874, %v1850
        %v1876 = vpop.permute.xlu0 %1875
        %1877 = vset.pattern.permute.xlu0 1
        %1878 = vperm.xlu0 %1877, %v1851
        %v1879 = vpop.permute.xlu0 %1878
        %1880 = vset.pattern.permute.xlu0 1
        %1881 = vperm.xlu0 %1880, %v1852
        %v1882 = vpop.permute.xlu0 %1881
        %1883 = vset.pattern.permute.xlu0 1
        %1884 = vperm.xlu0 %1883, %v1853
        %v1885 = vpop.permute.xlu0 %1884
        %1886 = vset.pattern.permute.xlu0 1
        %1887 = vperm.xlu0 %1886, %v1854
        %v1888 = vpop.permute.xlu0 %1887
        %1889 = vset.pattern.permute.xlu0 1
        %1890 = vperm.xlu0 %1889, %v1855
        %v1891 = vpop.permute.xlu0 %1890
        %1892 = vset.pattern.permute.xlu0 1
        %1893 = vperm.xlu0 %1892, %v1856
        %v1894 = vpop.permute.xlu0 %1893
        %1895 = vset.pattern.permute.xlu0 1
        %1896 = vperm.xlu0 %1895, %v1857
        %v1897 = vpop.permute.xlu0 %1896
        %1898 = vset.pattern.permute.xlu0 1
        %1899 = vperm.xlu0 %1898, %v1858
        %v1900 = vpop.permute.xlu0 %1899
        %1901 = vset.pattern.permute.xlu0 1
        %1902 = vperm.xlu0 %1901, %v1859
        %v1903 = vpop.permute.xlu0 %1902
        %1904 = vset.pattern.permute.xlu0 1
        %1905 = vperm.xlu0 %1904, %v1860
        %v1906 = vpop.permute.xlu0 %1905
        %1907 = vset.pattern.permute.xlu0 1
        %1908 = vperm.xlu0 %1907, %v1861
        %v1909 = vpop.permute.xlu0 %1908
        %vm1910 = vcmp.eq.s32.totalorder %v226, %v1864
        %vm1911 = vcmp.eq.s32.totalorder %v227, %v1864
        %vm1912 = vcmp.eq.s32.totalorder %v226, %v1867
        %vm1913 = vcmp.eq.s32.totalorder %v227, %v1867
        %vm1914 = vcmp.eq.s32.totalorder %v226, %v1870
        %vm1915 = vcmp.eq.s32.totalorder %v227, %v1870
        %vm1916 = vcmp.eq.s32.totalorder %v226, %v1873
        %vm1917 = vcmp.eq.s32.totalorder %v227, %v1873
        %vm1918 = vcmp.eq.s32.totalorder %v226, %v1876
        %vm1919 = vcmp.eq.s32.totalorder %v227, %v1876
        %vm1920 = vcmp.eq.s32.totalorder %v226, %v1879
        %vm1921 = vcmp.eq.s32.totalorder %v227, %v1879
        %vm1922 = vcmp.eq.s32.totalorder %v226, %v1882
        %vm1923 = vcmp.eq.s32.totalorder %v227, %v1882
        %vm1924 = vcmp.eq.s32.totalorder %v226, %v1885
        %vm1925 = vcmp.eq.s32.totalorder %v227, %v1885
        %vm1926 = vcmp.eq.s32.totalorder %v226, %v1888
        %vm1927 = vcmp.eq.s32.totalorder %v227, %v1888
        %vm1928 = vcmp.eq.s32.totalorder %v226, %v1891
        %vm1929 = vcmp.eq.s32.totalorder %v227, %v1891
        %vm1930 = vcmp.eq.s32.totalorder %v226, %v1894
        %vm1931 = vcmp.eq.s32.totalorder %v227, %v1894
        %vm1932 = vcmp.eq.s32.totalorder %v226, %v1897
        %vm1933 = vcmp.eq.s32.totalorder %v227, %v1897
        %vm1934 = vcmp.eq.s32.totalorder %v226, %v1900
        %vm1935 = vcmp.eq.s32.totalorder %v227, %v1900
        %vm1936 = vcmp.eq.s32.totalorder %v226, %v1903
        %vm1937 = vcmp.eq.s32.totalorder %v227, %v1903
        %vm1938 = vcmp.eq.s32.totalorder %v226, %v1906
        %vm1939 = vcmp.eq.s32.totalorder %v227, %v1906
        %vm1940 = vcmp.eq.s32.totalorder %v226, %v1909
        %vm1941 = vcmp.eq.s32.totalorder %v227, %v1909
        %vm1942 = vmor %vm1814, %vm1910
        %vm1943 = vmor %vm1815, %vm1911
        %vm1944 = vmor %vm1816, %vm1912
        %vm1945 = vmor %vm1817, %vm1913
        %vm1946 = vmor %vm1818, %vm1914
        %vm1947 = vmor %vm1819, %vm1915
        %vm1948 = vmor %vm1820, %vm1916
        %vm1949 = vmor %vm1821, %vm1917
        %vm1950 = vmor %vm1822, %vm1918
        %vm1951 = vmor %vm1823, %vm1919
        %vm1952 = vmor %vm1824, %vm1920
        %vm1953 = vmor %vm1825, %vm1921
        %vm1954 = vmor %vm1826, %vm1922
        %vm1955 = vmor %vm1827, %vm1923
        %vm1956 = vmor %vm1828, %vm1924
        %vm1957 = vmor %vm1829, %vm1925
        %vm1958 = vmor %vm1830, %vm1926
        %vm1959 = vmor %vm1831, %vm1927
        %vm1960 = vmor %vm1832, %vm1928
        %vm1961 = vmor %vm1833, %vm1929
        %vm1962 = vmor %vm1834, %vm1930
        %vm1963 = vmor %vm1835, %vm1931
        %vm1964 = vmor %vm1836, %vm1932
        %vm1965 = vmor %vm1837, %vm1933
        %vm1966 = vmor %vm1838, %vm1934
        %vm1967 = vmor %vm1839, %vm1935
        %vm1968 = vmor %vm1840, %vm1936
        %vm1969 = vmor %vm1841, %vm1937
        %vm1970 = vmor %vm1842, %vm1938
        %vm1971 = vmor %vm1843, %vm1939
        %vm1972 = vmor %vm1844, %vm1940
        %vm1973 = vmor %vm1845, %vm1941
        %v1974 = vadd.s32 %v1735, 128
        %v1975 = vadd.s32 %v1737, 128
        %v1976 = vadd.s32 %v1739, 128
        %v1977 = vadd.s32 %v1741, 128
        %v1978 = vadd.s32 %v1743, 128
        %v1979 = vadd.s32 %v1745, 128
        %v1980 = vadd.s32 %v1747, 128
        %v1981 = vadd.s32 %v1749, 128
        %v1982 = vadd.s32 %v1751, 128
        %v1983 = vadd.s32 %v1753, 128
        %v1984 = vadd.s32 %v1755, 128
        %v1985 = vadd.s32 %v1757, 128
        %v1986 = vadd.s32 %v1759, 128
        %v1987 = vadd.s32 %v1761, 128
        %v1988 = vadd.s32 %v1763, 128
        %v1989 = vadd.s32 %v1765, 128
        %1990 = vset.pattern.permute.xlu0 2
        %1991 = vperm.xlu0 %1990, %v1974
        %v1992 = vpop.permute.xlu0 %1991
        %1993 = vset.pattern.permute.xlu0 2
        %1994 = vperm.xlu0 %1993, %v1975
        %v1995 = vpop.permute.xlu0 %1994
        %1996 = vset.pattern.permute.xlu0 2
        %1997 = vperm.xlu0 %1996, %v1976
        %v1998 = vpop.permute.xlu0 %1997
        %1999 = vset.pattern.permute.xlu0 2
        %2000 = vperm.xlu0 %1999, %v1977
        %v2001 = vpop.permute.xlu0 %2000
        %2002 = vset.pattern.permute.xlu0 2
        %2003 = vperm.xlu0 %2002, %v1978
        %v2004 = vpop.permute.xlu0 %2003
        %2005 = vset.pattern.permute.xlu0 2
        %2006 = vperm.xlu0 %2005, %v1979
        %v2007 = vpop.permute.xlu0 %2006
        %2008 = vset.pattern.permute.xlu0 2
        %2009 = vperm.xlu0 %2008, %v1980
        %v2010 = vpop.permute.xlu0 %2009
        %2011 = vset.pattern.permute.xlu0 2
        %2012 = vperm.xlu0 %2011, %v1981
        %v2013 = vpop.permute.xlu0 %2012
        %2014 = vset.pattern.permute.xlu0 2
        %2015 = vperm.xlu0 %2014, %v1982
        %v2016 = vpop.permute.xlu0 %2015
        %2017 = vset.pattern.permute.xlu0 2
        %2018 = vperm.xlu0 %2017, %v1983
        %v2019 = vpop.permute.xlu0 %2018
        %2020 = vset.pattern.permute.xlu0 2
        %2021 = vperm.xlu0 %2020, %v1984
        %v2022 = vpop.permute.xlu0 %2021
        %2023 = vset.pattern.permute.xlu0 2
        %2024 = vperm.xlu0 %2023, %v1985
        %v2025 = vpop.permute.xlu0 %2024
        %2026 = vset.pattern.permute.xlu0 2
        %2027 = vperm.xlu0 %2026, %v1986
        %v2028 = vpop.permute.xlu0 %2027
        %2029 = vset.pattern.permute.xlu0 2
        %2030 = vperm.xlu0 %2029, %v1987
        %v2031 = vpop.permute.xlu0 %2030
        %2032 = vset.pattern.permute.xlu0 2
        %2033 = vperm.xlu0 %2032, %v1988
        %v2034 = vpop.permute.xlu0 %2033
        %2035 = vset.pattern.permute.xlu0 2
        %2036 = vperm.xlu0 %2035, %v1989
        %v2037 = vpop.permute.xlu0 %2036
        %vm2038 = vcmp.eq.s32.totalorder %v226, %v1992
        %vm2039 = vcmp.eq.s32.totalorder %v227, %v1992
        %vm2040 = vcmp.eq.s32.totalorder %v226, %v1995
        %vm2041 = vcmp.eq.s32.totalorder %v227, %v1995
        %vm2042 = vcmp.eq.s32.totalorder %v226, %v1998
        %vm2043 = vcmp.eq.s32.totalorder %v227, %v1998
        %vm2044 = vcmp.eq.s32.totalorder %v226, %v2001
        %vm2045 = vcmp.eq.s32.totalorder %v227, %v2001
        %vm2046 = vcmp.eq.s32.totalorder %v226, %v2004
        %vm2047 = vcmp.eq.s32.totalorder %v227, %v2004
        %vm2048 = vcmp.eq.s32.totalorder %v226, %v2007
        %vm2049 = vcmp.eq.s32.totalorder %v227, %v2007
        %vm2050 = vcmp.eq.s32.totalorder %v226, %v2010
        %vm2051 = vcmp.eq.s32.totalorder %v227, %v2010
        %vm2052 = vcmp.eq.s32.totalorder %v226, %v2013
        %vm2053 = vcmp.eq.s32.totalorder %v227, %v2013
        %vm2054 = vcmp.eq.s32.totalorder %v226, %v2016
        %vm2055 = vcmp.eq.s32.totalorder %v227, %v2016
        %vm2056 = vcmp.eq.s32.totalorder %v226, %v2019
        %vm2057 = vcmp.eq.s32.totalorder %v227, %v2019
        %vm2058 = vcmp.eq.s32.totalorder %v226, %v2022
        %vm2059 = vcmp.eq.s32.totalorder %v227, %v2022
        %vm2060 = vcmp.eq.s32.totalorder %v226, %v2025
        %vm2061 = vcmp.eq.s32.totalorder %v227, %v2025
        %vm2062 = vcmp.eq.s32.totalorder %v226, %v2028
        %vm2063 = vcmp.eq.s32.totalorder %v227, %v2028
        %vm2064 = vcmp.eq.s32.totalorder %v226, %v2031
        %vm2065 = vcmp.eq.s32.totalorder %v227, %v2031
        %vm2066 = vcmp.eq.s32.totalorder %v226, %v2034
        %vm2067 = vcmp.eq.s32.totalorder %v227, %v2034
        %vm2068 = vcmp.eq.s32.totalorder %v226, %v2037
        %vm2069 = vcmp.eq.s32.totalorder %v227, %v2037
        %vm2070 = vmor %vm1942, %vm2038
        %vm2071 = vmor %vm1943, %vm2039
        %vm2072 = vmor %vm1944, %vm2040
        %vm2073 = vmor %vm1945, %vm2041
        %vm2074 = vmor %vm1946, %vm2042
        %vm2075 = vmor %vm1947, %vm2043
        %vm2076 = vmor %vm1948, %vm2044
        %vm2077 = vmor %vm1949, %vm2045
        %vm2078 = vmor %vm1950, %vm2046
        %vm2079 = vmor %vm1951, %vm2047
        %vm2080 = vmor %vm1952, %vm2048
        %vm2081 = vmor %vm1953, %vm2049
        %vm2082 = vmor %vm1954, %vm2050
        %vm2083 = vmor %vm1955, %vm2051
        %vm2084 = vmor %vm1956, %vm2052
        %vm2085 = vmor %vm1957, %vm2053
        %vm2086 = vmor %vm1958, %vm2054
        %vm2087 = vmor %vm1959, %vm2055
        %vm2088 = vmor %vm1960, %vm2056
        %vm2089 = vmor %vm1961, %vm2057
        %vm2090 = vmor %vm1962, %vm2058
        %vm2091 = vmor %vm1963, %vm2059
        %vm2092 = vmor %vm1964, %vm2060
        %vm2093 = vmor %vm1965, %vm2061
        %vm2094 = vmor %vm1966, %vm2062
        %vm2095 = vmor %vm1967, %vm2063
        %vm2096 = vmor %vm1968, %vm2064
        %vm2097 = vmor %vm1969, %vm2065
        %vm2098 = vmor %vm1970, %vm2066
        %vm2099 = vmor %vm1971, %vm2067
        %vm2100 = vmor %vm1972, %vm2068
        %vm2101 = vmor %vm1973, %vm2069
        %v2102 = vadd.s32 %v1735, 192
        %v2103 = vadd.s32 %v1737, 192
        %v2104 = vadd.s32 %v1739, 192
        %v2105 = vadd.s32 %v1741, 192
        %v2106 = vadd.s32 %v1743, 192
        %v2107 = vadd.s32 %v1745, 192
        %v2108 = vadd.s32 %v1747, 192
        %v2109 = vadd.s32 %v1749, 192
        %v2110 = vadd.s32 %v1751, 192
        %v2111 = vadd.s32 %v1753, 192
        %v2112 = vadd.s32 %v1755, 192
        %v2113 = vadd.s32 %v1757, 192
        %v2114 = vadd.s32 %v1759, 192
        %v2115 = vadd.s32 %v1761, 192
        %v2116 = vadd.s32 %v1763, 192
        %v2117 = vadd.s32 %v1765, 192
        %2118 = vset.pattern.permute.xlu0 3
        %2119 = vperm.xlu0 %2118, %v2102
        %v2120 = vpop.permute.xlu0 %2119
        %2121 = vset.pattern.permute.xlu0 3
        %2122 = vperm.xlu0 %2121, %v2103
        %v2123 = vpop.permute.xlu0 %2122
        %2124 = vset.pattern.permute.xlu0 3
        %2125 = vperm.xlu0 %2124, %v2104
        %v2126 = vpop.permute.xlu0 %2125
        %2127 = vset.pattern.permute.xlu0 3
        %2128 = vperm.xlu0 %2127, %v2105
        %v2129 = vpop.permute.xlu0 %2128
        %2130 = vset.pattern.permute.xlu0 3
        %2131 = vperm.xlu0 %2130, %v2106
        %v2132 = vpop.permute.xlu0 %2131
        %2133 = vset.pattern.permute.xlu0 3
        %2134 = vperm.xlu0 %2133, %v2107
        %v2135 = vpop.permute.xlu0 %2134
        %2136 = vset.pattern.permute.xlu0 3
        %2137 = vperm.xlu0 %2136, %v2108
        %v2138 = vpop.permute.xlu0 %2137
        %2139 = vset.pattern.permute.xlu0 3
        %2140 = vperm.xlu0 %2139, %v2109
        %v2141 = vpop.permute.xlu0 %2140
        %2142 = vset.pattern.permute.xlu0 3
        %2143 = vperm.xlu0 %2142, %v2110
        %v2144 = vpop.permute.xlu0 %2143
        %2145 = vset.pattern.permute.xlu0 3
        %2146 = vperm.xlu0 %2145, %v2111
        %v2147 = vpop.permute.xlu0 %2146
        %2148 = vset.pattern.permute.xlu0 3
        %2149 = vperm.xlu0 %2148, %v2112
        %v2150 = vpop.permute.xlu0 %2149
        %2151 = vset.pattern.permute.xlu0 3
        %2152 = vperm.xlu0 %2151, %v2113
        %v2153 = vpop.permute.xlu0 %2152
        %2154 = vset.pattern.permute.xlu0 3
        %2155 = vperm.xlu0 %2154, %v2114
        %v2156 = vpop.permute.xlu0 %2155
        %2157 = vset.pattern.permute.xlu0 3
        %2158 = vperm.xlu0 %2157, %v2115
        %v2159 = vpop.permute.xlu0 %2158
        %2160 = vset.pattern.permute.xlu0 3
        %2161 = vperm.xlu0 %2160, %v2116
        %v2162 = vpop.permute.xlu0 %2161
        %2163 = vset.pattern.permute.xlu0 3
        %2164 = vperm.xlu0 %2163, %v2117
        %v2165 = vpop.permute.xlu0 %2164
        %vm2166 = vcmp.eq.s32.totalorder %v226, %v2120
        %vm2167 = vcmp.eq.s32.totalorder %v227, %v2120
        %vm2168 = vcmp.eq.s32.totalorder %v226, %v2123
        %vm2169 = vcmp.eq.s32.totalorder %v227, %v2123
        %vm2170 = vcmp.eq.s32.totalorder %v226, %v2126
        %vm2171 = vcmp.eq.s32.totalorder %v227, %v2126
        %vm2172 = vcmp.eq.s32.totalorder %v226, %v2129
        %vm2173 = vcmp.eq.s32.totalorder %v227, %v2129
        %vm2174 = vcmp.eq.s32.totalorder %v226, %v2132
        %vm2175 = vcmp.eq.s32.totalorder %v227, %v2132
        %vm2176 = vcmp.eq.s32.totalorder %v226, %v2135
        %vm2177 = vcmp.eq.s32.totalorder %v227, %v2135
        %vm2178 = vcmp.eq.s32.totalorder %v226, %v2138
        %vm2179 = vcmp.eq.s32.totalorder %v227, %v2138
        %vm2180 = vcmp.eq.s32.totalorder %v226, %v2141
        %vm2181 = vcmp.eq.s32.totalorder %v227, %v2141
        %vm2182 = vcmp.eq.s32.totalorder %v226, %v2144
        %vm2183 = vcmp.eq.s32.totalorder %v227, %v2144
        %vm2184 = vcmp.eq.s32.totalorder %v226, %v2147
        %vm2185 = vcmp.eq.s32.totalorder %v227, %v2147
        %vm2186 = vcmp.eq.s32.totalorder %v226, %v2150
        %vm2187 = vcmp.eq.s32.totalorder %v227, %v2150
        %vm2188 = vcmp.eq.s32.totalorder %v226, %v2153
        %vm2189 = vcmp.eq.s32.totalorder %v227, %v2153
        %vm2190 = vcmp.eq.s32.totalorder %v226, %v2156
        %vm2191 = vcmp.eq.s32.totalorder %v227, %v2156
        %vm2192 = vcmp.eq.s32.totalorder %v226, %v2159
        %vm2193 = vcmp.eq.s32.totalorder %v227, %v2159
        %vm2194 = vcmp.eq.s32.totalorder %v226, %v2162
        %vm2195 = vcmp.eq.s32.totalorder %v227, %v2162
        %vm2196 = vcmp.eq.s32.totalorder %v226, %v2165
        %vm2197 = vcmp.eq.s32.totalorder %v227, %v2165
        %vm2198 = vmor %vm2070, %vm2166
        %vm2199 = vmor %vm2071, %vm2167
        %vm2200 = vmor %vm2072, %vm2168
        %vm2201 = vmor %vm2073, %vm2169
        %vm2202 = vmor %vm2074, %vm2170
        %vm2203 = vmor %vm2075, %vm2171
        %vm2204 = vmor %vm2076, %vm2172
        %vm2205 = vmor %vm2077, %vm2173
        %vm2206 = vmor %vm2078, %vm2174
        %vm2207 = vmor %vm2079, %vm2175
        %vm2208 = vmor %vm2080, %vm2176
        %vm2209 = vmor %vm2081, %vm2177
        %vm2210 = vmor %vm2082, %vm2178
        %vm2211 = vmor %vm2083, %vm2179
        %vm2212 = vmor %vm2084, %vm2180
        %vm2213 = vmor %vm2085, %vm2181
        %vm2214 = vmor %vm2086, %vm2182
        %vm2215 = vmor %vm2087, %vm2183
        %vm2216 = vmor %vm2088, %vm2184
        %vm2217 = vmor %vm2089, %vm2185
        %vm2218 = vmor %vm2090, %vm2186
        %vm2219 = vmor %vm2091, %vm2187
        %vm2220 = vmor %vm2092, %vm2188
        %vm2221 = vmor %vm2093, %vm2189
        %vm2222 = vmor %vm2094, %vm2190
        %vm2223 = vmor %vm2095, %vm2191
        %vm2224 = vmor %vm2096, %vm2192
        %vm2225 = vmor %vm2097, %vm2193
        %vm2226 = vmor %vm2098, %vm2194
        %vm2227 = vmor %vm2099, %vm2195
        %vm2228 = vmor %vm2100, %vm2196
        %vm2229 = vmor %vm2101, %vm2197
        %v2230 = vsel %vm2198, 1.0, 0.0
        %v2231 = vsel %vm2199, 1.0, 0.0
        %v2232 = vsel %vm2200, 1.0, 0.0
        %v2233 = vsel %vm2201, 1.0, 0.0
        %v2234 = vsel %vm2202, 1.0, 0.0
        %v2235 = vsel %vm2203, 1.0, 0.0
        %v2236 = vsel %vm2204, 1.0, 0.0
        %v2237 = vsel %vm2205, 1.0, 0.0
        %v2238 = vsel %vm2206, 1.0, 0.0
        %v2239 = vsel %vm2207, 1.0, 0.0
        %v2240 = vsel %vm2208, 1.0, 0.0
        %v2241 = vsel %vm2209, 1.0, 0.0
        %v2242 = vsel %vm2210, 1.0, 0.0
        %v2243 = vsel %vm2211, 1.0, 0.0
        %v2244 = vsel %vm2212, 1.0, 0.0
        %v2245 = vsel %vm2213, 1.0, 0.0
        %v2246 = vsel %vm2214, 1.0, 0.0
        %v2247 = vsel %vm2215, 1.0, 0.0
        %v2248 = vsel %vm2216, 1.0, 0.0
        %v2249 = vsel %vm2217, 1.0, 0.0
        %v2250 = vsel %vm2218, 1.0, 0.0
        %v2251 = vsel %vm2219, 1.0, 0.0
        %v2252 = vsel %vm2220, 1.0, 0.0
        %v2253 = vsel %vm2221, 1.0, 0.0
        %v2254 = vsel %vm2222, 1.0, 0.0
        %v2255 = vsel %vm2223, 1.0, 0.0
        %v2256 = vsel %vm2224, 1.0, 0.0
        %v2257 = vsel %vm2225, 1.0, 0.0
        %v2258 = vsel %vm2226, 1.0, 0.0
        %v2259 = vsel %vm2227, 1.0, 0.0
        %v2260 = vsel %vm2228, 1.0, 0.0
        %v2261 = vsel %vm2229, 1.0, 0.0
        %v2262 = vld [vmem:[%s1] sm:$0xff]
        %v2263 = vld [vmem:[%s1 + $0x8] sm:$0xff]
        %v2264 = vld [vmem:[%s1 + $0x10] sm:$0xff]
        %v2265 = vld [vmem:[%s1 + $0x18] sm:$0xff]
        %v2266 = vld [vmem:[%s1 + $0x20] sm:$0xff]
        %v2267 = vld [vmem:[%s1 + $0x28] sm:$0xff]
        %v2268 = vld [vmem:[%s1 + $0x30] sm:$0xff]
        %v2269 = vld [vmem:[%s1 + $0x38] sm:$0xff]
        %v2270 = vld [vmem:[%s1 + $0x40] sm:$0xff]
        %v2271 = vld [vmem:[%s1 + $0x48] sm:$0xff]
        %v2272 = vld [vmem:[%s1 + $0x50] sm:$0xff]
        %v2273 = vld [vmem:[%s1 + $0x58] sm:$0xff]
        %v2274 = vld [vmem:[%s1 + $0x60] sm:$0xff]
        %v2275 = vld [vmem:[%s1 + $0x68] sm:$0xff]
        %v2276 = vld [vmem:[%s1 + $0x70] sm:$0xff]
        %v2277 = vld [vmem:[%s1 + $0x78] sm:$0xff]
        %v2278 = vld [vmem:[%s1 + $0x80] sm:$0xff]
        %v2279 = vld [vmem:[%s1 + $0x88] sm:$0xff]
        %v2280 = vld [vmem:[%s1 + $0x90] sm:$0xff]
        %v2281 = vld [vmem:[%s1 + $0x98] sm:$0xff]
        %v2282 = vld [vmem:[%s1 + $0xa0] sm:$0xff]
        %v2283 = vld [vmem:[%s1 + $0xa8] sm:$0xff]
        %v2284 = vld [vmem:[%s1 + $0xb0] sm:$0xff]
        %v2285 = vld [vmem:[%s1 + $0xb8] sm:$0xff]
        %v2286 = vld [vmem:[%s1 + $0xc0] sm:$0xff]
        %v2287 = vld [vmem:[%s1 + $0xc8] sm:$0xff]
        %v2288 = vld [vmem:[%s1 + $0xd0] sm:$0xff]
        %v2289 = vld [vmem:[%s1 + $0xd8] sm:$0xff]
        %v2290 = vld [vmem:[%s1 + $0xe0] sm:$0xff]
        %v2291 = vld [vmem:[%s1 + $0xe8] sm:$0xff]
        %v2292 = vld [vmem:[%s1 + $0xf0] sm:$0xff]
        %v2293 = vld [vmem:[%s1 + $0xf8] sm:$0xff]
        %2294 = vmatprep.subr.mxu0 0.0
        %2295 = vmatpush1.msra.mxu0 %v2277
        %2296 = vmatprep.subr.mxu0 0.0
        %2297 = vmatpush1.msra.mxu0 %v2276
        %2298 = vmatprep.subr.mxu0 0.0
        %2299 = vmatpush1.msra.mxu0 %v2275
        %2300 = vmatprep.subr.mxu0 0.0
        %2301 = vmatpush1.msra.mxu0 %v2274
        %2302 = vmatprep.subr.mxu0 0.0
        %2303 = vmatpush1.msra.mxu0 %v2273
        %2304 = vmatprep.subr.mxu0 0.0
        %2305 = vmatpush1.msra.mxu0 %v2272
        %2306 = vmatprep.subr.mxu0 0.0
        %2307 = vmatpush1.msra.mxu0 %v2271
        %2308 = vmatprep.subr.mxu0 0.0
        %2309 = vmatpush1.msra.mxu0 %v2270
        %2310 = vmatprep.subr.mxu0 0.0
        %2311 = vmatpush1.msra.mxu0 %v2269
        %2312 = vmatprep.subr.mxu0 0.0
        %2313 = vmatpush1.msra.mxu0 %v2268
        %2314 = vmatprep.subr.mxu0 0.0
        %2315 = vmatpush1.msra.mxu0 %v2267
        %2316 = vmatprep.subr.mxu0 0.0
        %2317 = vmatpush1.msra.mxu0 %v2266
        %2318 = vmatprep.subr.mxu0 0.0
        %2319 = vmatpush1.msra.mxu0 %v2265
        %2320 = vmatprep.subr.mxu0 0.0
        %2321 = vmatpush1.msra.mxu0 %v2264
        %2322 = vmatprep.subr.mxu0 0.0
        %2323 = vmatpush1.msra.mxu0 %v2263
        %2324 = vmatprep.subr.mxu0 0.0
        %2325 = vmatpush1.msra.mxu0 %v2262
        %2326 = vmatprep.subr.mxu0 0.0
        %2327 = vmatpush2.msra.mxu0 %v2293
        %2328 = vmatprep.subr.mxu0 0.0
        %2329 = vmatpush2.msra.mxu0 %v2292
        %2330 = vmatprep.subr.mxu0 0.0
        %2331 = vmatpush2.msra.mxu0 %v2291
        %2332 = vmatprep.subr.mxu0 0.0
        %2333 = vmatpush2.msra.mxu0 %v2290
        %2334 = vmatprep.subr.mxu0 0.0
        %2335 = vmatpush2.msra.mxu0 %v2289
        %2336 = vmatprep.subr.mxu0 0.0
        %2337 = vmatpush2.msra.mxu0 %v2288
        %2338 = vmatprep.subr.mxu0 0.0
        %2339 = vmatpush2.msra.mxu0 %v2287
        %2340 = vmatprep.subr.mxu0 0.0
        %2341 = vmatpush2.msra.mxu0 %v2286
        %2342 = vmatprep.subr.mxu0 0.0
        %2343 = vmatpush2.msra.mxu0 %v2285
        %2344 = vmatprep.subr.mxu0 0.0
        %2345 = vmatpush2.msra.mxu0 %v2284
        %2346 = vmatprep.subr.mxu0 0.0
        %2347 = vmatpush2.msra.mxu0 %v2283
        %2348 = vmatprep.subr.mxu0 0.0
        %2349 = vmatpush2.msra.mxu0 %v2282
        %2350 = vmatprep.subr.mxu0 0.0
        %2351 = vmatpush2.msra.mxu0 %v2281
        %2352 = vmatprep.subr.mxu0 0.0
        %2353 = vmatpush2.msra.mxu0 %v2280
        %2354 = vmatprep.subr.mxu0 0.0
        %2355 = vmatpush2.msra.mxu0 %v2279
        %2356 = vmatprep.subr.mxu0 0.0
        %2357 = vmatpush2.msra.mxu0 %v2278
        %2358 = vmatprep.mubr.f32.mxu0 %v2231
        %2359 = vmatmul.mubr.f32.gmra.mxu0 %v2230
        %v2360 = vpop.f32.mrf.mxu0
        %v2361 = vadd.f32 0.0, %v2360
        %v2362 = vpop.f32.mrf.mxu0
        %2363 = vmatprep.mubr.f32.mxu0 %v2233
        %2364 = vmatmul.mubr.f32.gmra.mxu0 %v2232
        %v2365 = vpop.f32.mrf.mxu0
        %v2366 = vadd.f32 0.0, %v2365
        %v2367 = vpop.f32.mrf.mxu0
        %2368 = vmatprep.mubr.f32.mxu0 %v2235
        %2369 = vmatmul.mubr.f32.gmra.mxu0 %v2234
        %v2370 = vpop.f32.mrf.mxu0
        %v2371 = vadd.f32 0.0, %v2370
        %v2372 = vpop.f32.mrf.mxu0
        %2373 = vmatprep.mubr.f32.mxu0 %v2237
        %2374 = vmatmul.mubr.f32.gmra.mxu0 %v2236
        %v2375 = vpop.f32.mrf.mxu0
        %v2376 = vadd.f32 0.0, %v2375
        %v2377 = vpop.f32.mrf.mxu0
        %2378 = vmatprep.mubr.f32.mxu0 %v2239
        %2379 = vmatmul.mubr.f32.gmra.mxu0 %v2238
        %v2380 = vpop.f32.mrf.mxu0
        %v2381 = vadd.f32 0.0, %v2380
        %v2382 = vpop.f32.mrf.mxu0
        %2383 = vmatprep.mubr.f32.mxu0 %v2241
        %2384 = vmatmul.mubr.f32.gmra.mxu0 %v2240
        %v2385 = vpop.f32.mrf.mxu0
        %v2386 = vadd.f32 0.0, %v2385
        %v2387 = vpop.f32.mrf.mxu0
        %2388 = vmatprep.mubr.f32.mxu0 %v2243
        %2389 = vmatmul.mubr.f32.gmra.mxu0 %v2242
        %v2390 = vpop.f32.mrf.mxu0
        %v2391 = vadd.f32 0.0, %v2390
        %v2392 = vpop.f32.mrf.mxu0
        %2393 = vmatprep.mubr.f32.mxu0 %v2245
        %2394 = vmatmul.mubr.f32.gmra.mxu0 %v2244
        %v2395 = vpop.f32.mrf.mxu0
        %v2396 = vadd.f32 0.0, %v2395
        %v2397 = vpop.f32.mrf.mxu0
        %2398 = vmatprep.mubr.f32.mxu0 %v2247
        %2399 = vmatmul.mubr.f32.gmra.mxu0 %v2246
        %v2400 = vpop.f32.mrf.mxu0
        %v2401 = vadd.f32 0.0, %v2400
        %v2402 = vpop.f32.mrf.mxu0
        %2403 = vmatprep.mubr.f32.mxu0 %v2249
        %2404 = vmatmul.mubr.f32.gmra.mxu0 %v2248
        %v2405 = vpop.f32.mrf.mxu0
        %v2406 = vadd.f32 0.0, %v2405
        %v2407 = vpop.f32.mrf.mxu0
        %2408 = vmatprep.mubr.f32.mxu0 %v2251
        %2409 = vmatmul.mubr.f32.gmra.mxu0 %v2250
        %v2410 = vpop.f32.mrf.mxu0
        %v2411 = vadd.f32 0.0, %v2410
        %v2412 = vpop.f32.mrf.mxu0
        %2413 = vmatprep.mubr.f32.mxu0 %v2253
        %2414 = vmatmul.mubr.f32.gmra.mxu0 %v2252
        %v2415 = vpop.f32.mrf.mxu0
        %v2416 = vadd.f32 0.0, %v2415
        %v2417 = vpop.f32.mrf.mxu0
        %2418 = vmatprep.mubr.f32.mxu0 %v2255
        %2419 = vmatmul.mubr.f32.gmra.mxu0 %v2254
        %v2420 = vpop.f32.mrf.mxu0
        %v2421 = vadd.f32 0.0, %v2420
        %v2422 = vpop.f32.mrf.mxu0
        %2423 = vmatprep.mubr.f32.mxu0 %v2257
        %2424 = vmatmul.mubr.f32.gmra.mxu0 %v2256
        %v2425 = vpop.f32.mrf.mxu0
        %v2426 = vadd.f32 0.0, %v2425
        %v2427 = vpop.f32.mrf.mxu0
        %2428 = vmatprep.mubr.f32.mxu0 %v2259
        %2429 = vmatmul.mubr.f32.gmra.mxu0 %v2258
        %v2430 = vpop.f32.mrf.mxu0
        %v2431 = vadd.f32 0.0, %v2430
        %v2432 = vpop.f32.mrf.mxu0
        %2433 = vmatprep.mubr.f32.mxu0 %v2261
        %2434 = vmatmul.mubr.f32.gmra.mxu0 %v2260
        %v2435 = vpop.f32.mrf.mxu0
        %v2436 = vadd.f32 0.0, %v2435
        %v2437 = vpop.f32.mrf.mxu0
        %2438 = vdwg.mxu0
        %2439 = vst [vmem:[%s137 + $0x100] sm:$0xff] %v2361
        %2440 = vst [vmem:[%s137 + $0x108] sm:$0xff] %v2366
        %2441 = vst [vmem:[%s137 + $0x110] sm:$0xff] %v2371
        %2442 = vst [vmem:[%s137 + $0x118] sm:$0xff] %v2376
        %2443 = vst [vmem:[%s137 + $0x120] sm:$0xff] %v2381
        %2444 = vst [vmem:[%s137 + $0x128] sm:$0xff] %v2386
        %2445 = vst [vmem:[%s137 + $0x130] sm:$0xff] %v2391
        %2446 = vst [vmem:[%s137 + $0x138] sm:$0xff] %v2396
        %2447 = vst [vmem:[%s137 + $0x140] sm:$0xff] %v2401
        %2448 = vst [vmem:[%s137 + $0x148] sm:$0xff] %v2406
        %2449 = vst [vmem:[%s137 + $0x150] sm:$0xff] %v2411
        %2450 = vst [vmem:[%s137 + $0x158] sm:$0xff] %v2416
        %2451 = vst [vmem:[%s137 + $0x160] sm:$0xff] %v2421
        %2452 = vst [vmem:[%s137 + $0x168] sm:$0xff] %v2426
        %2453 = vst [vmem:[%s137 + $0x170] sm:$0xff] %v2431
        %2454 = vst [vmem:[%s137 + $0x178] sm:$0xff] %v2436
        %v2455 = vld [vmem:[%s142 + $0x180] sm:$0xff]
        %v2456 = vld [vmem:[%s142 + $0x188] sm:$0xff]
        %v2457 = vld [vmem:[%s142 + $0x190] sm:$0xff]
        %v2458 = vld [vmem:[%s142 + $0x198] sm:$0xff]
        %v2459 = vld [vmem:[%s142 + $0x1a0] sm:$0xff]
        %v2460 = vld [vmem:[%s142 + $0x1a8] sm:$0xff]
        %v2461 = vld [vmem:[%s142 + $0x1b0] sm:$0xff]
        %v2462 = vld [vmem:[%s142 + $0x1b8] sm:$0xff]
        %v2463 = vld [vmem:[%s142 + $0x1c0] sm:$0xff]
        %v2464 = vld [vmem:[%s142 + $0x1c8] sm:$0xff]
        %v2465 = vld [vmem:[%s142 + $0x1d0] sm:$0xff]
        %v2466 = vld [vmem:[%s142 + $0x1d8] sm:$0xff]
        %v2467 = vld [vmem:[%s142 + $0x1e0] sm:$0xff]
        %v2468 = vld [vmem:[%s142 + $0x1e8] sm:$0xff]
        %v2469 = vld [vmem:[%s142 + $0x1f0] sm:$0xff]
        %v2470 = vld [vmem:[%s142 + $0x1f8] sm:$0xff]
        %vm2471 = vcmp.gt.s32.totalorder %v2455, 0
        %v2472 = vsel %vm2471, %v2455, 0
        %vm2473 = vcmp.gt.s32.totalorder %v2456, 0
        %v2474 = vsel %vm2473, %v2456, 0
        %vm2475 = vcmp.gt.s32.totalorder %v2457, 0
        %v2476 = vsel %vm2475, %v2457, 0
        %vm2477 = vcmp.gt.s32.totalorder %v2458, 0
        %v2478 = vsel %vm2477, %v2458, 0
        %vm2479 = vcmp.gt.s32.totalorder %v2459, 0
        %v2480 = vsel %vm2479, %v2459, 0
        %vm2481 = vcmp.gt.s32.totalorder %v2460, 0
        %v2482 = vsel %vm2481, %v2460, 0
        %vm2483 = vcmp.gt.s32.totalorder %v2461, 0
        %v2484 = vsel %vm2483, %v2461, 0
        %vm2485 = vcmp.gt.s32.totalorder %v2462, 0
        %v2486 = vsel %vm2485, %v2462, 0
        %vm2487 = vcmp.gt.s32.totalorder %v2463, 0
        %v2488 = vsel %vm2487, %v2463, 0
        %vm2489 = vcmp.gt.s32.totalorder %v2464, 0
        %v2490 = vsel %vm2489, %v2464, 0
        %vm2491 = vcmp.gt.s32.totalorder %v2465, 0
        %v2492 = vsel %vm2491, %v2465, 0
        %vm2493 = vcmp.gt.s32.totalorder %v2466, 0
        %v2494 = vsel %vm2493, %v2466, 0
        %vm2495 = vcmp.gt.s32.totalorder %v2467, 0
        %v2496 = vsel %vm2495, %v2467, 0
        %vm2497 = vcmp.gt.s32.totalorder %v2468, 0
        %v2498 = vsel %vm2497, %v2468, 0
        %vm2499 = vcmp.gt.s32.totalorder %v2469, 0
        %v2500 = vsel %vm2499, %v2469, 0
        %vm2501 = vcmp.gt.s32.totalorder %v2470, 0
        %v2502 = vsel %vm2501, %v2470, 0
        %vm2503 = vcmp.lt.s32.totalorder %v2472, 63
        %v2504 = vsel %vm2503, %v2472, 63
        %vm2505 = vcmp.lt.s32.totalorder %v2474, 63
        %v2506 = vsel %vm2505, %v2474, 63
        %vm2507 = vcmp.lt.s32.totalorder %v2476, 63
        %v2508 = vsel %vm2507, %v2476, 63
        %vm2509 = vcmp.lt.s32.totalorder %v2478, 63
        %v2510 = vsel %vm2509, %v2478, 63
        %vm2511 = vcmp.lt.s32.totalorder %v2480, 63
        %v2512 = vsel %vm2511, %v2480, 63
        %vm2513 = vcmp.lt.s32.totalorder %v2482, 63
        %v2514 = vsel %vm2513, %v2482, 63
        %vm2515 = vcmp.lt.s32.totalorder %v2484, 63
        %v2516 = vsel %vm2515, %v2484, 63
        %vm2517 = vcmp.lt.s32.totalorder %v2486, 63
        %v2518 = vsel %vm2517, %v2486, 63
        %vm2519 = vcmp.lt.s32.totalorder %v2488, 63
        %v2520 = vsel %vm2519, %v2488, 63
        %vm2521 = vcmp.lt.s32.totalorder %v2490, 63
        %v2522 = vsel %vm2521, %v2490, 63
        %vm2523 = vcmp.lt.s32.totalorder %v2492, 63
        %v2524 = vsel %vm2523, %v2492, 63
        %vm2525 = vcmp.lt.s32.totalorder %v2494, 63
        %v2526 = vsel %vm2525, %v2494, 63
        %vm2527 = vcmp.lt.s32.totalorder %v2496, 63
        %v2528 = vsel %vm2527, %v2496, 63
        %vm2529 = vcmp.lt.s32.totalorder %v2498, 63
        %v2530 = vsel %vm2529, %v2498, 63
        %vm2531 = vcmp.lt.s32.totalorder %v2500, 63
        %v2532 = vsel %vm2531, %v2500, 63
        %vm2533 = vcmp.lt.s32.totalorder %v2502, 63
        %v2534 = vsel %vm2533, %v2502, 63
        %2535 = vset.pattern.permute.xlu0 0
        %2536 = vperm.xlu0 %2535, %v2504
        %v2537 = vpop.permute.xlu0 %2536
        %2538 = vset.pattern.permute.xlu0 0
        %2539 = vperm.xlu0 %2538, %v2506
        %v2540 = vpop.permute.xlu0 %2539
        %2541 = vset.pattern.permute.xlu0 0
        %2542 = vperm.xlu0 %2541, %v2508
        %v2543 = vpop.permute.xlu0 %2542
        %2544 = vset.pattern.permute.xlu0 0
        %2545 = vperm.xlu0 %2544, %v2510
        %v2546 = vpop.permute.xlu0 %2545
        %2547 = vset.pattern.permute.xlu0 0
        %2548 = vperm.xlu0 %2547, %v2512
        %v2549 = vpop.permute.xlu0 %2548
        %2550 = vset.pattern.permute.xlu0 0
        %2551 = vperm.xlu0 %2550, %v2514
        %v2552 = vpop.permute.xlu0 %2551
        %2553 = vset.pattern.permute.xlu0 0
        %2554 = vperm.xlu0 %2553, %v2516
        %v2555 = vpop.permute.xlu0 %2554
        %2556 = vset.pattern.permute.xlu0 0
        %2557 = vperm.xlu0 %2556, %v2518
        %v2558 = vpop.permute.xlu0 %2557
        %2559 = vset.pattern.permute.xlu0 0
        %2560 = vperm.xlu0 %2559, %v2520
        %v2561 = vpop.permute.xlu0 %2560
        %2562 = vset.pattern.permute.xlu0 0
        %2563 = vperm.xlu0 %2562, %v2522
        %v2564 = vpop.permute.xlu0 %2563
        %2565 = vset.pattern.permute.xlu0 0
        %2566 = vperm.xlu0 %2565, %v2524
        %v2567 = vpop.permute.xlu0 %2566
        %2568 = vset.pattern.permute.xlu0 0
        %2569 = vperm.xlu0 %2568, %v2526
        %v2570 = vpop.permute.xlu0 %2569
        %2571 = vset.pattern.permute.xlu0 0
        %2572 = vperm.xlu0 %2571, %v2528
        %v2573 = vpop.permute.xlu0 %2572
        %2574 = vset.pattern.permute.xlu0 0
        %2575 = vperm.xlu0 %2574, %v2530
        %v2576 = vpop.permute.xlu0 %2575
        %2577 = vset.pattern.permute.xlu0 0
        %2578 = vperm.xlu0 %2577, %v2532
        %v2579 = vpop.permute.xlu0 %2578
        %2580 = vset.pattern.permute.xlu0 0
        %2581 = vperm.xlu0 %2580, %v2534
        %v2582 = vpop.permute.xlu0 %2581
        %vm2583 = vcmp.eq.s32.totalorder %v226, %v2537
        %vm2584 = vcmp.eq.s32.totalorder %v227, %v2537
        %vm2585 = vcmp.eq.s32.totalorder %v226, %v2540
        %vm2586 = vcmp.eq.s32.totalorder %v227, %v2540
        %vm2587 = vcmp.eq.s32.totalorder %v226, %v2543
        %vm2588 = vcmp.eq.s32.totalorder %v227, %v2543
        %vm2589 = vcmp.eq.s32.totalorder %v226, %v2546
        %vm2590 = vcmp.eq.s32.totalorder %v227, %v2546
        %vm2591 = vcmp.eq.s32.totalorder %v226, %v2549
        %vm2592 = vcmp.eq.s32.totalorder %v227, %v2549
        %vm2593 = vcmp.eq.s32.totalorder %v226, %v2552
        %vm2594 = vcmp.eq.s32.totalorder %v227, %v2552
        %vm2595 = vcmp.eq.s32.totalorder %v226, %v2555
        %vm2596 = vcmp.eq.s32.totalorder %v227, %v2555
        %vm2597 = vcmp.eq.s32.totalorder %v226, %v2558
        %vm2598 = vcmp.eq.s32.totalorder %v227, %v2558
        %vm2599 = vcmp.eq.s32.totalorder %v226, %v2561
        %vm2600 = vcmp.eq.s32.totalorder %v227, %v2561
        %vm2601 = vcmp.eq.s32.totalorder %v226, %v2564
        %vm2602 = vcmp.eq.s32.totalorder %v227, %v2564
        %vm2603 = vcmp.eq.s32.totalorder %v226, %v2567
        %vm2604 = vcmp.eq.s32.totalorder %v227, %v2567
        %vm2605 = vcmp.eq.s32.totalorder %v226, %v2570
        %vm2606 = vcmp.eq.s32.totalorder %v227, %v2570
        %vm2607 = vcmp.eq.s32.totalorder %v226, %v2573
        %vm2608 = vcmp.eq.s32.totalorder %v227, %v2573
        %vm2609 = vcmp.eq.s32.totalorder %v226, %v2576
        %vm2610 = vcmp.eq.s32.totalorder %v227, %v2576
        %vm2611 = vcmp.eq.s32.totalorder %v226, %v2579
        %vm2612 = vcmp.eq.s32.totalorder %v227, %v2579
        %vm2613 = vcmp.eq.s32.totalorder %v226, %v2582
        %vm2614 = vcmp.eq.s32.totalorder %v227, %v2582
        %v2615 = vadd.s32 %v2504, 64
        %v2616 = vadd.s32 %v2506, 64
        %v2617 = vadd.s32 %v2508, 64
        %v2618 = vadd.s32 %v2510, 64
        %v2619 = vadd.s32 %v2512, 64
        %v2620 = vadd.s32 %v2514, 64
        %v2621 = vadd.s32 %v2516, 64
        %v2622 = vadd.s32 %v2518, 64
        %v2623 = vadd.s32 %v2520, 64
        %v2624 = vadd.s32 %v2522, 64
        %v2625 = vadd.s32 %v2524, 64
        %v2626 = vadd.s32 %v2526, 64
        %v2627 = vadd.s32 %v2528, 64
        %v2628 = vadd.s32 %v2530, 64
        %v2629 = vadd.s32 %v2532, 64
        %v2630 = vadd.s32 %v2534, 64
        %2631 = vset.pattern.permute.xlu0 1
        %2632 = vperm.xlu0 %2631, %v2615
        %v2633 = vpop.permute.xlu0 %2632
        %2634 = vset.pattern.permute.xlu0 1
        %2635 = vperm.xlu0 %2634, %v2616
        %v2636 = vpop.permute.xlu0 %2635
        %2637 = vset.pattern.permute.xlu0 1
        %2638 = vperm.xlu0 %2637, %v2617
        %v2639 = vpop.permute.xlu0 %2638
        %2640 = vset.pattern.permute.xlu0 1
        %2641 = vperm.xlu0 %2640, %v2618
        %v2642 = vpop.permute.xlu0 %2641
        %2643 = vset.pattern.permute.xlu0 1
        %2644 = vperm.xlu0 %2643, %v2619
        %v2645 = vpop.permute.xlu0 %2644
        %2646 = vset.pattern.permute.xlu0 1
        %2647 = vperm.xlu0 %2646, %v2620
        %v2648 = vpop.permute.xlu0 %2647
        %2649 = vset.pattern.permute.xlu0 1
        %2650 = vperm.xlu0 %2649, %v2621
        %v2651 = vpop.permute.xlu0 %2650
        %2652 = vset.pattern.permute.xlu0 1
        %2653 = vperm.xlu0 %2652, %v2622
        %v2654 = vpop.permute.xlu0 %2653
        %2655 = vset.pattern.permute.xlu0 1
        %2656 = vperm.xlu0 %2655, %v2623
        %v2657 = vpop.permute.xlu0 %2656
        %2658 = vset.pattern.permute.xlu0 1
        %2659 = vperm.xlu0 %2658, %v2624
        %v2660 = vpop.permute.xlu0 %2659
        %2661 = vset.pattern.permute.xlu0 1
        %2662 = vperm.xlu0 %2661, %v2625
        %v2663 = vpop.permute.xlu0 %2662
        %2664 = vset.pattern.permute.xlu0 1
        %2665 = vperm.xlu0 %2664, %v2626
        %v2666 = vpop.permute.xlu0 %2665
        %2667 = vset.pattern.permute.xlu0 1
        %2668 = vperm.xlu0 %2667, %v2627
        %v2669 = vpop.permute.xlu0 %2668
        %2670 = vset.pattern.permute.xlu0 1
        %2671 = vperm.xlu0 %2670, %v2628
        %v2672 = vpop.permute.xlu0 %2671
        %2673 = vset.pattern.permute.xlu0 1
        %2674 = vperm.xlu0 %2673, %v2629
        %v2675 = vpop.permute.xlu0 %2674
        %2676 = vset.pattern.permute.xlu0 1
        %2677 = vperm.xlu0 %2676, %v2630
        %v2678 = vpop.permute.xlu0 %2677
        %vm2679 = vcmp.eq.s32.totalorder %v226, %v2633
        %vm2680 = vcmp.eq.s32.totalorder %v227, %v2633
        %vm2681 = vcmp.eq.s32.totalorder %v226, %v2636
        %vm2682 = vcmp.eq.s32.totalorder %v227, %v2636
        %vm2683 = vcmp.eq.s32.totalorder %v226, %v2639
        %vm2684 = vcmp.eq.s32.totalorder %v227, %v2639
        %vm2685 = vcmp.eq.s32.totalorder %v226, %v2642
        %vm2686 = vcmp.eq.s32.totalorder %v227, %v2642
        %vm2687 = vcmp.eq.s32.totalorder %v226, %v2645
        %vm2688 = vcmp.eq.s32.totalorder %v227, %v2645
        %vm2689 = vcmp.eq.s32.totalorder %v226, %v2648
        %vm2690 = vcmp.eq.s32.totalorder %v227, %v2648
        %vm2691 = vcmp.eq.s32.totalorder %v226, %v2651
        %vm2692 = vcmp.eq.s32.totalorder %v227, %v2651
        %vm2693 = vcmp.eq.s32.totalorder %v226, %v2654
        %vm2694 = vcmp.eq.s32.totalorder %v227, %v2654
        %vm2695 = vcmp.eq.s32.totalorder %v226, %v2657
        %vm2696 = vcmp.eq.s32.totalorder %v227, %v2657
        %vm2697 = vcmp.eq.s32.totalorder %v226, %v2660
        %vm2698 = vcmp.eq.s32.totalorder %v227, %v2660
        %vm2699 = vcmp.eq.s32.totalorder %v226, %v2663
        %vm2700 = vcmp.eq.s32.totalorder %v227, %v2663
        %vm2701 = vcmp.eq.s32.totalorder %v226, %v2666
        %vm2702 = vcmp.eq.s32.totalorder %v227, %v2666
        %vm2703 = vcmp.eq.s32.totalorder %v226, %v2669
        %vm2704 = vcmp.eq.s32.totalorder %v227, %v2669
        %vm2705 = vcmp.eq.s32.totalorder %v226, %v2672
        %vm2706 = vcmp.eq.s32.totalorder %v227, %v2672
        %vm2707 = vcmp.eq.s32.totalorder %v226, %v2675
        %vm2708 = vcmp.eq.s32.totalorder %v227, %v2675
        %vm2709 = vcmp.eq.s32.totalorder %v226, %v2678
        %vm2710 = vcmp.eq.s32.totalorder %v227, %v2678
        %vm2711 = vmor %vm2583, %vm2679
        %vm2712 = vmor %vm2584, %vm2680
        %vm2713 = vmor %vm2585, %vm2681
        %vm2714 = vmor %vm2586, %vm2682
        %vm2715 = vmor %vm2587, %vm2683
        %vm2716 = vmor %vm2588, %vm2684
        %vm2717 = vmor %vm2589, %vm2685
        %vm2718 = vmor %vm2590, %vm2686
        %vm2719 = vmor %vm2591, %vm2687
        %vm2720 = vmor %vm2592, %vm2688
        %vm2721 = vmor %vm2593, %vm2689
        %vm2722 = vmor %vm2594, %vm2690
        %vm2723 = vmor %vm2595, %vm2691
        %vm2724 = vmor %vm2596, %vm2692
        %vm2725 = vmor %vm2597, %vm2693
        %vm2726 = vmor %vm2598, %vm2694
        %vm2727 = vmor %vm2599, %vm2695
        %vm2728 = vmor %vm2600, %vm2696
        %vm2729 = vmor %vm2601, %vm2697
        %vm2730 = vmor %vm2602, %vm2698
        %vm2731 = vmor %vm2603, %vm2699
        %vm2732 = vmor %vm2604, %vm2700
        %vm2733 = vmor %vm2605, %vm2701
        %vm2734 = vmor %vm2606, %vm2702
        %vm2735 = vmor %vm2607, %vm2703
        %vm2736 = vmor %vm2608, %vm2704
        %vm2737 = vmor %vm2609, %vm2705
        %vm2738 = vmor %vm2610, %vm2706
        %vm2739 = vmor %vm2611, %vm2707
        %vm2740 = vmor %vm2612, %vm2708
        %vm2741 = vmor %vm2613, %vm2709
        %vm2742 = vmor %vm2614, %vm2710
        %v2743 = vadd.s32 %v2504, 128
        %v2744 = vadd.s32 %v2506, 128
        %v2745 = vadd.s32 %v2508, 128
        %v2746 = vadd.s32 %v2510, 128
        %v2747 = vadd.s32 %v2512, 128
        %v2748 = vadd.s32 %v2514, 128
        %v2749 = vadd.s32 %v2516, 128
        %v2750 = vadd.s32 %v2518, 128
        %v2751 = vadd.s32 %v2520, 128
        %v2752 = vadd.s32 %v2522, 128
        %v2753 = vadd.s32 %v2524, 128
        %v2754 = vadd.s32 %v2526, 128
        %v2755 = vadd.s32 %v2528, 128
        %v2756 = vadd.s32 %v2530, 128
        %v2757 = vadd.s32 %v2532, 128
        %v2758 = vadd.s32 %v2534, 128
        %2759 = vset.pattern.permute.xlu0 2
        %2760 = vperm.xlu0 %2759, %v2743
        %v2761 = vpop.permute.xlu0 %2760
        %2762 = vset.pattern.permute.xlu0 2
        %2763 = vperm.xlu0 %2762, %v2744
        %v2764 = vpop.permute.xlu0 %2763
        %2765 = vset.pattern.permute.xlu0 2
        %2766 = vperm.xlu0 %2765, %v2745
        %v2767 = vpop.permute.xlu0 %2766
        %2768 = vset.pattern.permute.xlu0 2
        %2769 = vperm.xlu0 %2768, %v2746
        %v2770 = vpop.permute.xlu0 %2769
        %2771 = vset.pattern.permute.xlu0 2
        %2772 = vperm.xlu0 %2771, %v2747
        %v2773 = vpop.permute.xlu0 %2772
        %2774 = vset.pattern.permute.xlu0 2
        %2775 = vperm.xlu0 %2774, %v2748
        %v2776 = vpop.permute.xlu0 %2775
        %2777 = vset.pattern.permute.xlu0 2
        %2778 = vperm.xlu0 %2777, %v2749
        %v2779 = vpop.permute.xlu0 %2778
        %2780 = vset.pattern.permute.xlu0 2
        %2781 = vperm.xlu0 %2780, %v2750
        %v2782 = vpop.permute.xlu0 %2781
        %2783 = vset.pattern.permute.xlu0 2
        %2784 = vperm.xlu0 %2783, %v2751
        %v2785 = vpop.permute.xlu0 %2784
        %2786 = vset.pattern.permute.xlu0 2
        %2787 = vperm.xlu0 %2786, %v2752
        %v2788 = vpop.permute.xlu0 %2787
        %2789 = vset.pattern.permute.xlu0 2
        %2790 = vperm.xlu0 %2789, %v2753
        %v2791 = vpop.permute.xlu0 %2790
        %2792 = vset.pattern.permute.xlu0 2
        %2793 = vperm.xlu0 %2792, %v2754
        %v2794 = vpop.permute.xlu0 %2793
        %2795 = vset.pattern.permute.xlu0 2
        %2796 = vperm.xlu0 %2795, %v2755
        %v2797 = vpop.permute.xlu0 %2796
        %2798 = vset.pattern.permute.xlu0 2
        %2799 = vperm.xlu0 %2798, %v2756
        %v2800 = vpop.permute.xlu0 %2799
        %2801 = vset.pattern.permute.xlu0 2
        %2802 = vperm.xlu0 %2801, %v2757
        %v2803 = vpop.permute.xlu0 %2802
        %2804 = vset.pattern.permute.xlu0 2
        %2805 = vperm.xlu0 %2804, %v2758
        %v2806 = vpop.permute.xlu0 %2805
        %vm2807 = vcmp.eq.s32.totalorder %v226, %v2761
        %vm2808 = vcmp.eq.s32.totalorder %v227, %v2761
        %vm2809 = vcmp.eq.s32.totalorder %v226, %v2764
        %vm2810 = vcmp.eq.s32.totalorder %v227, %v2764
        %vm2811 = vcmp.eq.s32.totalorder %v226, %v2767
        %vm2812 = vcmp.eq.s32.totalorder %v227, %v2767
        %vm2813 = vcmp.eq.s32.totalorder %v226, %v2770
        %vm2814 = vcmp.eq.s32.totalorder %v227, %v2770
        %vm2815 = vcmp.eq.s32.totalorder %v226, %v2773
        %vm2816 = vcmp.eq.s32.totalorder %v227, %v2773
        %vm2817 = vcmp.eq.s32.totalorder %v226, %v2776
        %vm2818 = vcmp.eq.s32.totalorder %v227, %v2776
        %vm2819 = vcmp.eq.s32.totalorder %v226, %v2779
        %vm2820 = vcmp.eq.s32.totalorder %v227, %v2779
        %vm2821 = vcmp.eq.s32.totalorder %v226, %v2782
        %vm2822 = vcmp.eq.s32.totalorder %v227, %v2782
        %vm2823 = vcmp.eq.s32.totalorder %v226, %v2785
        %vm2824 = vcmp.eq.s32.totalorder %v227, %v2785
        %vm2825 = vcmp.eq.s32.totalorder %v226, %v2788
        %vm2826 = vcmp.eq.s32.totalorder %v227, %v2788
        %vm2827 = vcmp.eq.s32.totalorder %v226, %v2791
        %vm2828 = vcmp.eq.s32.totalorder %v227, %v2791
        %vm2829 = vcmp.eq.s32.totalorder %v226, %v2794
        %vm2830 = vcmp.eq.s32.totalorder %v227, %v2794
        %vm2831 = vcmp.eq.s32.totalorder %v226, %v2797
        %vm2832 = vcmp.eq.s32.totalorder %v227, %v2797
        %vm2833 = vcmp.eq.s32.totalorder %v226, %v2800
        %vm2834 = vcmp.eq.s32.totalorder %v227, %v2800
        %vm2835 = vcmp.eq.s32.totalorder %v226, %v2803
        %vm2836 = vcmp.eq.s32.totalorder %v227, %v2803
        %vm2837 = vcmp.eq.s32.totalorder %v226, %v2806
        %vm2838 = vcmp.eq.s32.totalorder %v227, %v2806
        %vm2839 = vmor %vm2711, %vm2807
        %vm2840 = vmor %vm2712, %vm2808
        %vm2841 = vmor %vm2713, %vm2809
        %vm2842 = vmor %vm2714, %vm2810
        %vm2843 = vmor %vm2715, %vm2811
        %vm2844 = vmor %vm2716, %vm2812
        %vm2845 = vmor %vm2717, %vm2813
        %vm2846 = vmor %vm2718, %vm2814
        %vm2847 = vmor %vm2719, %vm2815
        %vm2848 = vmor %vm2720, %vm2816
        %vm2849 = vmor %vm2721, %vm2817
        %vm2850 = vmor %vm2722, %vm2818
        %vm2851 = vmor %vm2723, %vm2819
        %vm2852 = vmor %vm2724, %vm2820
        %vm2853 = vmor %vm2725, %vm2821
        %vm2854 = vmor %vm2726, %vm2822
        %vm2855 = vmor %vm2727, %vm2823
        %vm2856 = vmor %vm2728, %vm2824
        %vm2857 = vmor %vm2729, %vm2825
        %vm2858 = vmor %vm2730, %vm2826
        %vm2859 = vmor %vm2731, %vm2827
        %vm2860 = vmor %vm2732, %vm2828
        %vm2861 = vmor %vm2733, %vm2829
        %vm2862 = vmor %vm2734, %vm2830
        %vm2863 = vmor %vm2735, %vm2831
        %vm2864 = vmor %vm2736, %vm2832
        %vm2865 = vmor %vm2737, %vm2833
        %vm2866 = vmor %vm2738, %vm2834
        %vm2867 = vmor %vm2739, %vm2835
        %vm2868 = vmor %vm2740, %vm2836
        %vm2869 = vmor %vm2741, %vm2837
        %vm2870 = vmor %vm2742, %vm2838
        %v2871 = vadd.s32 %v2504, 192
        %v2872 = vadd.s32 %v2506, 192
        %v2873 = vadd.s32 %v2508, 192
        %v2874 = vadd.s32 %v2510, 192
        %v2875 = vadd.s32 %v2512, 192
        %v2876 = vadd.s32 %v2514, 192
        %v2877 = vadd.s32 %v2516, 192
        %v2878 = vadd.s32 %v2518, 192
        %v2879 = vadd.s32 %v2520, 192
        %v2880 = vadd.s32 %v2522, 192
        %v2881 = vadd.s32 %v2524, 192
        %v2882 = vadd.s32 %v2526, 192
        %v2883 = vadd.s32 %v2528, 192
        %v2884 = vadd.s32 %v2530, 192
        %v2885 = vadd.s32 %v2532, 192
        %v2886 = vadd.s32 %v2534, 192
        %2887 = vset.pattern.permute.xlu0 3
        %2888 = vperm.xlu0 %2887, %v2871
        %v2889 = vpop.permute.xlu0 %2888
        %2890 = vset.pattern.permute.xlu0 3
        %2891 = vperm.xlu0 %2890, %v2872
        %v2892 = vpop.permute.xlu0 %2891
        %2893 = vset.pattern.permute.xlu0 3
        %2894 = vperm.xlu0 %2893, %v2873
        %v2895 = vpop.permute.xlu0 %2894
        %2896 = vset.pattern.permute.xlu0 3
        %2897 = vperm.xlu0 %2896, %v2874
        %v2898 = vpop.permute.xlu0 %2897
        %2899 = vset.pattern.permute.xlu0 3
        %2900 = vperm.xlu0 %2899, %v2875
        %v2901 = vpop.permute.xlu0 %2900
        %2902 = vset.pattern.permute.xlu0 3
        %2903 = vperm.xlu0 %2902, %v2876
        %v2904 = vpop.permute.xlu0 %2903
        %2905 = vset.pattern.permute.xlu0 3
        %2906 = vperm.xlu0 %2905, %v2877
        %v2907 = vpop.permute.xlu0 %2906
        %2908 = vset.pattern.permute.xlu0 3
        %2909 = vperm.xlu0 %2908, %v2878
        %v2910 = vpop.permute.xlu0 %2909
        %2911 = vset.pattern.permute.xlu0 3
        %2912 = vperm.xlu0 %2911, %v2879
        %v2913 = vpop.permute.xlu0 %2912
        %2914 = vset.pattern.permute.xlu0 3
        %2915 = vperm.xlu0 %2914, %v2880
        %v2916 = vpop.permute.xlu0 %2915
        %2917 = vset.pattern.permute.xlu0 3
        %2918 = vperm.xlu0 %2917, %v2881
        %v2919 = vpop.permute.xlu0 %2918
        %2920 = vset.pattern.permute.xlu0 3
        %2921 = vperm.xlu0 %2920, %v2882
        %v2922 = vpop.permute.xlu0 %2921
        %2923 = vset.pattern.permute.xlu0 3
        %2924 = vperm.xlu0 %2923, %v2883
        %v2925 = vpop.permute.xlu0 %2924
        %2926 = vset.pattern.permute.xlu0 3
        %2927 = vperm.xlu0 %2926, %v2884
        %v2928 = vpop.permute.xlu0 %2927
        %2929 = vset.pattern.permute.xlu0 3
        %2930 = vperm.xlu0 %2929, %v2885
        %v2931 = vpop.permute.xlu0 %2930
        %2932 = vset.pattern.permute.xlu0 3
        %2933 = vperm.xlu0 %2932, %v2886
        %v2934 = vpop.permute.xlu0 %2933
        %vm2935 = vcmp.eq.s32.totalorder %v226, %v2889
        %vm2936 = vcmp.eq.s32.totalorder %v227, %v2889
        %vm2937 = vcmp.eq.s32.totalorder %v226, %v2892
        %vm2938 = vcmp.eq.s32.totalorder %v227, %v2892
        %vm2939 = vcmp.eq.s32.totalorder %v226, %v2895
        %vm2940 = vcmp.eq.s32.totalorder %v227, %v2895
        %vm2941 = vcmp.eq.s32.totalorder %v226, %v2898
        %vm2942 = vcmp.eq.s32.totalorder %v227, %v2898
        %vm2943 = vcmp.eq.s32.totalorder %v226, %v2901
        %vm2944 = vcmp.eq.s32.totalorder %v227, %v2901
        %vm2945 = vcmp.eq.s32.totalorder %v226, %v2904
        %vm2946 = vcmp.eq.s32.totalorder %v227, %v2904
        %vm2947 = vcmp.eq.s32.totalorder %v226, %v2907
        %vm2948 = vcmp.eq.s32.totalorder %v227, %v2907
        %vm2949 = vcmp.eq.s32.totalorder %v226, %v2910
        %vm2950 = vcmp.eq.s32.totalorder %v227, %v2910
        %vm2951 = vcmp.eq.s32.totalorder %v226, %v2913
        %vm2952 = vcmp.eq.s32.totalorder %v227, %v2913
        %vm2953 = vcmp.eq.s32.totalorder %v226, %v2916
        %vm2954 = vcmp.eq.s32.totalorder %v227, %v2916
        %vm2955 = vcmp.eq.s32.totalorder %v226, %v2919
        %vm2956 = vcmp.eq.s32.totalorder %v227, %v2919
        %vm2957 = vcmp.eq.s32.totalorder %v226, %v2922
        %vm2958 = vcmp.eq.s32.totalorder %v227, %v2922
        %vm2959 = vcmp.eq.s32.totalorder %v226, %v2925
        %vm2960 = vcmp.eq.s32.totalorder %v227, %v2925
        %vm2961 = vcmp.eq.s32.totalorder %v226, %v2928
        %vm2962 = vcmp.eq.s32.totalorder %v227, %v2928
        %vm2963 = vcmp.eq.s32.totalorder %v226, %v2931
        %vm2964 = vcmp.eq.s32.totalorder %v227, %v2931
        %vm2965 = vcmp.eq.s32.totalorder %v226, %v2934
        %vm2966 = vcmp.eq.s32.totalorder %v227, %v2934
        %vm2967 = vmor %vm2839, %vm2935
        %vm2968 = vmor %vm2840, %vm2936
        %vm2969 = vmor %vm2841, %vm2937
        %vm2970 = vmor %vm2842, %vm2938
        %vm2971 = vmor %vm2843, %vm2939
        %vm2972 = vmor %vm2844, %vm2940
        %vm2973 = vmor %vm2845, %vm2941
        %vm2974 = vmor %vm2846, %vm2942
        %vm2975 = vmor %vm2847, %vm2943
        %vm2976 = vmor %vm2848, %vm2944
        %vm2977 = vmor %vm2849, %vm2945
        %vm2978 = vmor %vm2850, %vm2946
        %vm2979 = vmor %vm2851, %vm2947
        %vm2980 = vmor %vm2852, %vm2948
        %vm2981 = vmor %vm2853, %vm2949
        %vm2982 = vmor %vm2854, %vm2950
        %vm2983 = vmor %vm2855, %vm2951
        %vm2984 = vmor %vm2856, %vm2952
        %vm2985 = vmor %vm2857, %vm2953
        %vm2986 = vmor %vm2858, %vm2954
        %vm2987 = vmor %vm2859, %vm2955
        %vm2988 = vmor %vm2860, %vm2956
        %vm2989 = vmor %vm2861, %vm2957
        %vm2990 = vmor %vm2862, %vm2958
        %vm2991 = vmor %vm2863, %vm2959
        %vm2992 = vmor %vm2864, %vm2960
        %vm2993 = vmor %vm2865, %vm2961
        %vm2994 = vmor %vm2866, %vm2962
        %vm2995 = vmor %vm2867, %vm2963
        %vm2996 = vmor %vm2868, %vm2964
        %vm2997 = vmor %vm2869, %vm2965
        %vm2998 = vmor %vm2870, %vm2966
        %v2999 = vsel %vm2967, 1.0, 0.0
        %v3000 = vsel %vm2968, 1.0, 0.0
        %v3001 = vsel %vm2969, 1.0, 0.0
        %v3002 = vsel %vm2970, 1.0, 0.0
        %v3003 = vsel %vm2971, 1.0, 0.0
        %v3004 = vsel %vm2972, 1.0, 0.0
        %v3005 = vsel %vm2973, 1.0, 0.0
        %v3006 = vsel %vm2974, 1.0, 0.0
        %v3007 = vsel %vm2975, 1.0, 0.0
        %v3008 = vsel %vm2976, 1.0, 0.0
        %v3009 = vsel %vm2977, 1.0, 0.0
        %v3010 = vsel %vm2978, 1.0, 0.0
        %v3011 = vsel %vm2979, 1.0, 0.0
        %v3012 = vsel %vm2980, 1.0, 0.0
        %v3013 = vsel %vm2981, 1.0, 0.0
        %v3014 = vsel %vm2982, 1.0, 0.0
        %v3015 = vsel %vm2983, 1.0, 0.0
        %v3016 = vsel %vm2984, 1.0, 0.0
        %v3017 = vsel %vm2985, 1.0, 0.0
        %v3018 = vsel %vm2986, 1.0, 0.0
        %v3019 = vsel %vm2987, 1.0, 0.0
        %v3020 = vsel %vm2988, 1.0, 0.0
        %v3021 = vsel %vm2989, 1.0, 0.0
        %v3022 = vsel %vm2990, 1.0, 0.0
        %v3023 = vsel %vm2991, 1.0, 0.0
        %v3024 = vsel %vm2992, 1.0, 0.0
        %v3025 = vsel %vm2993, 1.0, 0.0
        %v3026 = vsel %vm2994, 1.0, 0.0
        %v3027 = vsel %vm2995, 1.0, 0.0
        %v3028 = vsel %vm2996, 1.0, 0.0
        %v3029 = vsel %vm2997, 1.0, 0.0
        %v3030 = vsel %vm2998, 1.0, 0.0
        %v3031 = vld [vmem:[%s1] sm:$0xff]
        %v3032 = vld [vmem:[%s1 + $0x8] sm:$0xff]
        %v3033 = vld [vmem:[%s1 + $0x10] sm:$0xff]
        %v3034 = vld [vmem:[%s1 + $0x18] sm:$0xff]
        %v3035 = vld [vmem:[%s1 + $0x20] sm:$0xff]
        %v3036 = vld [vmem:[%s1 + $0x28] sm:$0xff]
        %v3037 = vld [vmem:[%s1 + $0x30] sm:$0xff]
        %v3038 = vld [vmem:[%s1 + $0x38] sm:$0xff]
        %v3039 = vld [vmem:[%s1 + $0x40] sm:$0xff]
        %v3040 = vld [vmem:[%s1 + $0x48] sm:$0xff]
        %v3041 = vld [vmem:[%s1 + $0x50] sm:$0xff]
        %v3042 = vld [vmem:[%s1 + $0x58] sm:$0xff]
        %v3043 = vld [vmem:[%s1 + $0x60] sm:$0xff]
        %v3044 = vld [vmem:[%s1 + $0x68] sm:$0xff]
        %v3045 = vld [vmem:[%s1 + $0x70] sm:$0xff]
        %v3046 = vld [vmem:[%s1 + $0x78] sm:$0xff]
        %v3047 = vld [vmem:[%s1 + $0x80] sm:$0xff]
        %v3048 = vld [vmem:[%s1 + $0x88] sm:$0xff]
        %v3049 = vld [vmem:[%s1 + $0x90] sm:$0xff]
        %v3050 = vld [vmem:[%s1 + $0x98] sm:$0xff]
        %v3051 = vld [vmem:[%s1 + $0xa0] sm:$0xff]
        %v3052 = vld [vmem:[%s1 + $0xa8] sm:$0xff]
        %v3053 = vld [vmem:[%s1 + $0xb0] sm:$0xff]
        %v3054 = vld [vmem:[%s1 + $0xb8] sm:$0xff]
        %v3055 = vld [vmem:[%s1 + $0xc0] sm:$0xff]
        %v3056 = vld [vmem:[%s1 + $0xc8] sm:$0xff]
        %v3057 = vld [vmem:[%s1 + $0xd0] sm:$0xff]
        %v3058 = vld [vmem:[%s1 + $0xd8] sm:$0xff]
        %v3059 = vld [vmem:[%s1 + $0xe0] sm:$0xff]
        %v3060 = vld [vmem:[%s1 + $0xe8] sm:$0xff]
        %v3061 = vld [vmem:[%s1 + $0xf0] sm:$0xff]
        %v3062 = vld [vmem:[%s1 + $0xf8] sm:$0xff]
        %3063 = vmatprep.subr.mxu0 0.0
        %3064 = vmatpush1.msra.mxu0 %v3046
        %3065 = vmatprep.subr.mxu0 0.0
        %3066 = vmatpush1.msra.mxu0 %v3045
        %3067 = vmatprep.subr.mxu0 0.0
        %3068 = vmatpush1.msra.mxu0 %v3044
        %3069 = vmatprep.subr.mxu0 0.0
        %3070 = vmatpush1.msra.mxu0 %v3043
        %3071 = vmatprep.subr.mxu0 0.0
        %3072 = vmatpush1.msra.mxu0 %v3042
        %3073 = vmatprep.subr.mxu0 0.0
        %3074 = vmatpush1.msra.mxu0 %v3041
        %3075 = vmatprep.subr.mxu0 0.0
        %3076 = vmatpush1.msra.mxu0 %v3040
        %3077 = vmatprep.subr.mxu0 0.0
        %3078 = vmatpush1.msra.mxu0 %v3039
        %3079 = vmatprep.subr.mxu0 0.0
        %3080 = vmatpush1.msra.mxu0 %v3038
        %3081 = vmatprep.subr.mxu0 0.0
        %3082 = vmatpush1.msra.mxu0 %v3037
        %3083 = vmatprep.subr.mxu0 0.0
        %3084 = vmatpush1.msra.mxu0 %v3036
        %3085 = vmatprep.subr.mxu0 0.0
        %3086 = vmatpush1.msra.mxu0 %v3035
        %3087 = vmatprep.subr.mxu0 0.0
        %3088 = vmatpush1.msra.mxu0 %v3034
        %3089 = vmatprep.subr.mxu0 0.0
        %3090 = vmatpush1.msra.mxu0 %v3033
        %3091 = vmatprep.subr.mxu0 0.0
        %3092 = vmatpush1.msra.mxu0 %v3032
        %3093 = vmatprep.subr.mxu0 0.0
        %3094 = vmatpush1.msra.mxu0 %v3031
        %3095 = vmatprep.subr.mxu0 0.0
        %3096 = vmatpush2.msra.mxu0 %v3062
        %3097 = vmatprep.subr.mxu0 0.0
        %3098 = vmatpush2.msra.mxu0 %v3061
        %3099 = vmatprep.subr.mxu0 0.0
        %3100 = vmatpush2.msra.mxu0 %v3060
        %3101 = vmatprep.subr.mxu0 0.0
        %3102 = vmatpush2.msra.mxu0 %v3059
        %3103 = vmatprep.subr.mxu0 0.0
        %3104 = vmatpush2.msra.mxu0 %v3058
        %3105 = vmatprep.subr.mxu0 0.0
        %3106 = vmatpush2.msra.mxu0 %v3057
        %3107 = vmatprep.subr.mxu0 0.0
        %3108 = vmatpush2.msra.mxu0 %v3056
        %3109 = vmatprep.subr.mxu0 0.0
        %3110 = vmatpush2.msra.mxu0 %v3055
        %3111 = vmatprep.subr.mxu0 0.0
        %3112 = vmatpush2.msra.mxu0 %v3054
        %3113 = vmatprep.subr.mxu0 0.0
        %3114 = vmatpush2.msra.mxu0 %v3053
        %3115 = vmatprep.subr.mxu0 0.0
        %3116 = vmatpush2.msra.mxu0 %v3052
        %3117 = vmatprep.subr.mxu0 0.0
        %3118 = vmatpush2.msra.mxu0 %v3051
        %3119 = vmatprep.subr.mxu0 0.0
        %3120 = vmatpush2.msra.mxu0 %v3050
        %3121 = vmatprep.subr.mxu0 0.0
        %3122 = vmatpush2.msra.mxu0 %v3049
        %3123 = vmatprep.subr.mxu0 0.0
        %3124 = vmatpush2.msra.mxu0 %v3048
        %3125 = vmatprep.subr.mxu0 0.0
        %3126 = vmatpush2.msra.mxu0 %v3047
        %3127 = vmatprep.mubr.f32.mxu0 %v3000
        %3128 = vmatmul.mubr.f32.gmra.mxu0 %v2999
        %v3129 = vpop.f32.mrf.mxu0
        %v3130 = vadd.f32 0.0, %v3129
        %v3131 = vpop.f32.mrf.mxu0
        %3132 = vmatprep.mubr.f32.mxu0 %v3002
        %3133 = vmatmul.mubr.f32.gmra.mxu0 %v3001
        %v3134 = vpop.f32.mrf.mxu0
        %v3135 = vadd.f32 0.0, %v3134
        %v3136 = vpop.f32.mrf.mxu0
        %3137 = vmatprep.mubr.f32.mxu0 %v3004
        %3138 = vmatmul.mubr.f32.gmra.mxu0 %v3003
        %v3139 = vpop.f32.mrf.mxu0
        %v3140 = vadd.f32 0.0, %v3139
        %v3141 = vpop.f32.mrf.mxu0
        %3142 = vmatprep.mubr.f32.mxu0 %v3006
        %3143 = vmatmul.mubr.f32.gmra.mxu0 %v3005
        %v3144 = vpop.f32.mrf.mxu0
        %v3145 = vadd.f32 0.0, %v3144
        %v3146 = vpop.f32.mrf.mxu0
        %3147 = vmatprep.mubr.f32.mxu0 %v3008
        %3148 = vmatmul.mubr.f32.gmra.mxu0 %v3007
        %v3149 = vpop.f32.mrf.mxu0
        %v3150 = vadd.f32 0.0, %v3149
        %v3151 = vpop.f32.mrf.mxu0
        %3152 = vmatprep.mubr.f32.mxu0 %v3010
        %3153 = vmatmul.mubr.f32.gmra.mxu0 %v3009
        %v3154 = vpop.f32.mrf.mxu0
        %v3155 = vadd.f32 0.0, %v3154
        %v3156 = vpop.f32.mrf.mxu0
        %3157 = vmatprep.mubr.f32.mxu0 %v3012
        %3158 = vmatmul.mubr.f32.gmra.mxu0 %v3011
        %v3159 = vpop.f32.mrf.mxu0
        %v3160 = vadd.f32 0.0, %v3159
        %v3161 = vpop.f32.mrf.mxu0
        %3162 = vmatprep.mubr.f32.mxu0 %v3014
        %3163 = vmatmul.mubr.f32.gmra.mxu0 %v3013
        %v3164 = vpop.f32.mrf.mxu0
        %v3165 = vadd.f32 0.0, %v3164
        %v3166 = vpop.f32.mrf.mxu0
        %3167 = vmatprep.mubr.f32.mxu0 %v3016
        %3168 = vmatmul.mubr.f32.gmra.mxu0 %v3015
        %v3169 = vpop.f32.mrf.mxu0
        %v3170 = vadd.f32 0.0, %v3169
        %v3171 = vpop.f32.mrf.mxu0
        %3172 = vmatprep.mubr.f32.mxu0 %v3018
        %3173 = vmatmul.mubr.f32.gmra.mxu0 %v3017
        %v3174 = vpop.f32.mrf.mxu0
        %v3175 = vadd.f32 0.0, %v3174
        %v3176 = vpop.f32.mrf.mxu0
        %3177 = vmatprep.mubr.f32.mxu0 %v3020
        %3178 = vmatmul.mubr.f32.gmra.mxu0 %v3019
        %v3179 = vpop.f32.mrf.mxu0
        %v3180 = vadd.f32 0.0, %v3179
        %v3181 = vpop.f32.mrf.mxu0
        %3182 = vmatprep.mubr.f32.mxu0 %v3022
        %3183 = vmatmul.mubr.f32.gmra.mxu0 %v3021
        %v3184 = vpop.f32.mrf.mxu0
        %v3185 = vadd.f32 0.0, %v3184
        %v3186 = vpop.f32.mrf.mxu0
        %3187 = vmatprep.mubr.f32.mxu0 %v3024
        %3188 = vmatmul.mubr.f32.gmra.mxu0 %v3023
        %v3189 = vpop.f32.mrf.mxu0
        %v3190 = vadd.f32 0.0, %v3189
        %v3191 = vpop.f32.mrf.mxu0
        %3192 = vmatprep.mubr.f32.mxu0 %v3026
        %3193 = vmatmul.mubr.f32.gmra.mxu0 %v3025
        %v3194 = vpop.f32.mrf.mxu0
        %v3195 = vadd.f32 0.0, %v3194
        %v3196 = vpop.f32.mrf.mxu0
        %3197 = vmatprep.mubr.f32.mxu0 %v3028
        %3198 = vmatmul.mubr.f32.gmra.mxu0 %v3027
        %v3199 = vpop.f32.mrf.mxu0
        %v3200 = vadd.f32 0.0, %v3199
        %v3201 = vpop.f32.mrf.mxu0
        %3202 = vmatprep.mubr.f32.mxu0 %v3030
        %3203 = vmatmul.mubr.f32.gmra.mxu0 %v3029
        %v3204 = vpop.f32.mrf.mxu0
        %v3205 = vadd.f32 0.0, %v3204
        %v3206 = vpop.f32.mrf.mxu0
        %3207 = vdwg.mxu0
        %3208 = vst [vmem:[%s137 + $0x180] sm:$0xff] %v3130
        %3209 = vst [vmem:[%s137 + $0x188] sm:$0xff] %v3135
        %3210 = vst [vmem:[%s137 + $0x190] sm:$0xff] %v3140
        %3211 = vst [vmem:[%s137 + $0x198] sm:$0xff] %v3145
        %3212 = vst [vmem:[%s137 + $0x1a0] sm:$0xff] %v3150
        %3213 = vst [vmem:[%s137 + $0x1a8] sm:$0xff] %v3155
        %3214 = vst [vmem:[%s137 + $0x1b0] sm:$0xff] %v3160
        %3215 = vst [vmem:[%s137 + $0x1b8] sm:$0xff] %v3165
        %3216 = vst [vmem:[%s137 + $0x1c0] sm:$0xff] %v3170
        %3217 = vst [vmem:[%s137 + $0x1c8] sm:$0xff] %v3175
        %3218 = vst [vmem:[%s137 + $0x1d0] sm:$0xff] %v3180
        %3219 = vst [vmem:[%s137 + $0x1d8] sm:$0xff] %v3185
        %3220 = vst [vmem:[%s137 + $0x1e0] sm:$0xff] %v3190
        %3221 = vst [vmem:[%s137 + $0x1e8] sm:$0xff] %v3195
        %3222 = vst [vmem:[%s137 + $0x1f0] sm:$0xff] %v3200
        %3223 = vst [vmem:[%s137 + $0x1f8] sm:$0xff] %v3205
        %s3224 = sand.u32 %s71, 1
        %s3225 = scalar_lea.sflag [#allocation3], %s3224
        %s3226 = sand.u32 %s71, 1
        %s3227 = smul.addr %s3226, 512
        %s3228 = scalar_lea.vmem [#allocation2], %s3227
        // Predicated region
        $region29: #{tpu_custom_call.1} parent=27 // pred_check
          %p3229 = pneg %p81
        $region30: #{tpu_custom_call.1} parent=27 // pred_check_branch
          %3231 = sbr.rel (%p3229) target = $region32
        $region31: #{tpu_custom_call.1} parent=27 // pred_region
          %s3232 = smul.u32 64, %s16
          %s3234 = ssub.s32 8192, 8192
          %3235 = vsyncadd %s3225, %s3234
          %s3236 = smul.addr %s3232, 128
          %s3237 = scalar_lea.hbm %s2, %s3236
          %s3238 = sshll.u32 %s3228, 4
          %s3239 = int_to_ptr.vmem [resolvable:$true] %s3238
          %3244 = dma.vmem_to_hbm [thread:$0]  %s3239, 8192, %s3237, %s3225, 128, 128, 8
        $region32: #{tpu_custom_call.1} parent=27 // pred_fallthru
          _
      $region28: #{tpu_custom_call.1} parent=5 // pred_fallthru
        _
      %p3245 = scmp.le.s32.totalorder 2, %s11
      // Predicated region
      $region33: #{tpu_custom_call.1} parent=5 // pred_check
        %p3246 = pneg %p3245
      $region34: #{tpu_custom_call.1} parent=5 // pred_check_branch
        %3248 = sbr.rel (%p3246) target = $region36
      $region35: #{tpu_custom_call.1} parent=5 // pred_region
        %s3249 = ssub.s32 %s11, 2
        // Predicated region
        $region37: #{tpu_custom_call.1} parent=35 // pred_check
          %p3250 = pneg %p87
        $region38: #{tpu_custom_call.1} parent=35 // pred_check_branch
          %3252 = sbr.rel (%p3250) target = $region40
        $region39: #{tpu_custom_call.1} parent=35 // pred_region
          %s3253 = sand.u32 %s72, 1
          %s3254 = scalar_lea.sflag [#allocation3], %s3253
          %s3255 = sand.u32 %s72, 1
          %s3256 = smul.addr %s3255, 512
          %s3257 = scalar_lea.vmem [#allocation2], %s3256
          %3258 = dma.done %s3254, 8192
        $region40: #{tpu_custom_call.1} parent=35 // pred_fallthru
          _
      $region36: #{tpu_custom_call.1} parent=5 // pred_fallthru
        _
    $region6: #{tpu_custom_call.1} parent=1 // loop_footer
      %s15 = sadd.s32 1, %s11
    $region7: #{tpu_custom_call.1} parent=1 // loop_footer_branch
      %10 = sbr.rel target = $region3
    $region8: #{tpu_custom_call.1} parent=1 // loop_exit
      _
    %3259 = vsyncpa [#allocation3], 1
    %s3260 = scalar_lea.sflag [#allocation3], 1
    %3261 = vsyncpa %s3260, 1

</llo_original>
